<compile_context>
chip_gen: v7x
topology: tpu7x:2x2x1
jax: 0.10.0
libtpu: 0.0.40
codegen_flags: <defaults>
</compile_context>

<pallas_src>
import jax
import jax.numpy as jnp
import numpy as np
from jax.experimental import pallas as pl
from jax.experimental.pallas import tpu as pltpu


# --------------------------------------------------------------------------
# Pallas kernel: full-resolution hot path, one (batch, H-tile) per grid step
# --------------------------------------------------------------------------
def _sigmoid(z):
    # exp on the EUP + approximate reciprocal (EUP slot, nearly free).
    return pl.reciprocal(1.0 + jnp.exp(-z), approx=True)


def _ba_kernel(pre_ref, x_ref, finw_ref, finb_ref,
               m1w_ref, m1b_ref, m2w_ref, m2b_ref,
               hx_ref, ms_ref, pad_ref):
    THp4, W, mid = pre_ref.shape          # TH+4 rows: 2-row halo each side
    TH = THp4 - 4
    C = x_ref.shape[-1]                   # inplanes == outplanes
    i = pl.program_id(1)
    last = pl.num_programs(1) - 1

    # ---- pointwise path over all TH+4 rows.  Out-of-image halo rows have
    #      x == 0, so out1 there is exactly the 3x3-conv zero padding.
    hx = jnp.maximum(pre_ref[...].reshape(THp4 * W, mid), 0.0)
    mask1 = _sigmoid(
        jnp.dot(hx, finw_ref[...], preferred_element_type=jnp.float32)
        + finb_ref[...])
    out1 = x_ref[...].reshape(THp4 * W, C) * mask1           # f32
    out1_3d = out1.reshape(THp4, W, C)

    # multi_scale_out = relu(pre) on the centre rows (pure f32 path).
    ms_ref[...] = hx.reshape(THp4, W, mid)[2:TH + 2]

    # ---- zero-bordered scratch is the conv input: columns 0 / W+1 are the
    #      conv zero padding in W (re-zeroed each step: two tiny stores; a
    #      first-step-only init is unsafe with per-core scratch on megacore).
    pad_ref[:, 0:1, :] = jnp.zeros((THp4, 1, C), jnp.float32)
    pad_ref[:, W + 1:W + 2, :] = jnp.zeros((THp4, 1, C), jnp.float32)
    pad_ref[:, 1:W + 1, :] = out1_3d

    def conv3x3(rows_out, w_ref, b_ref):
        # 3x3 conv (padding=1): build the W-direction im2col window ONCE
        # (single lane concat, bf16), then one fat K=3*C bf16 MXU matmul per
        # dy (3 total) with f32 accumulation; bias added once.
        rows_in = rows_out + 2
        padv = pad_ref[0:rows_in, :, :].astype(jnp.bfloat16)
        win = jnp.concatenate(
            [padv[:, 0:W, :], padv[:, 1:W + 1, :], padv[:, 2:W + 2, :]],
            axis=-1)                                          # (rows_in, W, 3C)
        acc = b_ref[...]                                      # (1, C) f32
        for dy in range(3):
            acc = acc + jnp.dot(
                win[dy:dy + rows_out].reshape(rows_out * W, 3 * C),
                w_ref[dy], preferred_element_type=jnp.float32)
        return acc                                            # (rows_out*W, C)

    # mask_conv_1 + relu on TH+2 rows (1-row halo for mask_conv_2).
    h2 = jnp.maximum(conv3x3(TH + 2, m1w_ref, m1b_ref), 0.0)
    pad_ref[0:TH + 2, 1:W + 1, :] = h2.reshape(TH + 2, W, C)

    # Rows outside the image must act as mask_conv_2 zero padding; only the
    # first / last H-tile of each image has such a row.
    @pl.when(i == 0)
    def _():
        pad_ref[0:1, 1:W + 1, :] = jnp.zeros((1, W, C), jnp.float32)

    @pl.when(i == last)
    def _():
        pad_ref[TH + 1:TH + 2, 1:W + 1, :] = jnp.zeros((1, W, C), jnp.float32)

    # mask_conv_2 + sigmoid, then out = out1 * mask_2 on the centre rows.
    mask2 = _sigmoid(conv3x3(TH, m2w_ref, m2b_ref))
    out1_c = out1_3d[2:TH + 2].reshape(TH * W, C)
    hx_ref[...] = (out1_c * mask2).reshape(TH, W, C)


# --------------------------------------------------------------------------
# Tiling / VMEM budgeting and the pallas_call wrapper
# --------------------------------------------------------------------------
def _round_up(v, m):
    return -(-v // m) * m


def _pick_tile(N, H, W, mid, C):
    """Largest H-tile (divisor of H) whose working set fits ~75% of this
    generation's VMEM; prefer >= 2 total grid steps (both v7x TCs busy).
    Returns (TH, vmem_limit_bytes)."""
    try:
        cap = int(pltpu.get_tpu_info().vmem_capacity_bytes)
    except Exception:
        cap = 64 << 20                      # conservative (v7x-sized) default
    budget = (cap * 3) // 4                 # ~48 MiB v7x, ~96 MiB v5e/v6e

    lane_c = _round_up(C, 128)
    lane_m = _round_up(mid, 128)
    lane_3c = _round_up(3 * C, 128)
    sub_w = _round_up(W, 8)
    sub_w2 = _round_up(W + 2, 8)

    def est(th):
        rows = th + 4
        ins = 2 * rows * sub_w * (lane_m + lane_c) * 4        # double-buffered
        outs = 2 * th * sub_w * (lane_m + lane_c) * 4
        scratch = rows * sub_w2 * lane_c * 4
        interm = rows * sub_w * (3 * lane_c * 4 + lane_m * 4 + 2 * lane_3c * 2)
        return ins + outs + scratch + interm + (2 << 20)

    cands = [d for d in range(H, 0, -1) if H % d == 0 and (d % 8 == 0 or d == H)]
    fits = [d for d in cands if est(d) <= budget] or [cands[-1]]
    multi = [d for d in fits if N * (H // d) >= 2]
    return (multi or fits)[0], budget


def _tile_windows(t, TH):
    """(N, H, W, c) -> (N, nH, TH+4, W, c) overlapping row windows; rows
    outside the image are zero (== 3x3-conv zero padding)."""
    N, H, W, c = t.shape
    nH = H // TH
    tp = jnp.pad(t, ((0, 0), (2, 2), (0, 0), (0, 0)))
    return jnp.stack(
        [jax.lax.slice_in_dim(tp, k * TH, k * TH + TH + 4, axis=1)
         for k in range(nH)], axis=1)


def _ba_pallas_stage(pre, x, fin_w, fin_b, m1_w, m1_b, m2_w, m2_b):
    N, H, W, mid = pre.shape
    C = x.shape[-1]
    TH, vmem_limit = _pick_tile(N, H, W, mid, C)
    nH = H // TH
    assert H % TH == 0

    pre_win = _tile_windows(pre, TH)        # (N, nH, TH+4, W, mid)
    x_win = _tile_windows(x, TH)            # (N, nH, TH+4, W, C)

    def win_spec(c):
        return pl.BlockSpec((None, None, TH + 4, W, c),
                            lambda b, i: (b, i, 0, 0, 0))

    def out_spec(c):
        return pl.BlockSpec((None, TH, W, c), lambda b, i: (b, i, 0, 0))

    def w_spec(shape):                      # small, grid-invariant weights
        return pl.BlockSpec(shape, lambda b, i, n=len(shape): (0,) * n)

    # TODO(synk): lane-dense (W*C)-flattened output blocks (review item 2)
    # need an in-kernel minor-dim merge reshape; deferred to keep lowering
    # on the proven path.
    hx, ms = pl.pallas_call(
        _ba_kernel,
        out_shape=(jax.ShapeDtypeStruct((N, H, W, C), jnp.float32),
                   jax.ShapeDtypeStruct((N, H, W, mid), jnp.float32)),
        grid=(N, nH),
        in_specs=[win_spec(mid), win_spec(C),
                  w_spec(fin_w.shape), w_spec(fin_b.shape),
                  w_spec(m1_w.shape), w_spec(m1_b.shape),
                  w_spec(m2_w.shape), w_spec(m2_b.shape)],
        out_specs=(out_spec(C), out_spec(mid)),
        scratch_shapes=[pltpu.VMEM((TH + 4, W + 2, C), jnp.float32)],
        compiler_params=pltpu.CompilerParams(
            dimension_semantics=("parallel", "parallel"),
            vmem_limit_bytes=int(vmem_limit)),
    )(pre_win, x_win, fin_w, fin_b, m1_w, m1_b, m2_w, m2_b)
    return hx, ms


# --------------------------------------------------------------------------
# Plain-JAX glue (pooled-resolution work + parameter plumbing)
# --------------------------------------------------------------------------
def _conv2d(x, w, padding):
    return jax.lax.conv_general_dilated(
        x, w, window_strides=(1, 1), padding=padding,
        dimension_numbers=('NCHW', 'OIHW', 'NCHW'),
        precision=jax.lax.Precision.HIGHEST)


def _adaptive_avg_pool_axis(x, out_size, axis):
    # Exact PyTorch AdaptiveAvgPool bins: [floor(i*L/k), ceil((i+1)*L/k))
    in_size = x.shape[axis]
    parts = []
    for i in range(out_size):
        start = (i * in_size) // out_size
        end = -((-(i + 1) * in_size) // out_size)
        sl = jax.lax.slice_in_dim(x, start, end, axis=axis)
        parts.append(jnp.mean(sl, axis=axis, keepdims=True))
    return jnp.concatenate(parts, axis=axis)


def _nearest_resize(x, out_h, out_w):
    # F.interpolate(..., mode='nearest'): src = floor(dst * in / out)
    h_in, w_in = x.shape[2], x.shape[3]
    hi = (jnp.arange(out_h) * h_in) // out_h
    wi = (jnp.arange(out_w) * w_in) // out_w
    return x[:, :, hi[:, None], wi[None, :]]


def _fused_branch_sum(x, p):
    """Full-resolution fuse_conv(cat(branch sums)) with the 1x1 fuse folded
    into the tiny pooled branch convs (exact commute with nearest resize)."""
    N, _, H, W = x.shape
    mid = p['fuse'].shape[0]
    F = p['fuse'][:, :, 0, 0]                                # (mid, 4*mid)

    def fold(k, w):
        return jnp.einsum('om,mikl->oikl', F[:, k * mid:(k + 1) * mid], w,
                          precision=jax.lax.Precision.HIGHEST)

    w1h, w1w = fold(0, p['conv_1_h']), fold(0, p['conv_1_w'])
    w3, w5, w7 = fold(1, p['conv_3']), fold(2, p['conv_5']), fold(3, p['conv_7'])

    x_1_h = _conv2d(_adaptive_avg_pool_axis(x, 1, 3), w1h, ((1, 1), (0, 0)))
    x_1_w = _conv2d(_adaptive_avg_pool_axis(x, 1, 2), w1w, ((0, 0), (1, 1)))
    pre = (jnp.broadcast_to(x_1_h, (N, mid, H, W))
           + jnp.broadcast_to(x_1_w, (N, mid, H, W)))

    def hk(k, wt):
        y = _conv2d(_adaptive_avg_pool_axis(x, k, 3), wt, ((1, 1), (1, 1)))
        return _nearest_resize(y, H, W)

    def wk(k, wt):
        y = _conv2d(_adaptive_avg_pool_axis(x, k, 2), wt, ((1, 1), (1, 1)))
        return _nearest_resize(y, H, W)

    return (pre + hk(3, w3) + wk(3, w3) + hk(5, w5) + wk(5, w5)
            + hk(7, w7) + wk(7, w7))


def init_params(key, inplanes, outplanes):
    mid = outplanes // 2
    ks = jax.random.split(key, 12)

    def w(k, shape, scale=0.2):
        return scale * jax.random.normal(k, shape, jnp.float32)

    return dict(
        conv_1_h=w(ks[0], (mid, inplanes, 3, 1)),
        conv_1_w=w(ks[1], (mid, inplanes, 1, 3)),
        conv_3=w(ks[2], (mid, inplanes, 3, 3)),
        conv_5=w(ks[3], (mid, inplanes, 3, 3)),
        conv_7=w(ks[4], (mid, inplanes, 3, 3)),
        fuse=w(ks[5], (mid, 4 * mid, 1, 1)),
        final_w=w(ks[6], (outplanes, mid, 1, 1)),
        final_b=w(ks[7], (outplanes,)),
        m1_w=w(ks[8], (outplanes, outplanes, 3, 3)),
        m1_b=w(ks[9], (outplanes,)),
        m2_w=w(ks[10], (outplanes, outplanes, 3, 3)),
        m2_b=w(ks[11], (outplanes,)),
    )


def ba_block_forward(x_nchw, p):
    """BA_Block forward; x_nchw: (N, C, H, W). Returns (hx, multi_scale_out)."""
    C = p['final_w'].shape[0]
    pre = _fused_branch_sum(x_nchw, p)                       # (N, mid, H, W)

    to_nhwc = lambda t: jnp.transpose(t, (0, 2, 3, 1))
    fin_w = p['final_w'][:, :, 0, 0].T                       # (mid, C), f32
    fin_b = p['final_b'].reshape(1, C)
    # (kh, kw, in, out) -> (dy, dx*C + in, out), shipped as bf16 (MXU native).
    m1_w3 = jnp.transpose(p['m1_w'], (2, 3, 1, 0)).reshape(3, 3 * C, C)
    m2_w3 = jnp.transpose(p['m2_w'], (2, 3, 1, 0)).reshape(3, 3 * C, C)
    m1_b = p['m1_b'].reshape(1, C)
    m2_b = p['m2_b'].reshape(1, C)

    hx, ms = _ba_pallas_stage(
        to_nhwc(pre), to_nhwc(x_nchw),
        fin_w, fin_b,
        m1_w3.astype(jnp.bfloat16), m1_b,
        m2_w3.astype(jnp.bfloat16), m2_b)
    from_nhwc = lambda t: jnp.transpose(t, (0, 3, 1, 2))
    return from_nhwc(hx), from_nhwc(ms)


# Pure-JAX reference (mirrors the PyTorch module) for the self-check.
def ba_block_reference(x, p):
    N, _, H, W = x.shape
    x_1_h = _conv2d(_adaptive_avg_pool_axis(x, 1, 3), p['conv_1_h'],
                    ((1, 1), (0, 0)))
    x_1_h = jnp.broadcast_to(x_1_h, (N, x_1_h.shape[1], H, W))
    x_1_w = _conv2d(_adaptive_avg_pool_axis(x, 1, 2), p['conv_1_w'],
                    ((0, 0), (1, 1)))
    x_1_w = jnp.broadcast_to(x_1_w, (N, x_1_w.shape[1], H, W))

    def hk(k, wt):
        y = _conv2d(_adaptive_avg_pool_axis(x, k, 3), wt, ((1, 1), (1, 1)))
        return _nearest_resize(y, H, W)

    def wk(k, wt):
        y = _conv2d(_adaptive_avg_pool_axis(x, k, 2), wt, ((1, 1), (1, 1)))
        return _nearest_resize(y, H, W)

    x_3_h, x_3_w = hk(3, p['conv_3']), wk(3, p['conv_3'])
    x_5_h, x_5_w = hk(5, p['conv_5']), wk(5, p['conv_5'])
    x_7_h, x_7_w = hk(7, p['conv_7']), wk(7, p['conv_7'])
    cat = jnp.concatenate([x_1_h + x_1_w, x_3_h + x_3_w,
                           x_5_h + x_5_w, x_7_h + x_7_w], axis=1)
    hx = jax.nn.relu(_conv2d(cat, p['fuse'], ((0, 0), (0, 0))))
    mask1 = jax.nn.sigmoid(_conv2d(hx, p['final_w'], ((0, 0), (0, 0)))
                           + p['final_b'][None, :, None, None])
    out1 = x * mask1
    h2 = jax.nn.relu(_conv2d(out1, p['m1_w'], ((1, 1), (1, 1)))
                     + p['m1_b'][None, :, None, None])
    mask2 = jax.nn.sigmoid(_conv2d(h2, p['m2_w'], ((1, 1), (1, 1)))
                           + p['m2_b'][None, :, None, None])
    return out1 * mask2, hx


if __name__ == "__main__":
    key = jax.random.PRNGKey(0)
    kx, kp, kx2 = jax.random.split(key, 3)

    # x * mask_1 in the module requires inplanes == outplanes.
    N, C, H, W = 2, 8, 16, 16
    x = jax.random.normal(kx, (N, C, H, W), jnp.float32)
    params = init_params(kp, C, C)

    fwd = jax.jit(ba_block_forward)
    hx, ms = fwd(x, params)
    jax.block_until_ready((hx, ms))
    assert hx.shape == (N, C, H, W) and ms.shape == (N, C // 2, H, W)

    # bf16 MXU inputs on the 3x3 convs + approximate-reciprocal sigmoid
    # (per review) -> compare hx at 1e-2; ms is a pure f32 path -> 5e-3.
    hx_ref, ms_ref = ba_block_reference(x, params)
    np.testing.assert_allclose(np.asarray(hx), np.asarray(hx_ref),
                               rtol=1e-2, atol=1e-2)
    np.testing.assert_allclose(np.asarray(ms), np.asarray(ms_ref),
                               rtol=5e-3, atol=5e-3)

    # Taller input: exercises the multi-H-tile / halo-window path.
    x2 = jax.random.normal(kx2, (1, C, 64, 16), jnp.float32)
    hx2, ms2 = fwd(x2, params)
    jax.block_until_ready((hx2, ms2))
    hx2_ref, ms2_ref = ba_block_reference(x2, params)
    np.testing.assert_allclose(np.asarray(hx2), np.asarray(hx2_ref),
                               rtol=1e-2, atol=1e-2)
    np.testing.assert_allclose(np.asarray(ms2), np.asarray(ms2_ref),
                               rtol=5e-3, atol=5e-3)

    print("KERNEL_OK")
</pallas_src>

<mosaic_0001>
module attributes {stable_mosaic.version = 11 : i64} {
  func.func @_ba_kernel(%arg0: i32, %arg1: i32, %arg2: memref<1x1x20x16x4xf32, #tpu.memory_space<vmem>>, %arg3: memref<1x1x20x16x8xf32, #tpu.memory_space<vmem>>, %arg4: memref<4x8xf32, #tpu.memory_space<vmem>>, %arg5: memref<1x8xf32, #tpu.memory_space<vmem>>, %arg6: memref<3x24x8xbf16, #tpu.memory_space<vmem>>, %arg7: memref<1x8xf32, #tpu.memory_space<vmem>>, %arg8: memref<3x24x8xbf16, #tpu.memory_space<vmem>>, %arg9: memref<1x8xf32, #tpu.memory_space<vmem>>, %arg10: memref<1x16x16x8xf32, #tpu.memory_space<vmem>>, %arg11: memref<1x16x16x4xf32, #tpu.memory_space<vmem>>, %arg12: memref<20x18x8xf32, #tpu.memory_space<vmem>>) attributes {dimension_semantics = [#tpu.dimension_semantics<parallel>, #tpu.dimension_semantics<parallel>], iteration_bounds = array<i64: 2, 1>, scalar_prefetch = 0 : i64, scratch_operands = 1 : i64, tpu.core_type = #tpu.core_type<tc>, window_params = [{transform_indices = @transform_0, window_bounds = array<i64: 1, 1, 20, 16, 4>}, {transform_indices = @transform_1, window_bounds = array<i64: 1, 1, 20, 16, 8>}, {pipeline_mode = #tpu.pipeline_mode<synchronous>, transform_indices = @transform_2, window_bounds = array<i64: 4, 8>}, {pipeline_mode = #tpu.pipeline_mode<synchronous>, transform_indices = @transform_3, window_bounds = array<i64: 1, 8>}, {pipeline_mode = #tpu.pipeline_mode<synchronous>, transform_indices = @transform_4, window_bounds = array<i64: 3, 24, 8>}, {pipeline_mode = #tpu.pipeline_mode<synchronous>, transform_indices = @transform_5, window_bounds = array<i64: 1, 8>}, {pipeline_mode = #tpu.pipeline_mode<synchronous>, transform_indices = @transform_6, window_bounds = array<i64: 3, 24, 8>}, {pipeline_mode = #tpu.pipeline_mode<synchronous>, transform_indices = @transform_7, window_bounds = array<i64: 1, 8>}, {transform_indices = @transform_8, window_bounds = array<i64: 1, 16, 16, 8>}, {transform_indices = @transform_9, window_bounds = array<i64: 1, 16, 16, 4>}]} {
    %c0 = arith.constant 0 : index
    %c0_0 = arith.constant 0 : index
    %c0_1 = arith.constant 0 : index
    %c0_2 = arith.constant 0 : index
    %c0_3 = arith.constant 0 : index
    %0 = vector.load %arg2[%c0, %c0_0, %c0_1, %c0_2, %c0_3] : memref<1x1x20x16x4xf32, #tpu.memory_space<vmem>>, vector<1x1x20x16x4xf32>
    %1 = vector.shape_cast %0 : vector<1x1x20x16x4xf32> to vector<20x16x4xf32>
    %2 = vector.shape_cast %1 : vector<20x16x4xf32> to vector<320x4xf32>
    %cst = arith.constant 0.000000e+00 : f32
    %3 = vector.broadcast %cst : f32 to vector<320x4xf32>
    %4 = arith.maximumf %2, %3 : vector<320x4xf32>
    %c0_4 = arith.constant 0 : index
    %c0_5 = arith.constant 0 : index
    %5 = vector.load %arg4[%c0_4, %c0_5] : memref<4x8xf32, #tpu.memory_space<vmem>>, vector<4x8xf32>
    %cst_6 = arith.constant dense<0.000000e+00> : vector<320x8xf32>
    %6 = tpu.matmul %4, %5, %cst_6 {dimension_numbers = #tpu.dot_dimension_numbers<[1], [0], [0], [1], [0, 0, 1, 1], [], []>} : vector<320x4xf32>, vector<4x8xf32>, vector<320x8xf32> -> vector<320x8xf32>
    %c0_7 = arith.constant 0 : index
    %c0_8 = arith.constant 0 : index
    %7 = vector.load %arg5[%c0_7, %c0_8] : memref<1x8xf32, #tpu.memory_space<vmem>>, vector<1x8xf32>
    %8 = vector.broadcast %7 : vector<1x8xf32> to vector<320x8xf32>
    %9 = arith.addf %6, %8 : vector<320x8xf32>
    %cst_9 = arith.constant 0.000000e+00 : f32
    %10 = vector.broadcast %cst_9 : f32 to vector<320x8xf32>
    %11 = arith.subf %10, %9 : vector<320x8xf32>
    %12 = math.exp %11 : vector<320x8xf32>
    %cst_10 = arith.constant 1.000000e+00 : f32
    %13 = vector.broadcast %cst_10 : f32 to vector<320x8xf32>
    %14 = arith.addf %13, %12 : vector<320x8xf32>
    %15 = tpu.reciprocal %14 {approx = true} : vector<320x8xf32> -> vector<320x8xf32>
    %c0_11 = arith.constant 0 : index
    %c0_12 = arith.constant 0 : index
    %c0_13 = arith.constant 0 : index
    %c0_14 = arith.constant 0 : index
    %c0_15 = arith.constant 0 : index
    %16 = vector.load %arg3[%c0_11, %c0_12, %c0_13, %c0_14, %c0_15] : memref<1x1x20x16x8xf32, #tpu.memory_space<vmem>>, vector<1x1x20x16x8xf32>
    %17 = vector.shape_cast %16 : vector<1x1x20x16x8xf32> to vector<20x16x8xf32>
    %18 = vector.shape_cast %17 : vector<20x16x8xf32> to vector<320x8xf32>
    %19 = arith.mulf %18, %15 : vector<320x8xf32>
    %20 = vector.shape_cast %19 : vector<320x8xf32> to vector<20x16x8xf32>
    %21 = vector.shape_cast %4 : vector<320x4xf32> to vector<20x16x4xf32>
    %22 = vector.extract_strided_slice %21 {offsets = [2, 0, 0], sizes = [16, 16, 4], strides = [1, 1, 1]} : vector<20x16x4xf32> to vector<16x16x4xf32>
    %c0_16 = arith.constant 0 : index
    %c0_17 = arith.constant 0 : index
    %c0_18 = arith.constant 0 : index
    %c0_19 = arith.constant 0 : index
    %23 = vector.load %arg11[%c0_16, %c0_17, %c0_18, %c0_19] : memref<1x16x16x4xf32, #tpu.memory_space<vmem>>, vector<1x16x16x4xf32>
    %24 = vector.shape_cast %23 : vector<1x16x16x4xf32> to vector<16x16x4xf32>
    %25 = vector.shape_cast %22 : vector<16x16x4xf32> to vector<1x16x16x4xf32>
    tpu.vector_store %arg11[%c0_16, %c0_17, %c0_18, %c0_19], %25 {strides = array<i32>} : memref<1x16x16x4xf32, #tpu.memory_space<vmem>>, vector<1x16x16x4xf32>,
    %cst_20 = arith.constant 0.000000e+00 : f32
    %26 = vector.broadcast %cst_20 : f32 to vector<20x1x8xf32>
    %c0_21 = arith.constant 0 : index
    %c0_22 = arith.constant 0 : index
    %c0_23 = arith.constant 0 : index
    %27 = vector.load %arg12[%c0_21, %c0_22, %c0_23] : memref<20x18x8xf32, #tpu.memory_space<vmem>>, vector<20x1x8xf32>
    tpu.vector_store %arg12[%c0_21, %c0_22, %c0_23], %26 {strides = array<i32>} : memref<20x18x8xf32, #tpu.memory_space<vmem>>, vector<20x1x8xf32>,
    %cst_24 = arith.constant 0.000000e+00 : f32
    %28 = vector.broadcast %cst_24 : f32 to vector<20x1x8xf32>
    %c0_25 = arith.constant 0 : index
    %c17 = arith.constant 17 : index
    %c0_26 = arith.constant 0 : index
    %29 = vector.load %arg12[%c0_25, %c17, %c0_26] : memref<20x18x8xf32, #tpu.memory_space<vmem>>, vector<20x1x8xf32>
    tpu.vector_store %arg12[%c0_25, %c17, %c0_26], %28 {strides = array<i32>} : memref<20x18x8xf32, #tpu.memory_space<vmem>>, vector<20x1x8xf32>,
    %c0_27 = arith.constant 0 : index
    %c1 = arith.constant 1 : index
    %c0_28 = arith.constant 0 : index
    %30 = vector.load %arg12[%c0_27, %c1, %c0_28] : memref<20x18x8xf32, #tpu.memory_space<vmem>>, vector<20x16x8xf32>
    tpu.vector_store %arg12[%c0_27, %c1, %c0_28], %20 {strides = array<i32>} : memref<20x18x8xf32, #tpu.memory_space<vmem>>, vector<20x16x8xf32>,
    %c0_29 = arith.constant 0 : index
    %c0_30 = arith.constant 0 : index
    %c0_31 = arith.constant 0 : index
    %31 = vector.load %arg12[%c0_29, %c0_30, %c0_31] : memref<20x18x8xf32, #tpu.memory_space<vmem>>, vector<20x18x8xf32>
    %32 = arith.truncf %31 : vector<20x18x8xf32> to vector<20x18x8xbf16>
    %33 = vector.extract_strided_slice %32 {offsets = [0, 0, 0], sizes = [20, 16, 8], strides = [1, 1, 1]} : vector<20x18x8xbf16> to vector<20x16x8xbf16>
    %34 = vector.extract_strided_slice %32 {offsets = [0, 1, 0], sizes = [20, 16, 8], strides = [1, 1, 1]} : vector<20x18x8xbf16> to vector<20x16x8xbf16>
    %35 = vector.extract_strided_slice %32 {offsets = [0, 2, 0], sizes = [20, 16, 8], strides = [1, 1, 1]} : vector<20x18x8xbf16> to vector<20x16x8xbf16>
    %36 = tpu.concatenate %33, %34, %35 in 2 : vector<20x16x8xbf16>, vector<20x16x8xbf16>, vector<20x16x8xbf16> -> vector<20x16x24xbf16>
    %c0_32 = arith.constant 0 : index
    %c0_33 = arith.constant 0 : index
    %37 = vector.load %arg7[%c0_32, %c0_33] : memref<1x8xf32, #tpu.memory_space<vmem>>, vector<1x8xf32>
    %38 = vector.extract_strided_slice %36 {offsets = [0, 0, 0], sizes = [18, 16, 24], strides = [1, 1, 1]} : vector<20x16x24xbf16> to vector<18x16x24xbf16>
    %39 = vector.shape_cast %38 : vector<18x16x24xbf16> to vector<288x24xbf16>
    %c0_34 = arith.constant 0 : index
    %c0_35 = arith.constant 0 : index
    %c0_36 = arith.constant 0 : index
    %40 = vector.load %arg6[%c0_34, %c0_35, %c0_36] : memref<3x24x8xbf16, #tpu.memory_space<vmem>>, vector<1x24x8xbf16>
    %41 = vector.shape_cast %40 : vector<1x24x8xbf16> to vector<24x8xbf16>
    %cst_37 = arith.constant dense<0.000000e+00> : vector<288x8xf32>
    %42 = tpu.matmul %39, %41, %cst_37 {dimension_numbers = #tpu.dot_dimension_numbers<[1], [0], [0], [1], [0, 0, 1, 1], [], []>} : vector<288x24xbf16>, vector<24x8xbf16>, vector<288x8xf32> -> vector<288x8xf32>
    %43 = vector.broadcast %37 : vector<1x8xf32> to vector<288x8xf32>
    %44 = arith.addf %43, %42 : vector<288x8xf32>
    %45 = vector.extract_strided_slice %36 {offsets = [1, 0, 0], sizes = [18, 16, 24], strides = [1, 1, 1]} : vector<20x16x24xbf16> to vector<18x16x24xbf16>
    %46 = vector.shape_cast %45 : vector<18x16x24xbf16> to vector<288x24xbf16>
    %c1_38 = arith.constant 1 : index
    %c0_39 = arith.constant 0 : index
    %c0_40 = arith.constant 0 : index
    %47 = vector.load %arg6[%c1_38, %c0_39, %c0_40] : memref<3x24x8xbf16, #tpu.memory_space<vmem>>, vector<1x24x8xbf16>
    %48 = vector.shape_cast %47 : vector<1x24x8xbf16> to vector<24x8xbf16>
    %cst_41 = arith.constant dense<0.000000e+00> : vector<288x8xf32>
    %49 = tpu.matmul %46, %48, %cst_41 {dimension_numbers = #tpu.dot_dimension_numbers<[1], [0], [0], [1], [0, 0, 1, 1], [], []>} : vector<288x24xbf16>, vector<24x8xbf16>, vector<288x8xf32> -> vector<288x8xf32>
    %50 = arith.addf %44, %49 : vector<288x8xf32>
    %51 = vector.extract_strided_slice %36 {offsets = [2, 0, 0], sizes = [18, 16, 24], strides = [1, 1, 1]} : vector<20x16x24xbf16> to vector<18x16x24xbf16>
    %52 = vector.shape_cast %51 : vector<18x16x24xbf16> to vector<288x24xbf16>
    %c2 = arith.constant 2 : index
    %c0_42 = arith.constant 0 : index
    %c0_43 = arith.constant 0 : index
    %53 = vector.load %arg6[%c2, %c0_42, %c0_43] : memref<3x24x8xbf16, #tpu.memory_space<vmem>>, vector<1x24x8xbf16>
    %54 = vector.shape_cast %53 : vector<1x24x8xbf16> to vector<24x8xbf16>
    %cst_44 = arith.constant dense<0.000000e+00> : vector<288x8xf32>
    %55 = tpu.matmul %52, %54, %cst_44 {dimension_numbers = #tpu.dot_dimension_numbers<[1], [0], [0], [1], [0, 0, 1, 1], [], []>} : vector<288x24xbf16>, vector<24x8xbf16>, vector<288x8xf32> -> vector<288x8xf32>
    %56 = arith.addf %50, %55 : vector<288x8xf32>
    %cst_45 = arith.constant 0.000000e+00 : f32
    %57 = vector.broadcast %cst_45 : f32 to vector<288x8xf32>
    %58 = arith.maximumf %56, %57 : vector<288x8xf32>
    %59 = vector.shape_cast %58 : vector<288x8xf32> to vector<18x16x8xf32>
    %c0_46 = arith.constant 0 : index
    %c1_47 = arith.constant 1 : index
    %c0_48 = arith.constant 0 : index
    %60 = vector.load %arg12[%c0_46, %c1_47, %c0_48] : memref<20x18x8xf32, #tpu.memory_space<vmem>>, vector<18x16x8xf32>
    tpu.vector_store %arg12[%c0_46, %c1_47, %c0_48], %59 {strides = array<i32>} : memref<20x18x8xf32, #tpu.memory_space<vmem>>, vector<18x16x8xf32>,
    %c0_i32 = arith.constant 0 : i32
    %61 = arith.cmpi eq, %arg1, %c0_i32 : i32
    %62 = arith.extui %61 : i1 to i32
    %c0_i32_49 = arith.constant 0 : i32
    %63 = arith.cmpi ne, %62, %c0_i32_49 : i32
    scf.if %63 {
      %cst_75 = arith.constant 0.000000e+00 : f32
      %106 = vector.broadcast %cst_75 : f32 to vector<1x16x8xf32>
      %c0_76 = arith.constant 0 : index
      %c1_77 = arith.constant 1 : index
      %c0_78 = arith.constant 0 : index
      %107 = vector.load %arg12[%c0_76, %c1_77, %c0_78] : memref<20x18x8xf32, #tpu.memory_space<vmem>>, vector<1x16x8xf32>
      tpu.vector_store %arg12[%c0_76, %c1_77, %c0_78], %106 {strides = array<i32>} : memref<20x18x8xf32, #tpu.memory_space<vmem>>, vector<1x16x8xf32>,
    } else {
    }
    %c0_i32_50 = arith.constant 0 : i32
    %64 = arith.cmpi eq, %arg1, %c0_i32_50 : i32
    %65 = arith.extui %64 : i1 to i32
    %c0_i32_51 = arith.constant 0 : i32
    %66 = arith.cmpi ne, %65, %c0_i32_51 : i32
    scf.if %66 {
      %cst_75 = arith.constant 0.000000e+00 : f32
      %106 = vector.broadcast %cst_75 : f32 to vector<1x16x8xf32>
      %c17_76 = arith.constant 17 : index
      %c1_77 = arith.constant 1 : index
      %c0_78 = arith.constant 0 : index
      %107 = vector.load %arg12[%c17_76, %c1_77, %c0_78] : memref<20x18x8xf32, #tpu.memory_space<vmem>>, vector<1x16x8xf32>
      tpu.vector_store %arg12[%c17_76, %c1_77, %c0_78], %106 {strides = array<i32>} : memref<20x18x8xf32, #tpu.memory_space<vmem>>, vector<1x16x8xf32>,
    } else {
    }
    %c0_52 = arith.constant 0 : index
    %c0_53 = arith.constant 0 : index
    %c0_54 = arith.constant 0 : index
    %67 = vector.load %arg12[%c0_52, %c0_53, %c0_54] : memref<20x18x8xf32, #tpu.memory_space<vmem>>, vector<18x18x8xf32>
    %68 = arith.truncf %67 : vector<18x18x8xf32> to vector<18x18x8xbf16>
    %69 = vector.extract_strided_slice %68 {offsets = [0, 0, 0], sizes = [18, 16, 8], strides = [1, 1, 1]} : vector<18x18x8xbf16> to vector<18x16x8xbf16>
    %70 = vector.extract_strided_slice %68 {offsets = [0, 1, 0], sizes = [18, 16, 8], strides = [1, 1, 1]} : vector<18x18x8xbf16> to vector<18x16x8xbf16>
    %71 = vector.extract_strided_slice %68 {offsets = [0, 2, 0], sizes = [18, 16, 8], strides = [1, 1, 1]} : vector<18x18x8xbf16> to vector<18x16x8xbf16>
    %72 = tpu.concatenate %69, %70, %71 in 2 : vector<18x16x8xbf16>, vector<18x16x8xbf16>, vector<18x16x8xbf16> -> vector<18x16x24xbf16>
    %c0_55 = arith.constant 0 : index
    %c0_56 = arith.constant 0 : index
    %73 = vector.load %arg9[%c0_55, %c0_56] : memref<1x8xf32, #tpu.memory_space<vmem>>, vector<1x8xf32>
    %74 = vector.extract_strided_slice %72 {offsets = [0, 0, 0], sizes = [16, 16, 24], strides = [1, 1, 1]} : vector<18x16x24xbf16> to vector<16x16x24xbf16>
    %75 = vector.shape_cast %74 : vector<16x16x24xbf16> to vector<256x24xbf16>
    %c0_57 = arith.constant 0 : index
    %c0_58 = arith.constant 0 : index
    %c0_59 = arith.constant 0 : index
    %76 = vector.load %arg8[%c0_57, %c0_58, %c0_59] : memref<3x24x8xbf16, #tpu.memory_space<vmem>>, vector<1x24x8xbf16>
    %77 = vector.shape_cast %76 : vector<1x24x8xbf16> to vector<24x8xbf16>
    %cst_60 = arith.constant dense<0.000000e+00> : vector<256x8xf32>
    %78 = tpu.matmul %75, %77, %cst_60 {dimension_numbers = #tpu.dot_dimension_numbers<[1], [0], [0], [1], [0, 0, 1, 1], [], []>} : vector<256x24xbf16>, vector<24x8xbf16>, vector<256x8xf32> -> vector<256x8xf32>
    %79 = vector.broadcast %73 : vector<1x8xf32> to vector<256x8xf32>
    %80 = arith.addf %79, %78 : vector<256x8xf32>
    %81 = vector.extract_strided_slice %72 {offsets = [1, 0, 0], sizes = [16, 16, 24], strides = [1, 1, 1]} : vector<18x16x24xbf16> to vector<16x16x24xbf16>
    %82 = vector.shape_cast %81 : vector<16x16x24xbf16> to vector<256x24xbf16>
    %c1_61 = arith.constant 1 : index
    %c0_62 = arith.constant 0 : index
    %c0_63 = arith.constant 0 : index
    %83 = vector.load %arg8[%c1_61, %c0_62, %c0_63] : memref<3x24x8xbf16, #tpu.memory_space<vmem>>, vector<1x24x8xbf16>
    %84 = vector.shape_cast %83 : vector<1x24x8xbf16> to vector<24x8xbf16>
    %cst_64 = arith.constant dense<0.000000e+00> : vector<256x8xf32>
    %85 = tpu.matmul %82, %84, %cst_64 {dimension_numbers = #tpu.dot_dimension_numbers<[1], [0], [0], [1], [0, 0, 1, 1], [], []>} : vector<256x24xbf16>, vector<24x8xbf16>, vector<256x8xf32> -> vector<256x8xf32>
    %86 = arith.addf %80, %85 : vector<256x8xf32>
    %87 = vector.extract_strided_slice %72 {offsets = [2, 0, 0], sizes = [16, 16, 24], strides = [1, 1, 1]} : vector<18x16x24xbf16> to vector<16x16x24xbf16>
    %88 = vector.shape_cast %87 : vector<16x16x24xbf16> to vector<256x24xbf16>
    %c2_65 = arith.constant 2 : index
    %c0_66 = arith.constant 0 : index
    %c0_67 = arith.constant 0 : index
    %89 = vector.load %arg8[%c2_65, %c0_66, %c0_67] : memref<3x24x8xbf16, #tpu.memory_space<vmem>>, vector<1x24x8xbf16>
    %90 = vector.shape_cast %89 : vector<1x24x8xbf16> to vector<24x8xbf16>
    %cst_68 = arith.constant dense<0.000000e+00> : vector<256x8xf32>
    %91 = tpu.matmul %88, %90, %cst_68 {dimension_numbers = #tpu.dot_dimension_numbers<[1], [0], [0], [1], [0, 0, 1, 1], [], []>} : vector<256x24xbf16>, vector<24x8xbf16>, vector<256x8xf32> -> vector<256x8xf32>
    %92 = arith.addf %86, %91 : vector<256x8xf32>
    %cst_69 = arith.constant 0.000000e+00 : f32
    %93 = vector.broadcast %cst_69 : f32 to vector<256x8xf32>
    %94 = arith.subf %93, %92 : vector<256x8xf32>
    %95 = math.exp %94 : vector<256x8xf32>
    %cst_70 = arith.constant 1.000000e+00 : f32
    %96 = vector.broadcast %cst_70 : f32 to vector<256x8xf32>
    %97 = arith.addf %96, %95 : vector<256x8xf32>
    %98 = tpu.reciprocal %97 {approx = true} : vector<256x8xf32> -> vector<256x8xf32>
    %99 = vector.extract_strided_slice %20 {offsets = [2, 0, 0], sizes = [16, 16, 8], strides = [1, 1, 1]} : vector<20x16x8xf32> to vector<16x16x8xf32>
    %100 = vector.shape_cast %99 : vector<16x16x8xf32> to vector<256x8xf32>
    %101 = arith.mulf %100, %98 : vector<256x8xf32>
    %102 = vector.shape_cast %101 : vector<256x8xf32> to vector<16x16x8xf32>
    %c0_71 = arith.constant 0 : index
    %c0_72 = arith.constant 0 : index
    %c0_73 = arith.constant 0 : index
    %c0_74 = arith.constant 0 : index
    %103 = vector.load %arg10[%c0_71, %c0_72, %c0_73, %c0_74] : memref<1x16x16x8xf32, #tpu.memory_space<vmem>>, vector<1x16x16x8xf32>
    %104 = vector.shape_cast %103 : vector<1x16x16x8xf32> to vector<16x16x8xf32>
    %105 = vector.shape_cast %102 : vector<16x16x8xf32> to vector<1x16x16x8xf32>
    tpu.vector_store %arg10[%c0_71, %c0_72, %c0_73, %c0_74], %105 {strides = array<i32>} : memref<1x16x16x8xf32, #tpu.memory_space<vmem>>, vector<1x16x16x8xf32>,
    return
  }
  func.func @transform_0(%arg0: i32, %arg1: i32) -> (i32, i32, i32, i32, i32) {
    %c0_i32 = arith.constant 0 : i32
    %c0_i32_0 = arith.constant 0 : i32
    %c0_i32_1 = arith.constant 0 : i32
    %c0_i32_2 = arith.constant 0 : i32
    return %arg0, %arg1, %c0_i32, %c0_i32_0, %c0_i32_1 : i32, i32, i32, i32, i32
  }
  func.func @transform_1(%arg0: i32, %arg1: i32) -> (i32, i32, i32, i32, i32) {
    %c0_i32 = arith.constant 0 : i32
    %c0_i32_0 = arith.constant 0 : i32
    %c0_i32_1 = arith.constant 0 : i32
    %c0_i32_2 = arith.constant 0 : i32
    return %arg0, %arg1, %c0_i32, %c0_i32_0, %c0_i32_1 : i32, i32, i32, i32, i32
  }
  func.func @transform_2(%arg0: i32, %arg1: i32) -> (i32, i32) {
    %c0_i32 = arith.constant 0 : i32
    %c0_i32_0 = arith.constant 0 : i32
    %c0_i32_1 = arith.constant 0 : i32
    return %c0_i32, %c0_i32_0 : i32, i32
  }
  func.func @transform_3(%arg0: i32, %arg1: i32) -> (i32, i32) {
    %c0_i32 = arith.constant 0 : i32
    %c0_i32_0 = arith.constant 0 : i32
    %c0_i32_1 = arith.constant 0 : i32
    return %c0_i32, %c0_i32_0 : i32, i32
  }
  func.func @transform_4(%arg0: i32, %arg1: i32) -> (i32, i32, i32) {
    %c0_i32 = arith.constant 0 : i32
    %c0_i32_0 = arith.constant 0 : i32
    %c0_i32_1 = arith.constant 0 : i32
    %c0_i32_2 = arith.constant 0 : i32
    return %c0_i32, %c0_i32_0, %c0_i32_1 : i32, i32, i32
  }
  func.func @transform_5(%arg0: i32, %arg1: i32) -> (i32, i32) {
    %c0_i32 = arith.constant 0 : i32
    %c0_i32_0 = arith.constant 0 : i32
    %c0_i32_1 = arith.constant 0 : i32
    return %c0_i32, %c0_i32_0 : i32, i32
  }
  func.func @transform_6(%arg0: i32, %arg1: i32) -> (i32, i32, i32) {
    %c0_i32 = arith.constant 0 : i32
    %c0_i32_0 = arith.constant 0 : i32
    %c0_i32_1 = arith.constant 0 : i32
    %c0_i32_2 = arith.constant 0 : i32
    return %c0_i32, %c0_i32_0, %c0_i32_1 : i32, i32, i32
  }
  func.func @transform_7(%arg0: i32, %arg1: i32) -> (i32, i32) {
    %c0_i32 = arith.constant 0 : i32
    %c0_i32_0 = arith.constant 0 : i32
    %c0_i32_1 = arith.constant 0 : i32
    return %c0_i32, %c0_i32_0 : i32, i32
  }
  func.func @transform_8(%arg0: i32, %arg1: i32) -> (i32, i32, i32, i32) {
    %c0_i32 = arith.constant 0 : i32
    %c0_i32_0 = arith.constant 0 : i32
    %c0_i32_1 = arith.constant 0 : i32
    return %arg0, %arg1, %c0_i32, %c0_i32_0 : i32, i32, i32, i32
  }
  func.func @transform_9(%arg0: i32, %arg1: i32) -> (i32, i32, i32, i32) {
    %c0_i32 = arith.constant 0 : i32
    %c0_i32_0 = arith.constant 0 : i32
    %c0_i32_1 = arith.constant 0 : i32
    return %arg0, %arg1, %c0_i32, %c0_i32_0 : i32, i32, i32, i32
  }
}

</mosaic_0001>

<llo_original>
// kernel: ba_block_forward.1
$region0: #{ba_block_forward.1}
  #allocation0 [shape = 'u32[]', space=smem, size = 0x4, offset = 0x4, fixed_abs, tag = 'smem constant byte address 0x4 - core index']
  #allocation1 [shape = 'u32[144,128]{1,0:T(1,128)}', space=vmem, size = 0x12000, scoped, tag = 'internal scratch']
  #allocation2 [shape = 'f32[20,18,8]{2,1,0:T(8,128)}', space=vmem, size = 0x3c000, scoped, tag = 'scratch operand']
  %s0 = inlined_call_operand.vmem [shape: f32[2,1,20,16,4], index: 0, kind: input, shape index: {}]
  %s1 = inlined_call_operand.vmem [shape: f32[2,1,20,16,8], index: 1, kind: input, shape index: {}]
  %s2 = inlined_call_operand.vmem [shape: f32[4,8], index: 2, kind: input, shape index: {}]
  %s3 = inlined_call_operand.vmem [shape: f32[1,8], index: 3, kind: input, shape index: {}]
  %s4 = inlined_call_operand.vmem [shape: bf16[3,24,8], index: 4, kind: input, shape index: {}]
  %s5 = inlined_call_operand.vmem [shape: f32[1,8], index: 5, kind: input, shape index: {}]
  %s6 = inlined_call_operand.vmem [shape: bf16[3,24,8], index: 6, kind: input, shape index: {}]
  %s7 = inlined_call_operand.vmem [shape: f32[1,8], index: 7, kind: input, shape index: {}]
  %s8 = inlined_call_operand.vmem [shape: f32[2,16,16,8], index: 8, kind: output, shape index: {0}]
  %s9 = inlined_call_operand.vmem [shape: f32[2,16,16,4], index: 9, kind: output, shape index: {1}]
  %10 = xla_tuple %s8, %s9
  %s11 = sld [smem:[#allocation0]]
  $region77: #{ba_block_forward.1} parent=0
    _
  %s13 = ssub.s32 1, %s11
  %s14 = scalar_select 0, %s13, %s11
  loop: start=0, step=1, limit=4
  $region2: #{ba_block_forward.1} parent=0 // loop_pre_header
    _
  $region3: #{ba_block_forward.1} parent=0 // loop_header
    %s16 = sphi 0, %s20
    %p17 = scmp.ge.s32.totalorder %s16, 4
    %s23 = sphi 0, %s35
    %s24 = sphi 0, %s31
    %s25 = sphi 0, %s23
    %s26 = sphi 0, %s24
    %s27 = sphi 0, %s25
    %s28 = sphi 0, %s26
    %s40 = sphi 0, %s42
    %s43 = sphi 0, %s40
    %s44 = sphi 0, %s43
    %s60 = sphi 0, %s44
    %s68 = sphi 0, %s70
    %s71 = sphi 0, %s68
    %s72 = sphi 0, %s71
    %s88 = sphi 0, %s72
    %s92 = sphi 0, %s92
    %s94 = sphi 0, %s92
    %s95 = sphi 0, %s94
    %s109 = sphi 0, %s95
    %s113 = sphi 0, %s113
    %s115 = sphi 0, %s113
    %s116 = sphi 0, %s115
    %s130 = sphi 0, %s116
    %s134 = sphi 0, %s134
    %s136 = sphi 0, %s134
    %s137 = sphi 0, %s136
    %s151 = sphi 0, %s137
    %s155 = sphi 0, %s155
    %s157 = sphi 0, %s155
    %s158 = sphi 0, %s157
    %s172 = sphi 0, %s158
    %s176 = sphi 0, %s176
    %s178 = sphi 0, %s176
    %s179 = sphi 0, %s178
    %s193 = sphi 0, %s179
    %s197 = sphi 0, %s197
    %s199 = sphi 0, %s197
    %s200 = sphi 0, %s199
    %s214 = sphi 0, %s200
    %s222 = sphi 0, %s224
    %s225 = sphi 0, %s222
    %s226 = sphi 0, %s225
    %s242 = sphi 0, %s226
    %s250 = sphi 0, %s252
    %s253 = sphi 0, %s250
    %s254 = sphi 0, %s253
    %s270 = sphi 0, %s254
  $region4: #{ba_block_forward.1} parent=0 // loop_header_branch
    %19 = sbr.rel (%p17) target = $region8
  $region5: #{ba_block_forward.1} parent=0 // loop_body
    %s21 = ssub.s32 %s16, 1
    %s22 = ssub.s32 %s16, 2
    %s29 = sadd.s32 1, %s24
    %p30 = scmp.ge.s32.totalorder %s29, 1
    %s31 = scalar_select %p30, 0, %s29
    %s32 = sadd.s32 1, %s23
    %s33 = scalar_select %p30, %s32, %s23
    %p34 = scmp.ge.s32.totalorder %s33, 2
    %s35 = scalar_select %p34, 0, %s33
    %s36 = ssub.s32 %s23, %s35
    %s37 = ssub.s32 %s24, %s31
    %s38 = sor.u32 %s36, %s37
    %p39 = scmp.eq.s32.totalorder %s38, 0
    %s41 = sadd.s32 %s40, 1
    %s42 = scalar_select %p39, %s40, %s41
    %p45 = pneg %p39
    %p46 = scmp.eq.s32.totalorder %s16, 1
    %p47 = por %p45, %p46
    %p48 = scmp.ne.s32.totalorder %s40, %s43
    %p49 = scmp.eq.s32.totalorder %s16, 0
    %p50 = por %p48, %p49
    %p51 = scmp.ne.s32.totalorder %s40, %s43
    %p52 = scmp.eq.s32.totalorder %s21, 1
    %p53 = por %p51, %p52
    %p54 = scmp.ne.s32.totalorder %s43, %s44
    %p55 = scmp.eq.s32.totalorder %s21, 0
    %p56 = por %p54, %p55
    %p57 = scmp.ne.s32.totalorder %s43, %s44
    %p58 = scmp.eq.s32.totalorder %s22, 1
    %p59 = por %p57, %p58
    %p61 = scmp.ne.s32.totalorder %s44, %s60
    %p62 = scmp.eq.s32.totalorder %s22, 0
    %p63 = por %p61, %p62
    %s64 = ssub.s32 %s23, %s35
    %s65 = ssub.s32 %s24, %s31
    %s66 = sor.u32 %s64, %s65
    %p67 = scmp.eq.s32.totalorder %s66, 0
    %s69 = sadd.s32 %s68, 1
    %s70 = scalar_select %p67, %s68, %s69
    %p73 = pneg %p67
    %p74 = scmp.eq.s32.totalorder %s16, 1
    %p75 = por %p73, %p74
    %p76 = scmp.ne.s32.totalorder %s68, %s71
    %p77 = scmp.eq.s32.totalorder %s16, 0
    %p78 = por %p76, %p77
    %p79 = scmp.ne.s32.totalorder %s68, %s71
    %p80 = scmp.eq.s32.totalorder %s21, 1
    %p81 = por %p79, %p80
    %p82 = scmp.ne.s32.totalorder %s71, %s72
    %p83 = scmp.eq.s32.totalorder %s21, 0
    %p84 = por %p82, %p83
    %p85 = scmp.ne.s32.totalorder %s71, %s72
    %p86 = scmp.eq.s32.totalorder %s22, 1
    %p87 = por %p85, %p86
    %p89 = scmp.ne.s32.totalorder %s72, %s88
    %p90 = scmp.eq.s32.totalorder %s22, 0
    %p91 = por %p89, %p90
    %s93 = sadd.s32 %s92, 1
    %p96 = scmp.eq.s32.totalorder %s16, 1
    %p97 = scmp.ne.s32.totalorder %s92, %s94
    %p98 = scmp.eq.s32.totalorder %s16, 0
    %p99 = por %p97, %p98
    %p100 = scmp.ne.s32.totalorder %s92, %s94
    %p101 = scmp.eq.s32.totalorder %s21, 1
    %p102 = por %p100, %p101
    %p103 = scmp.ne.s32.totalorder %s94, %s95
    %p104 = scmp.eq.s32.totalorder %s21, 0
    %p105 = por %p103, %p104
    %p106 = scmp.ne.s32.totalorder %s94, %s95
    %p107 = scmp.eq.s32.totalorder %s22, 1
    %p108 = por %p106, %p107
    %p110 = scmp.ne.s32.totalorder %s95, %s109
    %p111 = scmp.eq.s32.totalorder %s22, 0
    %p112 = por %p110, %p111
    %s114 = sadd.s32 %s113, 1
    %p117 = scmp.eq.s32.totalorder %s16, 1
    %p118 = scmp.ne.s32.totalorder %s113, %s115
    %p119 = scmp.eq.s32.totalorder %s16, 0
    %p120 = por %p118, %p119
    %p121 = scmp.ne.s32.totalorder %s113, %s115
    %p122 = scmp.eq.s32.totalorder %s21, 1
    %p123 = por %p121, %p122
    %p124 = scmp.ne.s32.totalorder %s115, %s116
    %p125 = scmp.eq.s32.totalorder %s21, 0
    %p126 = por %p124, %p125
    %p127 = scmp.ne.s32.totalorder %s115, %s116
    %p128 = scmp.eq.s32.totalorder %s22, 1
    %p129 = por %p127, %p128
    %p131 = scmp.ne.s32.totalorder %s116, %s130
    %p132 = scmp.eq.s32.totalorder %s22, 0
    %p133 = por %p131, %p132
    %s135 = sadd.s32 %s134, 1
    %p138 = scmp.eq.s32.totalorder %s16, 1
    %p139 = scmp.ne.s32.totalorder %s134, %s136
    %p140 = scmp.eq.s32.totalorder %s16, 0
    %p141 = por %p139, %p140
    %p142 = scmp.ne.s32.totalorder %s134, %s136
    %p143 = scmp.eq.s32.totalorder %s21, 1
    %p144 = por %p142, %p143
    %p145 = scmp.ne.s32.totalorder %s136, %s137
    %p146 = scmp.eq.s32.totalorder %s21, 0
    %p147 = por %p145, %p146
    %p148 = scmp.ne.s32.totalorder %s136, %s137
    %p149 = scmp.eq.s32.totalorder %s22, 1
    %p150 = por %p148, %p149
    %p152 = scmp.ne.s32.totalorder %s137, %s151
    %p153 = scmp.eq.s32.totalorder %s22, 0
    %p154 = por %p152, %p153
    %s156 = sadd.s32 %s155, 1
    %p159 = scmp.eq.s32.totalorder %s16, 1
    %p160 = scmp.ne.s32.totalorder %s155, %s157
    %p161 = scmp.eq.s32.totalorder %s16, 0
    %p162 = por %p160, %p161
    %p163 = scmp.ne.s32.totalorder %s155, %s157
    %p164 = scmp.eq.s32.totalorder %s21, 1
    %p165 = por %p163, %p164
    %p166 = scmp.ne.s32.totalorder %s157, %s158
    %p167 = scmp.eq.s32.totalorder %s21, 0
    %p168 = por %p166, %p167
    %p169 = scmp.ne.s32.totalorder %s157, %s158
    %p170 = scmp.eq.s32.totalorder %s22, 1
    %p171 = por %p169, %p170
    %p173 = scmp.ne.s32.totalorder %s158, %s172
    %p174 = scmp.eq.s32.totalorder %s22, 0
    %p175 = por %p173, %p174
    %s177 = sadd.s32 %s176, 1
    %p180 = scmp.eq.s32.totalorder %s16, 1
    %p181 = scmp.ne.s32.totalorder %s176, %s178
    %p182 = scmp.eq.s32.totalorder %s16, 0
    %p183 = por %p181, %p182
    %p184 = scmp.ne.s32.totalorder %s176, %s178
    %p185 = scmp.eq.s32.totalorder %s21, 1
    %p186 = por %p184, %p185
    %p187 = scmp.ne.s32.totalorder %s178, %s179
    %p188 = scmp.eq.s32.totalorder %s21, 0
    %p189 = por %p187, %p188
    %p190 = scmp.ne.s32.totalorder %s178, %s179
    %p191 = scmp.eq.s32.totalorder %s22, 1
    %p192 = por %p190, %p191
    %p194 = scmp.ne.s32.totalorder %s179, %s193
    %p195 = scmp.eq.s32.totalorder %s22, 0
    %p196 = por %p194, %p195
    %s198 = sadd.s32 %s197, 1
    %p201 = scmp.eq.s32.totalorder %s16, 1
    %p202 = scmp.ne.s32.totalorder %s197, %s199
    %p203 = scmp.eq.s32.totalorder %s16, 0
    %p204 = por %p202, %p203
    %p205 = scmp.ne.s32.totalorder %s197, %s199
    %p206 = scmp.eq.s32.totalorder %s21, 1
    %p207 = por %p205, %p206
    %p208 = scmp.ne.s32.totalorder %s199, %s200
    %p209 = scmp.eq.s32.totalorder %s21, 0
    %p210 = por %p208, %p209
    %p211 = scmp.ne.s32.totalorder %s199, %s200
    %p212 = scmp.eq.s32.totalorder %s22, 1
    %p213 = por %p211, %p212
    %p215 = scmp.ne.s32.totalorder %s200, %s214
    %p216 = scmp.eq.s32.totalorder %s22, 0
    %p217 = por %p215, %p216
    %s218 = ssub.s32 %s23, %s35
    %s219 = ssub.s32 %s24, %s31
    %s220 = sor.u32 %s218, %s219
    %p221 = scmp.eq.s32.totalorder %s220, 0
    %s223 = sadd.s32 %s222, 1
    %s224 = scalar_select %p221, %s222, %s223
    %p227 = pneg %p221
    %p228 = scmp.eq.s32.totalorder %s16, 1
    %p229 = por %p227, %p228
    %p230 = scmp.ne.s32.totalorder %s222, %s225
    %p231 = scmp.eq.s32.totalorder %s16, 0
    %p232 = por %p230, %p231
    %p233 = scmp.ne.s32.totalorder %s222, %s225
    %p234 = scmp.eq.s32.totalorder %s21, 1
    %p235 = por %p233, %p234
    %p236 = scmp.ne.s32.totalorder %s225, %s226
    %p237 = scmp.eq.s32.totalorder %s21, 0
    %p238 = por %p236, %p237
    %p239 = scmp.ne.s32.totalorder %s225, %s226
    %p240 = scmp.eq.s32.totalorder %s22, 1
    %p241 = por %p239, %p240
    %p243 = scmp.ne.s32.totalorder %s226, %s242
    %p244 = scmp.eq.s32.totalorder %s22, 0
    %p245 = por %p243, %p244
    %s246 = ssub.s32 %s23, %s35
    %s247 = ssub.s32 %s24, %s31
    %s248 = sor.u32 %s246, %s247
    %p249 = scmp.eq.s32.totalorder %s248, 0
    %s251 = sadd.s32 %s250, 1
    %s252 = scalar_select %p249, %s250, %s251
    %p255 = pneg %p249
    %p256 = scmp.eq.s32.totalorder %s16, 1
    %p257 = por %p255, %p256
    %p258 = scmp.ne.s32.totalorder %s250, %s253
    %p259 = scmp.eq.s32.totalorder %s16, 0
    %p260 = por %p258, %p259
    %p261 = scmp.ne.s32.totalorder %s250, %s253
    %p262 = scmp.eq.s32.totalorder %s21, 1
    %p263 = por %p261, %p262
    %p264 = scmp.ne.s32.totalorder %s253, %s254
    %p265 = scmp.eq.s32.totalorder %s21, 0
    %p266 = por %p264, %p265
    %p267 = scmp.ne.s32.totalorder %s253, %s254
    %p268 = scmp.eq.s32.totalorder %s22, 1
    %p269 = por %p267, %p268
    %p271 = scmp.ne.s32.totalorder %s254, %s270
    %p272 = scmp.eq.s32.totalorder %s22, 0
    %p273 = por %p271, %p272
    %p274 = scmp.le.s32.totalorder 1, %s16
    %p275 = scmp.lt.s32.totalorder %s16, 3
    %p276 = pnand %p274, %p275
    %p277 = pneg %p276
    // Predicated region
    $region9: #{ba_block_forward.1} parent=5 // pred_check
      _
    $region10: #{ba_block_forward.1} parent=5 // pred_check_branch
      %279 = sbr.rel (%p276) target = $region12
    $region11: #{ba_block_forward.1} parent=5 // pred_region
      %s280 = ssub.s32 %s16, 1
      // Predicated region
      $region13: #{ba_block_forward.1} parent=11 // pred_check
        %p281 = pneg %p105
      $region14: #{ba_block_forward.1} parent=11 // pred_check_branch
        %283 = sbr.rel (%p281) target = $region16
      $region15: #{ba_block_forward.1} parent=11 // pred_region
        _
      $region16: #{ba_block_forward.1} parent=11 // pred_fallthru
        _
      // Predicated region
      $region17: #{ba_block_forward.1} parent=11 // pred_check
        %p284 = pneg %p126
      $region18: #{ba_block_forward.1} parent=11 // pred_check_branch
        %286 = sbr.rel (%p284) target = $region20
      $region19: #{ba_block_forward.1} parent=11 // pred_region
        _
      $region20: #{ba_block_forward.1} parent=11 // pred_fallthru
        _
      // Predicated region
      $region21: #{ba_block_forward.1} parent=11 // pred_check
        %p287 = pneg %p147
      $region22: #{ba_block_forward.1} parent=11 // pred_check_branch
        %289 = sbr.rel (%p287) target = $region24
      $region23: #{ba_block_forward.1} parent=11 // pred_region
        _
      $region24: #{ba_block_forward.1} parent=11 // pred_fallthru
        _
      // Predicated region
      $region25: #{ba_block_forward.1} parent=11 // pred_check
        %p290 = pneg %p168
      $region26: #{ba_block_forward.1} parent=11 // pred_check_branch
        %292 = sbr.rel (%p290) target = $region28
      $region27: #{ba_block_forward.1} parent=11 // pred_region
        _
      $region28: #{ba_block_forward.1} parent=11 // pred_fallthru
        _
      // Predicated region
      $region29: #{ba_block_forward.1} parent=11 // pred_check
        %p293 = pneg %p189
      $region30: #{ba_block_forward.1} parent=11 // pred_check_branch
        %295 = sbr.rel (%p293) target = $region32
      $region31: #{ba_block_forward.1} parent=11 // pred_region
        _
      $region32: #{ba_block_forward.1} parent=11 // pred_fallthru
        _
      // Predicated region
      $region33: #{ba_block_forward.1} parent=11 // pred_check
        %p296 = pneg %p210
      $region34: #{ba_block_forward.1} parent=11 // pred_check_branch
        %298 = sbr.rel (%p296) target = $region36
      $region35: #{ba_block_forward.1} parent=11 // pred_region
        _
      $region36: #{ba_block_forward.1} parent=11 // pred_fallthru
        _
    $region12: #{ba_block_forward.1} parent=5 // pred_fallthru
      _
    %p299 = scmp.lt.s32.totalorder %s16, 2
    // Predicated region
    $region37: #{ba_block_forward.1} parent=5 // pred_check
      %p300 = pneg %p299
    $region38: #{ba_block_forward.1} parent=5 // pred_check_branch
      %302 = sbr.rel (%p300) target = $region40
    $region39: #{ba_block_forward.1} parent=5 // pred_region
      // Predicated region
      $region41: #{ba_block_forward.1} parent=39 // pred_check
        %p303 = pneg %p50
      $region42: #{ba_block_forward.1} parent=39 // pred_check_branch
        %305 = sbr.rel (%p303) target = $region44
      $region43: #{ba_block_forward.1} parent=39 // pred_region
        %p306 = scmp.lt.s32.totalorder %s23, 1
        %s307 = scalar_select %p306, %s23, 1
        %p308 = scmp.lt.s32.totalorder %s24, 0
        %s309 = scalar_select %p308, %s24, 0
        %s310 = smul.addr %s309, 40
        %s311 = smul.addr %s307, 40
        %s312 = sadd.s32 %s310, %s311
        %s313 = smul.addr %s312, 8
        %s314 = scalar_lea.vmem %s0, %s313
      $region44: #{ba_block_forward.1} parent=39 // pred_fallthru
        _
      // Predicated region
      $region45: #{ba_block_forward.1} parent=39 // pred_check
        %p315 = pneg %p78
      $region46: #{ba_block_forward.1} parent=39 // pred_check_branch
        %317 = sbr.rel (%p315) target = $region48
      $region47: #{ba_block_forward.1} parent=39 // pred_region
        %p318 = scmp.lt.s32.totalorder %s23, 1
        %s319 = scalar_select %p318, %s23, 1
        %p320 = scmp.lt.s32.totalorder %s24, 0
        %s321 = scalar_select %p320, %s24, 0
        %s322 = smul.addr %s321, 40
        %s323 = smul.addr %s319, 40
        %s324 = sadd.s32 %s322, %s323
        %s325 = smul.addr %s324, 8
        %s326 = scalar_lea.vmem %s1, %s325
      $region48: #{ba_block_forward.1} parent=39 // pred_fallthru
        _
    $region40: #{ba_block_forward.1} parent=5 // pred_fallthru
      _
    %p327 = scmp.le.s32.totalorder 1, %s16
    %p328 = scmp.lt.s32.totalorder %s16, 3
    %p329 = pnand %p327, %p328
    %p330 = pneg %p329
    // Predicated region
    $region49: #{ba_block_forward.1} parent=5 // pred_check
      _
    $region50: #{ba_block_forward.1} parent=5 // pred_check_branch
      %332 = sbr.rel (%p329) target = $region52
    $region51: #{ba_block_forward.1} parent=5 // pred_region
      %s333 = ssub.s32 %s16, 1
      %p334 = scmp.lt.s32.totalorder %s25, 1
      %s335 = scalar_select %p334, %s25, 1
      %p336 = scmp.lt.s32.totalorder %s26, 0
      %s337 = scalar_select %p336, %s26, 0
      %s338 = smul.addr %s337, 40
      %s339 = smul.addr %s335, 40
      %s340 = sadd.s32 %s338, %s339
      %s341 = smul.addr %s340, 8
      %s342 = scalar_lea.vmem %s0, %s341
      %p343 = pneg %p56
      %p344 = pneg %p53
      %p345 = scmp.lt.s32.totalorder %s25, 1
      %s346 = scalar_select %p345, %s25, 1
      %p347 = scmp.lt.s32.totalorder %s26, 0
      %s348 = scalar_select %p347, %s26, 0
      %s349 = smul.addr %s348, 40
      %s350 = smul.addr %s346, 40
      %s351 = sadd.s32 %s349, %s350
      %s352 = smul.addr %s351, 8
      %s353 = scalar_lea.vmem %s1, %s352
      %p354 = pneg %p84
      %p355 = pneg %p81
      %p356 = pneg %p105
      %p357 = pneg %p102
      %p358 = pneg %p126
      %p359 = pneg %p123
      %p360 = pneg %p147
      %p361 = pneg %p144
      %p362 = pneg %p168
      %p363 = pneg %p165
      %p364 = pneg %p189
      %p365 = pneg %p186
      %p366 = pneg %p210
      %p367 = pneg %p207
      %p368 = pneg %p238
      %p369 = pneg %p235
      %s370 = smul.u32 16, %s26
      %p371 = scmp.lt.s32.totalorder %s25, 1
      %s372 = scalar_select %p371, %s25, 1
      %p373 = scmp.lt.s32.totalorder %s370, 15
      %s374 = scalar_select %p373, %s370, 15
      %s375 = smul.addr %s374, 2
      %s376 = smul.addr %s372, 32
      %s377 = sadd.s32 %s375, %s376
      %s378 = smul.addr %s377, 8
      %s379 = scalar_lea.vmem %s8, %s378
      %p380 = pneg %p266
      %p381 = pneg %p263
      %s382 = smul.u32 16, %s26
      %p383 = scmp.lt.s32.totalorder %s25, 1
      %s384 = scalar_select %p383, %s25, 1
      %p385 = scmp.lt.s32.totalorder %s382, 15
      %s386 = scalar_select %p385, %s382, 15
      %s387 = smul.addr %s386, 2
      %s388 = smul.addr %s384, 32
      %s389 = sadd.s32 %s387, %s388
      %s390 = smul.addr %s389, 8
      %s391 = scalar_lea.vmem %s9, %s390
      %p392 = scmp.lt.s32.totalorder %s25, 1
      %s393 = scalar_select %p392, %s25, 1
      %p394 = scmp.lt.s32.totalorder %s26, 0
      %s395 = scalar_select %p394, %s26, 0
      %s396 = smul.addr %s395, 40
      %s397 = smul.addr %s393, 40
      %s398 = sadd.s32 %s396, %s397
      %s399 = smul.addr %s398, 8
      %s400 = scalar_lea.vmem %s0, %s399
      %p401 = scmp.lt.s32.totalorder %s25, 1
      %s402 = scalar_select %p401, %s25, 1
      %p403 = scmp.lt.s32.totalorder %s26, 0
      %s404 = scalar_select %p403, %s26, 0
      %s405 = smul.addr %s404, 40
      %s406 = smul.addr %s402, 40
      %s407 = sadd.s32 %s405, %s406
      %s408 = smul.addr %s407, 8
      %s409 = scalar_lea.vmem %s1, %s408
      %s410 = smul.u32 16, %s26
      %p411 = scmp.lt.s32.totalorder %s25, 1
      %s412 = scalar_select %p411, %s25, 1
      %p413 = scmp.lt.s32.totalorder %s410, 15
      %s414 = scalar_select %p413, %s410, 15
      %s415 = smul.addr %s414, 2
      %s416 = smul.addr %s412, 32
      %s417 = sadd.s32 %s415, %s416
      %s418 = smul.addr %s417, 8
      %s419 = scalar_lea.vmem %s8, %s418
      %s420 = smul.u32 16, %s26
      %s421 = smul.u32 16, %s26
      %p422 = scmp.lt.s32.totalorder %s25, 1
      %s423 = scalar_select %p422, %s25, 1
      %p424 = scmp.lt.s32.totalorder %s421, 15
      %s425 = scalar_select %p424, %s421, 15
      %s426 = smul.addr %s425, 2
      %s427 = smul.addr %s423, 32
      %s428 = sadd.s32 %s426, %s427
      %s429 = smul.addr %s428, 8
      %s430 = scalar_lea.vmem %s9, %s429
      %s431 = smul.u32 16, %s26
      %v433 = vld [vmem:[%s400] sm:$0xff]
      %v434 = vld [vmem:[%s400 + $0x8] sm:$0xff]
      %v435 = vld [vmem:[%s400 + $0x10] sm:$0xff]
      %v436 = vld [vmem:[%s400 + $0x18] sm:$0xff]
      %v437 = vld [vmem:[%s400 + $0x20] sm:$0xff]
      %v438 = vld [vmem:[%s400 + $0x28] sm:$0xff]
      %v439 = vld [vmem:[%s400 + $0x30] sm:$0xff]
      %v440 = vld [vmem:[%s400 + $0x38] sm:$0xff]
      %v441 = vld [vmem:[%s400 + $0x40] sm:$0xff]
      %v442 = vld [vmem:[%s400 + $0x48] sm:$0xff]
      %v443 = vld [vmem:[%s400 + $0x50] sm:$0xff]
      %v444 = vld [vmem:[%s400 + $0x58] sm:$0xff]
      %v445 = vld [vmem:[%s400 + $0x60] sm:$0xff]
      %v446 = vld [vmem:[%s400 + $0x68] sm:$0xff]
      %v447 = vld [vmem:[%s400 + $0x70] sm:$0xff]
      %v448 = vld [vmem:[%s400 + $0x78] sm:$0xff]
      %v449 = vld [vmem:[%s400 + $0x80] sm:$0xff]
      %v450 = vld [vmem:[%s400 + $0x88] sm:$0xff]
      %v451 = vld [vmem:[%s400 + $0x90] sm:$0xff]
      %v452 = vld [vmem:[%s400 + $0x98] sm:$0xff]
      %v453 = vld [vmem:[%s400 + $0xa0] sm:$0xff]
      %v454 = vld [vmem:[%s400 + $0xa8] sm:$0xff]
      %v455 = vld [vmem:[%s400 + $0xb0] sm:$0xff]
      %v456 = vld [vmem:[%s400 + $0xb8] sm:$0xff]
      %v457 = vld [vmem:[%s400 + $0xc0] sm:$0xff]
      %v458 = vld [vmem:[%s400 + $0xc8] sm:$0xff]
      %v459 = vld [vmem:[%s400 + $0xd0] sm:$0xff]
      %v460 = vld [vmem:[%s400 + $0xd8] sm:$0xff]
      %v461 = vld [vmem:[%s400 + $0xe0] sm:$0xff]
      %v462 = vld [vmem:[%s400 + $0xe8] sm:$0xff]
      %v463 = vld [vmem:[%s400 + $0xf0] sm:$0xff]
      %v464 = vld [vmem:[%s400 + $0xf8] sm:$0xff]
      %v465 = vld [vmem:[%s400 + $0x100] sm:$0xff]
      %v466 = vld [vmem:[%s400 + $0x108] sm:$0xff]
      %v467 = vld [vmem:[%s400 + $0x110] sm:$0xff]
      %v468 = vld [vmem:[%s400 + $0x118] sm:$0xff]
      %v469 = vld [vmem:[%s400 + $0x120] sm:$0xff]
      %v470 = vld [vmem:[%s400 + $0x128] sm:$0xff]
      %v471 = vld [vmem:[%s400 + $0x130] sm:$0xff]
      %v472 = vld [vmem:[%s400 + $0x138] sm:$0xff]
      %v473 = vmax.f32 %v433, 0.0
      %v474 = vmax.f32 %v434, 0.0
      %v475 = vmax.f32 %v435, 0.0
      %v476 = vmax.f32 %v436, 0.0
      %v477 = vmax.f32 %v437, 0.0
      %v478 = vmax.f32 %v438, 0.0
      %v479 = vmax.f32 %v439, 0.0
      %v480 = vmax.f32 %v440, 0.0
      %v481 = vmax.f32 %v441, 0.0
      %v482 = vmax.f32 %v442, 0.0
      %v483 = vmax.f32 %v443, 0.0
      %v484 = vmax.f32 %v444, 0.0
      %v485 = vmax.f32 %v445, 0.0
      %v486 = vmax.f32 %v446, 0.0
      %v487 = vmax.f32 %v447, 0.0
      %v488 = vmax.f32 %v448, 0.0
      %v489 = vmax.f32 %v449, 0.0
      %v490 = vmax.f32 %v450, 0.0
      %v491 = vmax.f32 %v451, 0.0
      %v492 = vmax.f32 %v452, 0.0
      %v493 = vmax.f32 %v453, 0.0
      %v494 = vmax.f32 %v454, 0.0
      %v495 = vmax.f32 %v455, 0.0
      %v496 = vmax.f32 %v456, 0.0
      %v497 = vmax.f32 %v457, 0.0
      %v498 = vmax.f32 %v458, 0.0
      %v499 = vmax.f32 %v459, 0.0
      %v500 = vmax.f32 %v460, 0.0
      %v501 = vmax.f32 %v461, 0.0
      %v502 = vmax.f32 %v462, 0.0
      %v503 = vmax.f32 %v463, 0.0
      %v504 = vmax.f32 %v464, 0.0
      %v505 = vmax.f32 %v465, 0.0
      %v506 = vmax.f32 %v466, 0.0
      %v507 = vmax.f32 %v467, 0.0
      %v508 = vmax.f32 %v468, 0.0
      %v509 = vmax.f32 %v469, 0.0
      %v510 = vmax.f32 %v470, 0.0
      %v511 = vmax.f32 %v471, 0.0
      %v512 = vmax.f32 %v472, 0.0
      %v513 = vld [vmem:[%s2] sm:$0xf]
      %v514 = vld [vmem:[%s3] sm:$0x1]
      %v516 = vlaneseq
      %v517 = vshrl.u32 %v516, 7
      %v518 = vsub.s32 0, %v517
      %v519 = vrot.slane %v514, %v518
      %vm521 = vcmask 31744
      %v523 = vsel %vm521, %v473, 0
      %v526 = vsel %vm521, %v474, 0
      %v529 = vsel %vm521, %v475, 0
      %v532 = vsel %vm521, %v476, 0
      %v535 = vsel %vm521, %v477, 0
      %v538 = vsel %vm521, %v478, 0
      %v541 = vsel %vm521, %v479, 0
      %v544 = vsel %vm521, %v480, 0
      %v547 = vsel %vm521, %v481, 0
      %v550 = vsel %vm521, %v482, 0
      %v553 = vsel %vm521, %v483, 0
      %v556 = vsel %vm521, %v484, 0
      %v559 = vsel %vm521, %v485, 0
      %v562 = vsel %vm521, %v486, 0
      %v565 = vsel %vm521, %v487, 0
      %v568 = vsel %vm521, %v488, 0
      %v571 = vsel %vm521, %v489, 0
      %v574 = vsel %vm521, %v490, 0
      %v577 = vsel %vm521, %v491, 0
      %v580 = vsel %vm521, %v492, 0
      %v583 = vsel %vm521, %v493, 0
      %v586 = vsel %vm521, %v494, 0
      %v589 = vsel %vm521, %v495, 0
      %v592 = vsel %vm521, %v496, 0
      %v595 = vsel %vm521, %v497, 0
      %v598 = vsel %vm521, %v498, 0
      %v601 = vsel %vm521, %v499, 0
      %v604 = vsel %vm521, %v500, 0
      %v607 = vsel %vm521, %v501, 0
      %v610 = vsel %vm521, %v502, 0
      %v613 = vsel %vm521, %v503, 0
      %v616 = vsel %vm521, %v504, 0
      %v619 = vsel %vm521, %v505, 0
      %v622 = vsel %vm521, %v506, 0
      %v625 = vsel %vm521, %v507, 0
      %v628 = vsel %vm521, %v508, 0
      %v631 = vsel %vm521, %v509, 0
      %v634 = vsel %vm521, %v510, 0
      %v637 = vsel %vm521, %v511, 0
      %v640 = vsel %vm521, %v512, 0
      %vm642 = vcmask 1043456
      %v644 = vsel %vm642, %v513, 0
      %646 = vmatprep.subr.mxu0 0.0
      %647 = vmatpush1.msra.mxu0 %v644
      %648 = vmatprep.subr.mxu0 0.0
      %649 = vmatpush1.msra.mxu0 0.0
      %650 = vmatprep.subr.mxu0 0.0
      %651 = vmatpush1.msra.mxu0 0.0
      %652 = vmatprep.subr.mxu0 0.0
      %653 = vmatpush1.msra.mxu0 0.0
      %654 = vmatprep.subr.mxu0 0.0
      %655 = vmatpush1.msra.mxu0 0.0
      %656 = vmatprep.subr.mxu0 0.0
      %657 = vmatpush1.msra.mxu0 0.0
      %658 = vmatprep.subr.mxu0 0.0
      %659 = vmatpush1.msra.mxu0 0.0
      %660 = vmatprep.subr.mxu0 0.0
      %661 = vmatpush1.msra.mxu0 0.0
      %662 = vmatprep.subr.mxu0 0.0
      %663 = vmatpush1.msra.mxu0 0.0
      %664 = vmatprep.subr.mxu0 0.0
      %665 = vmatpush1.msra.mxu0 0.0
      %666 = vmatprep.subr.mxu0 0.0
      %667 = vmatpush1.msra.mxu0 0.0
      %668 = vmatprep.subr.mxu0 0.0
      %669 = vmatpush1.msra.mxu0 0.0
      %670 = vmatprep.subr.mxu0 0.0
      %671 = vmatpush1.msra.mxu0 0.0
      %672 = vmatprep.subr.mxu0 0.0
      %673 = vmatpush1.msra.mxu0 0.0
      %674 = vmatprep.subr.mxu0 0.0
      %675 = vmatpush1.msra.mxu0 0.0
      %676 = vmatprep.subr.mxu0 0.0
      %677 = vmatpush1.msra.mxu0 0.0
      %678 = vmatprep.subr.mxu0 0.0
      %679 = vmatpush1.msra.mxu0 0.0
      %680 = vmatprep.subr.mxu0 0.0
      %681 = vmatpush1.msra.mxu0 0.0
      %682 = vmatprep.subr.mxu0 0.0
      %683 = vmatpush1.msra.mxu0 0.0
      %684 = vmatprep.subr.mxu0 0.0
      %685 = vmatpush1.msra.mxu0 0.0
      %686 = vmatprep.subr.mxu0 0.0
      %687 = vmatpush1.msra.mxu0 0.0
      %688 = vmatprep.subr.mxu0 0.0
      %689 = vmatpush1.msra.mxu0 0.0
      %690 = vmatprep.subr.mxu0 0.0
      %691 = vmatpush1.msra.mxu0 0.0
      %692 = vmatprep.subr.mxu0 0.0
      %693 = vmatpush1.msra.mxu0 0.0
      %694 = vmatprep.subr.mxu0 0.0
      %695 = vmatpush1.msra.mxu0 0.0
      %696 = vmatprep.subr.mxu0 0.0
      %697 = vmatpush1.msra.mxu0 0.0
      %698 = vmatprep.subr.mxu0 0.0
      %699 = vmatpush1.msra.mxu0 0.0
      %700 = vmatprep.subr.mxu0 0.0
      %701 = vmatpush1.msra.mxu0 0.0
      %702 = vmatprep.subr.mxu0 0.0
      %703 = vmatpush1.msra.mxu0 0.0
      %704 = vmatprep.subr.mxu0 0.0
      %705 = vmatpush1.msra.mxu0 0.0
      %706 = vmatprep.subr.mxu0 0.0
      %707 = vmatpush1.msra.mxu0 0.0
      %708 = vmatprep.subr.mxu0 0.0
      %709 = vmatpush1.msra.mxu0 0.0
      %710 = vmatprep.mubr.f32.mxu0 0.0
      %711 = vmatmul.mubr.f32.gmra.mrb[0].mxu0 %v523
      %v712 = vpop.f32.mrb[0].mxu0
      %v713 = vadd.f32 %v519, %v712
      %v714 = vpop.f32.mrb[0].mxu0
      %715 = vmatprep.mubr.f32.mxu0 0.0
      %716 = vmatmul.mubr.f32.gmra.mrb[0].mxu0 %v526
      %v717 = vpop.f32.mrb[0].mxu0
      %v718 = vadd.f32 %v519, %v717
      %v719 = vpop.f32.mrb[0].mxu0
      %720 = vmatprep.mubr.f32.mxu0 0.0
      %721 = vmatmul.mubr.f32.gmra.mrb[0].mxu0 %v529
      %v722 = vpop.f32.mrb[0].mxu0
      %v723 = vadd.f32 %v519, %v722
      %v724 = vpop.f32.mrb[0].mxu0
      %725 = vmatprep.mubr.f32.mxu0 0.0
      %726 = vmatmul.mubr.f32.gmra.mrb[0].mxu0 %v532
      %v727 = vpop.f32.mrb[0].mxu0
      %v728 = vadd.f32 %v519, %v727
      %v729 = vpop.f32.mrb[0].mxu0
      %730 = vmatprep.mubr.f32.mxu0 0.0
      %731 = vmatmul.mubr.f32.gmra.mrb[0].mxu0 %v535
      %v732 = vpop.f32.mrb[0].mxu0
      %v733 = vadd.f32 %v519, %v732
      %v734 = vpop.f32.mrb[0].mxu0
      %735 = vmatprep.mubr.f32.mxu0 0.0
      %736 = vmatmul.mubr.f32.gmra.mrb[0].mxu0 %v538
      %v737 = vpop.f32.mrb[0].mxu0
      %v738 = vadd.f32 %v519, %v737
      %v739 = vpop.f32.mrb[0].mxu0
      %740 = vmatprep.mubr.f32.mxu0 0.0
      %741 = vmatmul.mubr.f32.gmra.mrb[0].mxu0 %v541
      %v742 = vpop.f32.mrb[0].mxu0
      %v743 = vadd.f32 %v519, %v742
      %v744 = vpop.f32.mrb[0].mxu0
      %745 = vmatprep.mubr.f32.mxu0 0.0
      %746 = vmatmul.mubr.f32.gmra.mrb[0].mxu0 %v544
      %v747 = vpop.f32.mrb[0].mxu0
      %v748 = vadd.f32 %v519, %v747
      %v749 = vpop.f32.mrb[0].mxu0
      %750 = vmatprep.mubr.f32.mxu0 0.0
      %751 = vmatmul.mubr.f32.gmra.mrb[0].mxu0 %v547
      %v752 = vpop.f32.mrb[0].mxu0
      %v753 = vadd.f32 %v519, %v752
      %v754 = vpop.f32.mrb[0].mxu0
      %755 = vmatprep.mubr.f32.mxu0 0.0
      %756 = vmatmul.mubr.f32.gmra.mrb[0].mxu0 %v550
      %v757 = vpop.f32.mrb[0].mxu0
      %v758 = vadd.f32 %v519, %v757
      %v759 = vpop.f32.mrb[0].mxu0
      %760 = vmatprep.mubr.f32.mxu0 0.0
      %761 = vmatmul.mubr.f32.gmra.mrb[0].mxu0 %v553
      %v762 = vpop.f32.mrb[0].mxu0
      %v763 = vadd.f32 %v519, %v762
      %v764 = vpop.f32.mrb[0].mxu0
      %765 = vmatprep.mubr.f32.mxu0 0.0
      %766 = vmatmul.mubr.f32.gmra.mrb[0].mxu0 %v556
      %v767 = vpop.f32.mrb[0].mxu0
      %v768 = vadd.f32 %v519, %v767
      %v769 = vpop.f32.mrb[0].mxu0
      %770 = vmatprep.mubr.f32.mxu0 0.0
      %771 = vmatmul.mubr.f32.gmra.mrb[0].mxu0 %v559
      %v772 = vpop.f32.mrb[0].mxu0
      %v773 = vadd.f32 %v519, %v772
      %v774 = vpop.f32.mrb[0].mxu0
      %775 = vmatprep.mubr.f32.mxu0 0.0
      %776 = vmatmul.mubr.f32.gmra.mrb[0].mxu0 %v562
      %v777 = vpop.f32.mrb[0].mxu0
      %v778 = vadd.f32 %v519, %v777
      %v779 = vpop.f32.mrb[0].mxu0
      %780 = vmatprep.mubr.f32.mxu0 0.0
      %781 = vmatmul.mubr.f32.gmra.mrb[0].mxu0 %v565
      %v782 = vpop.f32.mrb[0].mxu0
      %v783 = vadd.f32 %v519, %v782
      %v784 = vpop.f32.mrb[0].mxu0
      %785 = vmatprep.mubr.f32.mxu0 0.0
      %786 = vmatmul.mubr.f32.gmra.mrb[0].mxu0 %v568
      %v787 = vpop.f32.mrb[0].mxu0
      %v788 = vadd.f32 %v519, %v787
      %v789 = vpop.f32.mrb[0].mxu0
      %790 = vmatprep.mubr.f32.mxu0 0.0
      %791 = vmatmul.mubr.f32.gmra.mrb[0].mxu0 %v571
      %v792 = vpop.f32.mrb[0].mxu0
      %v793 = vadd.f32 %v519, %v792
      %v794 = vpop.f32.mrb[0].mxu0
      %795 = vmatprep.mubr.f32.mxu0 0.0
      %796 = vmatmul.mubr.f32.gmra.mrb[0].mxu0 %v574
      %v797 = vpop.f32.mrb[0].mxu0
      %v798 = vadd.f32 %v519, %v797
      %v799 = vpop.f32.mrb[0].mxu0
      %800 = vmatprep.mubr.f32.mxu0 0.0
      %801 = vmatmul.mubr.f32.gmra.mrb[0].mxu0 %v577
      %v802 = vpop.f32.mrb[0].mxu0
      %v803 = vadd.f32 %v519, %v802
      %v804 = vpop.f32.mrb[0].mxu0
      %805 = vmatprep.mubr.f32.mxu0 0.0
      %806 = vmatmul.mubr.f32.gmra.mrb[0].mxu0 %v580
      %v807 = vpop.f32.mrb[0].mxu0
      %v808 = vadd.f32 %v519, %v807
      %v809 = vpop.f32.mrb[0].mxu0
      %810 = vmatprep.mubr.f32.mxu0 0.0
      %811 = vmatmul.mubr.f32.gmra.mrb[0].mxu0 %v583
      %v812 = vpop.f32.mrb[0].mxu0
      %v813 = vadd.f32 %v519, %v812
      %v814 = vpop.f32.mrb[0].mxu0
      %815 = vmatprep.mubr.f32.mxu0 0.0
      %816 = vmatmul.mubr.f32.gmra.mrb[0].mxu0 %v586
      %v817 = vpop.f32.mrb[0].mxu0
      %v818 = vadd.f32 %v519, %v817
      %v819 = vpop.f32.mrb[0].mxu0
      %820 = vmatprep.mubr.f32.mxu0 0.0
      %821 = vmatmul.mubr.f32.gmra.mrb[0].mxu0 %v589
      %v822 = vpop.f32.mrb[0].mxu0
      %v823 = vadd.f32 %v519, %v822
      %v824 = vpop.f32.mrb[0].mxu0
      %825 = vmatprep.mubr.f32.mxu0 0.0
      %826 = vmatmul.mubr.f32.gmra.mrb[0].mxu0 %v592
      %v827 = vpop.f32.mrb[0].mxu0
      %v828 = vadd.f32 %v519, %v827
      %v829 = vpop.f32.mrb[0].mxu0
      %830 = vmatprep.mubr.f32.mxu0 0.0
      %831 = vmatmul.mubr.f32.gmra.mrb[0].mxu0 %v595
      %v832 = vpop.f32.mrb[0].mxu0
      %v833 = vadd.f32 %v519, %v832
      %v834 = vpop.f32.mrb[0].mxu0
      %835 = vmatprep.mubr.f32.mxu0 0.0
      %836 = vmatmul.mubr.f32.gmra.mrb[0].mxu0 %v598
      %v837 = vpop.f32.mrb[0].mxu0
      %v838 = vadd.f32 %v519, %v837
      %v839 = vpop.f32.mrb[0].mxu0
      %840 = vmatprep.mubr.f32.mxu0 0.0
      %841 = vmatmul.mubr.f32.gmra.mrb[0].mxu0 %v601
      %v842 = vpop.f32.mrb[0].mxu0
      %v843 = vadd.f32 %v519, %v842
      %v844 = vpop.f32.mrb[0].mxu0
      %845 = vmatprep.mubr.f32.mxu0 0.0
      %846 = vmatmul.mubr.f32.gmra.mrb[0].mxu0 %v604
      %v847 = vpop.f32.mrb[0].mxu0
      %v848 = vadd.f32 %v519, %v847
      %v849 = vpop.f32.mrb[0].mxu0
      %850 = vmatprep.mubr.f32.mxu0 0.0
      %851 = vmatmul.mubr.f32.gmra.mrb[0].mxu0 %v607
      %v852 = vpop.f32.mrb[0].mxu0
      %v853 = vadd.f32 %v519, %v852
      %v854 = vpop.f32.mrb[0].mxu0
      %855 = vmatprep.mubr.f32.mxu0 0.0
      %856 = vmatmul.mubr.f32.gmra.mrb[0].mxu0 %v610
      %v857 = vpop.f32.mrb[0].mxu0
      %v858 = vadd.f32 %v519, %v857
      %v859 = vpop.f32.mrb[0].mxu0
      %860 = vmatprep.mubr.f32.mxu0 0.0
      %861 = vmatmul.mubr.f32.gmra.mrb[0].mxu0 %v613
      %v862 = vpop.f32.mrb[0].mxu0
      %v863 = vadd.f32 %v519, %v862
      %v864 = vpop.f32.mrb[0].mxu0
      %865 = vmatprep.mubr.f32.mxu0 0.0
      %866 = vmatmul.mubr.f32.gmra.mrb[0].mxu0 %v616
      %v867 = vpop.f32.mrb[0].mxu0
      %v868 = vadd.f32 %v519, %v867
      %v869 = vpop.f32.mrb[0].mxu0
      %870 = vmatprep.mubr.f32.mxu0 0.0
      %871 = vmatmul.mubr.f32.gmra.mrb[0].mxu0 %v619
      %v872 = vpop.f32.mrb[0].mxu0
      %v873 = vadd.f32 %v519, %v872
      %v874 = vpop.f32.mrb[0].mxu0
      %875 = vmatprep.mubr.f32.mxu0 0.0
      %876 = vmatmul.mubr.f32.gmra.mrb[0].mxu0 %v622
      %v877 = vpop.f32.mrb[0].mxu0
      %v878 = vadd.f32 %v519, %v877
      %v879 = vpop.f32.mrb[0].mxu0
      %880 = vmatprep.mubr.f32.mxu0 0.0
      %881 = vmatmul.mubr.f32.gmra.mrb[0].mxu0 %v625
      %v882 = vpop.f32.mrb[0].mxu0
      %v883 = vadd.f32 %v519, %v882
      %v884 = vpop.f32.mrb[0].mxu0
      %885 = vmatprep.mubr.f32.mxu0 0.0
      %886 = vmatmul.mubr.f32.gmra.mrb[0].mxu0 %v628
      %v887 = vpop.f32.mrb[0].mxu0
      %v888 = vadd.f32 %v519, %v887
      %v889 = vpop.f32.mrb[0].mxu0
      %890 = vmatprep.mubr.f32.mxu0 0.0
      %891 = vmatmul.mubr.f32.gmra.mrb[0].mxu0 %v631
      %v892 = vpop.f32.mrb[0].mxu0
      %v893 = vadd.f32 %v519, %v892
      %v894 = vpop.f32.mrb[0].mxu0
      %895 = vmatprep.mubr.f32.mxu0 0.0
      %896 = vmatmul.mubr.f32.gmra.mrb[0].mxu0 %v634
      %v897 = vpop.f32.mrb[0].mxu0
      %v898 = vadd.f32 %v519, %v897
      %v899 = vpop.f32.mrb[0].mxu0
      %900 = vmatprep.mubr.f32.mxu0 0.0
      %901 = vmatmul.mubr.f32.gmra.mrb[0].mxu0 %v637
      %v902 = vpop.f32.mrb[0].mxu0
      %v903 = vadd.f32 %v519, %v902
      %v904 = vpop.f32.mrb[0].mxu0
      %905 = vmatprep.mubr.f32.mxu0 0.0
      %906 = vmatmul.mubr.f32.gmra.mrb[0].mxu0 %v640
      %v907 = vpop.f32.mrb[0].mxu0
      %v908 = vadd.f32 %v519, %v907
      %v909 = vpop.f32.mrb[0].mxu0
      %910 = vdwg.mxu0
      %v911 = vsub.f32 0.0, %v713
      %v912 = vsub.f32 0.0, %v718
      %v913 = vsub.f32 0.0, %v723
      %v914 = vsub.f32 0.0, %v728
      %v915 = vsub.f32 0.0, %v733
      %v916 = vsub.f32 0.0, %v738
      %v917 = vsub.f32 0.0, %v743
      %v918 = vsub.f32 0.0, %v748
      %v919 = vsub.f32 0.0, %v753
      %v920 = vsub.f32 0.0, %v758
      %v921 = vsub.f32 0.0, %v763
      %v922 = vsub.f32 0.0, %v768
      %v923 = vsub.f32 0.0, %v773
      %v924 = vsub.f32 0.0, %v778
      %v925 = vsub.f32 0.0, %v783
      %v926 = vsub.f32 0.0, %v788
      %v927 = vsub.f32 0.0, %v793
      %v928 = vsub.f32 0.0, %v798
      %v929 = vsub.f32 0.0, %v803
      %v930 = vsub.f32 0.0, %v808
      %v931 = vsub.f32 0.0, %v813
      %v932 = vsub.f32 0.0, %v818
      %v933 = vsub.f32 0.0, %v823
      %v934 = vsub.f32 0.0, %v828
      %v935 = vsub.f32 0.0, %v833
      %v936 = vsub.f32 0.0, %v838
      %v937 = vsub.f32 0.0, %v843
      %v938 = vsub.f32 0.0, %v848
      %v939 = vsub.f32 0.0, %v853
      %v940 = vsub.f32 0.0, %v858
      %v941 = vsub.f32 0.0, %v863
      %v942 = vsub.f32 0.0, %v868
      %v943 = vsub.f32 0.0, %v873
      %v944 = vsub.f32 0.0, %v878
      %v945 = vsub.f32 0.0, %v883
      %v946 = vsub.f32 0.0, %v888
      %v947 = vsub.f32 0.0, %v893
      %v948 = vsub.f32 0.0, %v898
      %v949 = vsub.f32 0.0, %v903
      %v950 = vsub.f32 0.0, %v908
      %v951 = vmul.f32 %v911, 1.442695
      %v952 = vpow.pop %v951
      %v953 = vmul.f32 %v912, 1.442695
      %v954 = vpow.pop %v953
      %v955 = vmul.f32 %v913, 1.442695
      %v956 = vpow.pop %v955
      %v957 = vmul.f32 %v914, 1.442695
      %v958 = vpow.pop %v957
      %v959 = vmul.f32 %v915, 1.442695
      %v960 = vpow.pop %v959
      %v961 = vmul.f32 %v916, 1.442695
      %v962 = vpow.pop %v961
      %v963 = vmul.f32 %v917, 1.442695
      %v964 = vpow.pop %v963
      %v965 = vmul.f32 %v918, 1.442695
      %v966 = vpow.pop %v965
      %v967 = vmul.f32 %v919, 1.442695
      %v968 = vpow.pop %v967
      %v969 = vmul.f32 %v920, 1.442695
      %v970 = vpow.pop %v969
      %v971 = vmul.f32 %v921, 1.442695
      %v972 = vpow.pop %v971
      %v973 = vmul.f32 %v922, 1.442695
      %v974 = vpow.pop %v973
      %v975 = vmul.f32 %v923, 1.442695
      %v976 = vpow.pop %v975
      %v977 = vmul.f32 %v924, 1.442695
      %v978 = vpow.pop %v977
      %v979 = vmul.f32 %v925, 1.442695
      %v980 = vpow.pop %v979
      %v981 = vmul.f32 %v926, 1.442695
      %v982 = vpow.pop %v981
      %v983 = vmul.f32 %v927, 1.442695
      %v984 = vpow.pop %v983
      %v985 = vmul.f32 %v928, 1.442695
      %v986 = vpow.pop %v985
      %v987 = vmul.f32 %v929, 1.442695
      %v988 = vpow.pop %v987
      %v989 = vmul.f32 %v930, 1.442695
      %v990 = vpow.pop %v989
      %v991 = vmul.f32 %v931, 1.442695
      %v992 = vpow.pop %v991
      %v993 = vmul.f32 %v932, 1.442695
      %v994 = vpow.pop %v993
      %v995 = vmul.f32 %v933, 1.442695
      %v996 = vpow.pop %v995
      %v997 = vmul.f32 %v934, 1.442695
      %v998 = vpow.pop %v997
      %v999 = vmul.f32 %v935, 1.442695
      %v1000 = vpow.pop %v999
      %v1001 = vmul.f32 %v936, 1.442695
      %v1002 = vpow.pop %v1001
      %v1003 = vmul.f32 %v937, 1.442695
      %v1004 = vpow.pop %v1003
      %v1005 = vmul.f32 %v938, 1.442695
      %v1006 = vpow.pop %v1005
      %v1007 = vmul.f32 %v939, 1.442695
      %v1008 = vpow.pop %v1007
      %v1009 = vmul.f32 %v940, 1.442695
      %v1010 = vpow.pop %v1009
      %v1011 = vmul.f32 %v941, 1.442695
      %v1012 = vpow.pop %v1011
      %v1013 = vmul.f32 %v942, 1.442695
      %v1014 = vpow.pop %v1013
      %v1015 = vmul.f32 %v943, 1.442695
      %v1016 = vpow.pop %v1015
      %v1017 = vmul.f32 %v944, 1.442695
      %v1018 = vpow.pop %v1017
      %v1019 = vmul.f32 %v945, 1.442695
      %v1020 = vpow.pop %v1019
      %v1021 = vmul.f32 %v946, 1.442695
      %v1022 = vpow.pop %v1021
      %v1023 = vmul.f32 %v947, 1.442695
      %v1024 = vpow.pop %v1023
      %v1025 = vmul.f32 %v948, 1.442695
      %v1026 = vpow.pop %v1025
      %v1027 = vmul.f32 %v949, 1.442695
      %v1028 = vpow.pop %v1027
      %v1029 = vmul.f32 %v950, 1.442695
      %v1030 = vpow.pop %v1029
      %v1031 = vadd.f32 %v952, 1.0
      %v1032 = vadd.f32 %v954, 1.0
      %v1033 = vadd.f32 %v956, 1.0
      %v1034 = vadd.f32 %v958, 1.0
      %v1035 = vadd.f32 %v960, 1.0
      %v1036 = vadd.f32 %v962, 1.0
      %v1037 = vadd.f32 %v964, 1.0
      %v1038 = vadd.f32 %v966, 1.0
      %v1039 = vadd.f32 %v968, 1.0
      %v1040 = vadd.f32 %v970, 1.0
      %v1041 = vadd.f32 %v972, 1.0
      %v1042 = vadd.f32 %v974, 1.0
      %v1043 = vadd.f32 %v976, 1.0
      %v1044 = vadd.f32 %v978, 1.0
      %v1045 = vadd.f32 %v980, 1.0
      %v1046 = vadd.f32 %v982, 1.0
      %v1047 = vadd.f32 %v984, 1.0
      %v1048 = vadd.f32 %v986, 1.0
      %v1049 = vadd.f32 %v988, 1.0
      %v1050 = vadd.f32 %v990, 1.0
      %v1051 = vadd.f32 %v992, 1.0
      %v1052 = vadd.f32 %v994, 1.0
      %v1053 = vadd.f32 %v996, 1.0
      %v1054 = vadd.f32 %v998, 1.0
      %v1055 = vadd.f32 %v1000, 1.0
      %v1056 = vadd.f32 %v1002, 1.0
      %v1057 = vadd.f32 %v1004, 1.0
      %v1058 = vadd.f32 %v1006, 1.0
      %v1059 = vadd.f32 %v1008, 1.0
      %v1060 = vadd.f32 %v1010, 1.0
      %v1061 = vadd.f32 %v1012, 1.0
      %v1062 = vadd.f32 %v1014, 1.0
      %v1063 = vadd.f32 %v1016, 1.0
      %v1064 = vadd.f32 %v1018, 1.0
      %v1065 = vadd.f32 %v1020, 1.0
      %v1066 = vadd.f32 %v1022, 1.0
      %v1067 = vadd.f32 %v1024, 1.0
      %v1068 = vadd.f32 %v1026, 1.0
      %v1069 = vadd.f32 %v1028, 1.0
      %v1070 = vadd.f32 %v1030, 1.0
      %v1071 = vrcp.pop %v1031
      %v1072 = vrcp.pop %v1032
      %v1073 = vrcp.pop %v1033
      %v1074 = vrcp.pop %v1034
      %v1075 = vrcp.pop %v1035
      %v1076 = vrcp.pop %v1036
      %v1077 = vrcp.pop %v1037
      %v1078 = vrcp.pop %v1038
      %v1079 = vrcp.pop %v1039
      %v1080 = vrcp.pop %v1040
      %v1081 = vrcp.pop %v1041
      %v1082 = vrcp.pop %v1042
      %v1083 = vrcp.pop %v1043
      %v1084 = vrcp.pop %v1044
      %v1085 = vrcp.pop %v1045
      %v1086 = vrcp.pop %v1046
      %v1087 = vrcp.pop %v1047
      %v1088 = vrcp.pop %v1048
      %v1089 = vrcp.pop %v1049
      %v1090 = vrcp.pop %v1050
      %v1091 = vrcp.pop %v1051
      %v1092 = vrcp.pop %v1052
      %v1093 = vrcp.pop %v1053
      %v1094 = vrcp.pop %v1054
      %v1095 = vrcp.pop %v1055
      %v1096 = vrcp.pop %v1056
      %v1097 = vrcp.pop %v1057
      %v1098 = vrcp.pop %v1058
      %v1099 = vrcp.pop %v1059
      %v1100 = vrcp.pop %v1060
      %v1101 = vrcp.pop %v1061
      %v1102 = vrcp.pop %v1062
      %v1103 = vrcp.pop %v1063
      %v1104 = vrcp.pop %v1064
      %v1105 = vrcp.pop %v1065
      %v1106 = vrcp.pop %v1066
      %v1107 = vrcp.pop %v1067
      %v1108 = vrcp.pop %v1068
      %v1109 = vrcp.pop %v1069
      %v1110 = vrcp.pop %v1070
      %v1111 = vld [vmem:[%s409] sm:$0xff]
      %v1112 = vld [vmem:[%s409 + $0x8] sm:$0xff]
      %v1113 = vld [vmem:[%s409 + $0x10] sm:$0xff]
      %v1114 = vld [vmem:[%s409 + $0x18] sm:$0xff]
      %v1115 = vld [vmem:[%s409 + $0x20] sm:$0xff]
      %v1116 = vld [vmem:[%s409 + $0x28] sm:$0xff]
      %v1117 = vld [vmem:[%s409 + $0x30] sm:$0xff]
      %v1118 = vld [vmem:[%s409 + $0x38] sm:$0xff]
      %v1119 = vld [vmem:[%s409 + $0x40] sm:$0xff]
      %v1120 = vld [vmem:[%s409 + $0x48] sm:$0xff]
      %v1121 = vld [vmem:[%s409 + $0x50] sm:$0xff]
      %v1122 = vld [vmem:[%s409 + $0x58] sm:$0xff]
      %v1123 = vld [vmem:[%s409 + $0x60] sm:$0xff]
      %v1124 = vld [vmem:[%s409 + $0x68] sm:$0xff]
      %v1125 = vld [vmem:[%s409 + $0x70] sm:$0xff]
      %v1126 = vld [vmem:[%s409 + $0x78] sm:$0xff]
      %v1127 = vld [vmem:[%s409 + $0x80] sm:$0xff]
      %v1128 = vld [vmem:[%s409 + $0x88] sm:$0xff]
      %v1129 = vld [vmem:[%s409 + $0x90] sm:$0xff]
      %v1130 = vld [vmem:[%s409 + $0x98] sm:$0xff]
      %v1131 = vld [vmem:[%s409 + $0xa0] sm:$0xff]
      %v1132 = vld [vmem:[%s409 + $0xa8] sm:$0xff]
      %v1133 = vld [vmem:[%s409 + $0xb0] sm:$0xff]
      %v1134 = vld [vmem:[%s409 + $0xb8] sm:$0xff]
      %v1135 = vld [vmem:[%s409 + $0xc0] sm:$0xff]
      %v1136 = vld [vmem:[%s409 + $0xc8] sm:$0xff]
      %v1137 = vld [vmem:[%s409 + $0xd0] sm:$0xff]
      %v1138 = vld [vmem:[%s409 + $0xd8] sm:$0xff]
      %v1139 = vld [vmem:[%s409 + $0xe0] sm:$0xff]
      %v1140 = vld [vmem:[%s409 + $0xe8] sm:$0xff]
      %v1141 = vld [vmem:[%s409 + $0xf0] sm:$0xff]
      %v1142 = vld [vmem:[%s409 + $0xf8] sm:$0xff]
      %v1143 = vld [vmem:[%s409 + $0x100] sm:$0xff]
      %v1144 = vld [vmem:[%s409 + $0x108] sm:$0xff]
      %v1145 = vld [vmem:[%s409 + $0x110] sm:$0xff]
      %v1146 = vld [vmem:[%s409 + $0x118] sm:$0xff]
      %v1147 = vld [vmem:[%s409 + $0x120] sm:$0xff]
      %v1148 = vld [vmem:[%s409 + $0x128] sm:$0xff]
      %v1149 = vld [vmem:[%s409 + $0x130] sm:$0xff]
      %v1150 = vld [vmem:[%s409 + $0x138] sm:$0xff]
      %v1151 = vmul.f32 %v1111, %v1071
      %v1152 = vmul.f32 %v1112, %v1072
      %v1153 = vmul.f32 %v1113, %v1073
      %v1154 = vmul.f32 %v1114, %v1074
      %v1155 = vmul.f32 %v1115, %v1075
      %v1156 = vmul.f32 %v1116, %v1076
      %v1157 = vmul.f32 %v1117, %v1077
      %v1158 = vmul.f32 %v1118, %v1078
      %v1159 = vmul.f32 %v1119, %v1079
      %v1160 = vmul.f32 %v1120, %v1080
      %v1161 = vmul.f32 %v1121, %v1081
      %v1162 = vmul.f32 %v1122, %v1082
      %v1163 = vmul.f32 %v1123, %v1083
      %v1164 = vmul.f32 %v1124, %v1084
      %v1165 = vmul.f32 %v1125, %v1085
      %v1166 = vmul.f32 %v1126, %v1086
      %v1167 = vmul.f32 %v1127, %v1087
      %v1168 = vmul.f32 %v1128, %v1088
      %v1169 = vmul.f32 %v1129, %v1089
      %v1170 = vmul.f32 %v1130, %v1090
      %v1171 = vmul.f32 %v1131, %v1091
      %v1172 = vmul.f32 %v1132, %v1092
      %v1173 = vmul.f32 %v1133, %v1093
      %v1174 = vmul.f32 %v1134, %v1094
      %v1175 = vmul.f32 %v1135, %v1095
      %v1176 = vmul.f32 %v1136, %v1096
      %v1177 = vmul.f32 %v1137, %v1097
      %v1178 = vmul.f32 %v1138, %v1098
      %v1179 = vmul.f32 %v1139, %v1099
      %v1180 = vmul.f32 %v1140, %v1100
      %v1181 = vmul.f32 %v1141, %v1101
      %v1182 = vmul.f32 %v1142, %v1102
      %v1183 = vmul.f32 %v1143, %v1103
      %v1184 = vmul.f32 %v1144, %v1104
      %v1185 = vmul.f32 %v1145, %v1105
      %v1186 = vmul.f32 %v1146, %v1106
      %v1187 = vmul.f32 %v1147, %v1107
      %v1188 = vmul.f32 %v1148, %v1108
      %v1189 = vmul.f32 %v1149, %v1109
      %v1190 = vmul.f32 %v1150, %v1110
      %1191 = vst.msk [vmem:[%s430] sm:$0xff] %vm521, %v477
      %1192 = vst.msk [vmem:[%s430 + $0x8] sm:$0xff] %vm521, %v478
      %1193 = vst.msk [vmem:[%s430 + $0x10] sm:$0xff] %vm521, %v479
      %1194 = vst.msk [vmem:[%s430 + $0x18] sm:$0xff] %vm521, %v480
      %1195 = vst.msk [vmem:[%s430 + $0x20] sm:$0xff] %vm521, %v481
      %1196 = vst.msk [vmem:[%s430 + $0x28] sm:$0xff] %vm521, %v482
      %1197 = vst.msk [vmem:[%s430 + $0x30] sm:$0xff] %vm521, %v483
      %1198 = vst.msk [vmem:[%s430 + $0x38] sm:$0xff] %vm521, %v484
      %1199 = vst.msk [vmem:[%s430 + $0x40] sm:$0xff] %vm521, %v485
      %1200 = vst.msk [vmem:[%s430 + $0x48] sm:$0xff] %vm521, %v486
      %1201 = vst.msk [vmem:[%s430 + $0x50] sm:$0xff] %vm521, %v487
      %1202 = vst.msk [vmem:[%s430 + $0x58] sm:$0xff] %vm521, %v488
      %1203 = vst.msk [vmem:[%s430 + $0x60] sm:$0xff] %vm521, %v489
      %1204 = vst.msk [vmem:[%s430 + $0x68] sm:$0xff] %vm521, %v490
      %1205 = vst.msk [vmem:[%s430 + $0x70] sm:$0xff] %vm521, %v491
      %1206 = vst.msk [vmem:[%s430 + $0x78] sm:$0xff] %vm521, %v492
      %1207 = vst.msk [vmem:[%s430 + $0x80] sm:$0xff] %vm521, %v493
      %1208 = vst.msk [vmem:[%s430 + $0x88] sm:$0xff] %vm521, %v494
      %1209 = vst.msk [vmem:[%s430 + $0x90] sm:$0xff] %vm521, %v495
      %1210 = vst.msk [vmem:[%s430 + $0x98] sm:$0xff] %vm521, %v496
      %1211 = vst.msk [vmem:[%s430 + $0xa0] sm:$0xff] %vm521, %v497
      %1212 = vst.msk [vmem:[%s430 + $0xa8] sm:$0xff] %vm521, %v498
      %1213 = vst.msk [vmem:[%s430 + $0xb0] sm:$0xff] %vm521, %v499
      %1214 = vst.msk [vmem:[%s430 + $0xb8] sm:$0xff] %vm521, %v500
      %1215 = vst.msk [vmem:[%s430 + $0xc0] sm:$0xff] %vm521, %v501
      %1216 = vst.msk [vmem:[%s430 + $0xc8] sm:$0xff] %vm521, %v502
      %1217 = vst.msk [vmem:[%s430 + $0xd0] sm:$0xff] %vm521, %v503
      %1218 = vst.msk [vmem:[%s430 + $0xd8] sm:$0xff] %vm521, %v504
      %1219 = vst.msk [vmem:[%s430 + $0xe0] sm:$0xff] %vm521, %v505
      %1220 = vst.msk [vmem:[%s430 + $0xe8] sm:$0xff] %vm521, %v506
      %1221 = vst.msk [vmem:[%s430 + $0xf0] sm:$0xff] %vm521, %v507
      %1222 = vst.msk [vmem:[%s430 + $0xf8] sm:$0xff] %vm521, %v508
      %vm1223 = vcmask 57344
      %1224 = vst.msk [vmem:[#allocation2] sm:$0x1] %vm1223, 0.0
      %1225 = vst.msk [vmem:[#allocation2 + $0x18] sm:$0x1] %vm1223, 0.0
      %1226 = vst.msk [vmem:[#allocation2 + $0x30] sm:$0x1] %vm1223, 0.0
      %1227 = vst.msk [vmem:[#allocation2 + $0x48] sm:$0x1] %vm1223, 0.0
      %1228 = vst.msk [vmem:[#allocation2 + $0x60] sm:$0x1] %vm1223, 0.0
      %1229 = vst.msk [vmem:[#allocation2 + $0x78] sm:$0x1] %vm1223, 0.0
      %1230 = vst.msk [vmem:[#allocation2 + $0x90] sm:$0x1] %vm1223, 0.0
      %1231 = vst.msk [vmem:[#allocation2 + $0xa8] sm:$0x1] %vm1223, 0.0
      %1232 = vst.msk [vmem:[#allocation2 + $0xc0] sm:$0x1] %vm1223, 0.0
      %1233 = vst.msk [vmem:[#allocation2 + $0xd8] sm:$0x1] %vm1223, 0.0
      %1234 = vst.msk [vmem:[#allocation2 + $0xf0] sm:$0x1] %vm1223, 0.0
      %1235 = vst.msk [vmem:[#allocation2 + $0x108] sm:$0x1] %vm1223, 0.0
      %1236 = vst.msk [vmem:[#allocation2 + $0x120] sm:$0x1] %vm1223, 0.0
      %1237 = vst.msk [vmem:[#allocation2 + $0x138] sm:$0x1] %vm1223, 0.0
      %1238 = vst.msk [vmem:[#allocation2 + $0x150] sm:$0x1] %vm1223, 0.0
      %1239 = vst.msk [vmem:[#allocation2 + $0x168] sm:$0x1] %vm1223, 0.0
      %1240 = vst.msk [vmem:[#allocation2 + $0x180] sm:$0x1] %vm1223, 0.0
      %1241 = vst.msk [vmem:[#allocation2 + $0x198] sm:$0x1] %vm1223, 0.0
      %1242 = vst.msk [vmem:[#allocation2 + $0x1b0] sm:$0x1] %vm1223, 0.0
      %1243 = vst.msk [vmem:[#allocation2 + $0x1c8] sm:$0x1] %vm1223, 0.0
      %1244 = vst.msk [vmem:[#allocation2 + $0x11] sm:$0x1] %vm1223, 0.0
      %1245 = vst.msk [vmem:[#allocation2 + $0x29] sm:$0x1] %vm1223, 0.0
      %1246 = vst.msk [vmem:[#allocation2 + $0x41] sm:$0x1] %vm1223, 0.0
      %1247 = vst.msk [vmem:[#allocation2 + $0x59] sm:$0x1] %vm1223, 0.0
      %1248 = vst.msk [vmem:[#allocation2 + $0x71] sm:$0x1] %vm1223, 0.0
      %1249 = vst.msk [vmem:[#allocation2 + $0x89] sm:$0x1] %vm1223, 0.0
      %1250 = vst.msk [vmem:[#allocation2 + $0xa1] sm:$0x1] %vm1223, 0.0
      %1251 = vst.msk [vmem:[#allocation2 + $0xb9] sm:$0x1] %vm1223, 0.0
      %1252 = vst.msk [vmem:[#allocation2 + $0xd1] sm:$0x1] %vm1223, 0.0
      %1253 = vst.msk [vmem:[#allocation2 + $0xe9] sm:$0x1] %vm1223, 0.0
      %1254 = vst.msk [vmem:[#allocation2 + $0x101] sm:$0x1] %vm1223, 0.0
      %1255 = vst.msk [vmem:[#allocation2 + $0x119] sm:$0x1] %vm1223, 0.0
      %1256 = vst.msk [vmem:[#allocation2 + $0x131] sm:$0x1] %vm1223, 0.0
      %1257 = vst.msk [vmem:[#allocation2 + $0x149] sm:$0x1] %vm1223, 0.0
      %1258 = vst.msk [vmem:[#allocation2 + $0x161] sm:$0x1] %vm1223, 0.0
      %1259 = vst.msk [vmem:[#allocation2 + $0x179] sm:$0x1] %vm1223, 0.0
      %1260 = vst.msk [vmem:[#allocation2 + $0x191] sm:$0x1] %vm1223, 0.0
      %1261 = vst.msk [vmem:[#allocation2 + $0x1a9] sm:$0x1] %vm1223, 0.0
      %1262 = vst.msk [vmem:[#allocation2 + $0x1c1] sm:$0x1] %vm1223, 0.0
      %1263 = vst.msk [vmem:[#allocation2 + $0x1d9] sm:$0x1] %vm1223, 0.0
      %vm1264 = vcmask 64512
      %1265 = vst.msk [vmem:[#allocation2 + $0x1] sm:$0xff] %vm1264, %v1151
      %1266 = vst.msk [vmem:[#allocation2 + $0x9] sm:$0xff] %vm1264, %v1152
      %1267 = vst.msk [vmem:[#allocation2 + $0x19] sm:$0xff] %vm1264, %v1153
      %1268 = vst.msk [vmem:[#allocation2 + $0x21] sm:$0xff] %vm1264, %v1154
      %1269 = vst.msk [vmem:[#allocation2 + $0x31] sm:$0xff] %vm1264, %v1155
      %1270 = vst.msk [vmem:[#allocation2 + $0x39] sm:$0xff] %vm1264, %v1156
      %1271 = vst.msk [vmem:[#allocation2 + $0x49] sm:$0xff] %vm1264, %v1157
      %1272 = vst.msk [vmem:[#allocation2 + $0x51] sm:$0xff] %vm1264, %v1158
      %1273 = vst.msk [vmem:[#allocation2 + $0x61] sm:$0xff] %vm1264, %v1159
      %1274 = vst.msk [vmem:[#allocation2 + $0x69] sm:$0xff] %vm1264, %v1160
      %1275 = vst.msk [vmem:[#allocation2 + $0x79] sm:$0xff] %vm1264, %v1161
      %1276 = vst.msk [vmem:[#allocation2 + $0x81] sm:$0xff] %vm1264, %v1162
      %1277 = vst.msk [vmem:[#allocation2 + $0x91] sm:$0xff] %vm1264, %v1163
      %1278 = vst.msk [vmem:[#allocation2 + $0x99] sm:$0xff] %vm1264, %v1164
      %1279 = vst.msk [vmem:[#allocation2 + $0xa9] sm:$0xff] %vm1264, %v1165
      %1280 = vst.msk [vmem:[#allocation2 + $0xb1] sm:$0xff] %vm1264, %v1166
      %1281 = vst.msk [vmem:[#allocation2 + $0xc1] sm:$0xff] %vm1264, %v1167
      %1282 = vst.msk [vmem:[#allocation2 + $0xc9] sm:$0xff] %vm1264, %v1168
      %1283 = vst.msk [vmem:[#allocation2 + $0xd9] sm:$0xff] %vm1264, %v1169
      %1284 = vst.msk [vmem:[#allocation2 + $0xe1] sm:$0xff] %vm1264, %v1170
      %1285 = vst.msk [vmem:[#allocation2 + $0xf1] sm:$0xff] %vm1264, %v1171
      %1286 = vst.msk [vmem:[#allocation2 + $0xf9] sm:$0xff] %vm1264, %v1172
      %1287 = vst.msk [vmem:[#allocation2 + $0x109] sm:$0xff] %vm1264, %v1173
      %1288 = vst.msk [vmem:[#allocation2 + $0x111] sm:$0xff] %vm1264, %v1174
      %1289 = vst.msk [vmem:[#allocation2 + $0x121] sm:$0xff] %vm1264, %v1175
      %1290 = vst.msk [vmem:[#allocation2 + $0x129] sm:$0xff] %vm1264, %v1176
      %1291 = vst.msk [vmem:[#allocation2 + $0x139] sm:$0xff] %vm1264, %v1177
      %1292 = vst.msk [vmem:[#allocation2 + $0x141] sm:$0xff] %vm1264, %v1178
      %1293 = vst.msk [vmem:[#allocation2 + $0x151] sm:$0xff] %vm1264, %v1179
      %1294 = vst.msk [vmem:[#allocation2 + $0x159] sm:$0xff] %vm1264, %v1180
      %1295 = vst.msk [vmem:[#allocation2 + $0x169] sm:$0xff] %vm1264, %v1181
      %1296 = vst.msk [vmem:[#allocation2 + $0x171] sm:$0xff] %vm1264, %v1182
      %1297 = vst.msk [vmem:[#allocation2 + $0x181] sm:$0xff] %vm1264, %v1183
      %1298 = vst.msk [vmem:[#allocation2 + $0x189] sm:$0xff] %vm1264, %v1184
      %1299 = vst.msk [vmem:[#allocation2 + $0x199] sm:$0xff] %vm1264, %v1185
      %1300 = vst.msk [vmem:[#allocation2 + $0x1a1] sm:$0xff] %vm1264, %v1186
      %1301 = vst.msk [vmem:[#allocation2 + $0x1b1] sm:$0xff] %vm1264, %v1187
      %1302 = vst.msk [vmem:[#allocation2 + $0x1b9] sm:$0xff] %vm1264, %v1188
      %1303 = vst.msk [vmem:[#allocation2 + $0x1c9] sm:$0xff] %vm1264, %v1189
      %1304 = vst.msk [vmem:[#allocation2 + $0x1d1] sm:$0xff] %vm1264, %v1190
      %v1305 = vld [vmem:[#allocation2] sm:$0xff]
      %v1306 = vld [vmem:[#allocation2 + $0x8] sm:$0xff]
      %v1307 = vld [vmem:[#allocation2 + $0x10] sm:$0x3]
      %v1308 = vld [vmem:[#allocation2 + $0x18] sm:$0xff]
      %v1309 = vld [vmem:[#allocation2 + $0x20] sm:$0xff]
      %v1310 = vld [vmem:[#allocation2 + $0x28] sm:$0x3]
      %v1311 = vld [vmem:[#allocation2 + $0x30] sm:$0xff]
      %v1312 = vld [vmem:[#allocation2 + $0x38] sm:$0xff]
      %v1313 = vld [vmem:[#allocation2 + $0x40] sm:$0x3]
      %v1314 = vld [vmem:[#allocation2 + $0x48] sm:$0xff]
      %v1315 = vld [vmem:[#allocation2 + $0x50] sm:$0xff]
      %v1316 = vld [vmem:[#allocation2 + $0x58] sm:$0x3]
      %v1317 = vld [vmem:[#allocation2 + $0x60] sm:$0xff]
      %v1318 = vld [vmem:[#allocation2 + $0x68] sm:$0xff]
      %v1319 = vld [vmem:[#allocation2 + $0x70] sm:$0x3]
      %v1320 = vld [vmem:[#allocation2 + $0x78] sm:$0xff]
      %v1321 = vld [vmem:[#allocation2 + $0x80] sm:$0xff]
      %v1322 = vld [vmem:[#allocation2 + $0x88] sm:$0x3]
      %v1323 = vld [vmem:[#allocation2 + $0x90] sm:$0xff]
      %v1324 = vld [vmem:[#allocation2 + $0x98] sm:$0xff]
      %v1325 = vld [vmem:[#allocation2 + $0xa0] sm:$0x3]
      %v1326 = vld [vmem:[#allocation2 + $0xa8] sm:$0xff]
      %v1327 = vld [vmem:[#allocation2 + $0xb0] sm:$0xff]
      %v1328 = vld [vmem:[#allocation2 + $0xb8] sm:$0x3]
      %v1329 = vld [vmem:[#allocation2 + $0xc0] sm:$0xff]
      %v1330 = vld [vmem:[#allocation2 + $0xc8] sm:$0xff]
      %v1331 = vld [vmem:[#allocation2 + $0xd0] sm:$0x3]
      %v1332 = vld [vmem:[#allocation2 + $0xd8] sm:$0xff]
      %v1333 = vld [vmem:[#allocation2 + $0xe0] sm:$0xff]
      %v1334 = vld [vmem:[#allocation2 + $0xe8] sm:$0x3]
      %v1335 = vld [vmem:[#allocation2 + $0xf0] sm:$0xff]
      %v1336 = vld [vmem:[#allocation2 + $0xf8] sm:$0xff]
      %v1337 = vld [vmem:[#allocation2 + $0x100] sm:$0x3]
      %v1338 = vld [vmem:[#allocation2 + $0x108] sm:$0xff]
      %v1339 = vld [vmem:[#allocation2 + $0x110] sm:$0xff]
      %v1340 = vld [vmem:[#allocation2 + $0x118] sm:$0x3]
      %v1341 = vld [vmem:[#allocation2 + $0x120] sm:$0xff]
      %v1342 = vld [vmem:[#allocation2 + $0x128] sm:$0xff]
      %v1343 = vld [vmem:[#allocation2 + $0x130] sm:$0x3]
      %v1344 = vld [vmem:[#allocation2 + $0x138] sm:$0xff]
      %v1345 = vld [vmem:[#allocation2 + $0x140] sm:$0xff]
      %v1346 = vld [vmem:[#allocation2 + $0x148] sm:$0x3]
      %v1347 = vld [vmem:[#allocation2 + $0x150] sm:$0xff]
      %v1348 = vld [vmem:[#allocation2 + $0x158] sm:$0xff]
      %v1349 = vld [vmem:[#allocation2 + $0x160] sm:$0x3]
      %v1350 = vld [vmem:[#allocation2 + $0x168] sm:$0xff]
      %v1351 = vld [vmem:[#allocation2 + $0x170] sm:$0xff]
      %v1352 = vld [vmem:[#allocation2 + $0x178] sm:$0x3]
      %v1353 = vld [vmem:[#allocation2 + $0x180] sm:$0xff]
      %v1354 = vld [vmem:[#allocation2 + $0x188] sm:$0xff]
      %v1355 = vld [vmem:[#allocation2 + $0x190] sm:$0x3]
      %v1356 = vld [vmem:[#allocation2 + $0x198] sm:$0xff]
      %v1357 = vld [vmem:[#allocation2 + $0x1a0] sm:$0xff]
      %v1358 = vld [vmem:[#allocation2 + $0x1a8] sm:$0x3]
      %v1359 = vld [vmem:[#allocation2 + $0x1b0] sm:$0xff]
      %v1360 = vld [vmem:[#allocation2 + $0x1b8] sm:$0xff]
      %v1361 = vld [vmem:[#allocation2 + $0x1c0] sm:$0x3]
      %v1362 = vld [vmem:[#allocation2 + $0x1c8] sm:$0xff]
      %v1363 = vld [vmem:[#allocation2 + $0x1d0] sm:$0xff]
      %v1364 = vld [vmem:[#allocation2 + $0x1d8] sm:$0x3]
      %v1365 = vpack.c.bf16 %v1306, %v1305
      %v1366 = vpack.c.bf16 %v1307, %v1307
      %v1367 = vpack.c.bf16 %v1309, %v1308
      %v1368 = vpack.c.bf16 %v1310, %v1310
      %v1369 = vpack.c.bf16 %v1312, %v1311
      %v1370 = vpack.c.bf16 %v1313, %v1313
      %v1371 = vpack.c.bf16 %v1315, %v1314
      %v1372 = vpack.c.bf16 %v1316, %v1316
      %v1373 = vpack.c.bf16 %v1318, %v1317
      %v1374 = vpack.c.bf16 %v1319, %v1319
      %v1375 = vpack.c.bf16 %v1321, %v1320
      %v1376 = vpack.c.bf16 %v1322, %v1322
      %v1377 = vpack.c.bf16 %v1324, %v1323
      %v1378 = vpack.c.bf16 %v1325, %v1325
      %v1379 = vpack.c.bf16 %v1327, %v1326
      %v1380 = vpack.c.bf16 %v1328, %v1328
      %v1381 = vpack.c.bf16 %v1330, %v1329
      %v1382 = vpack.c.bf16 %v1331, %v1331
      %v1383 = vpack.c.bf16 %v1333, %v1332
      %v1384 = vpack.c.bf16 %v1334, %v1334
      %v1385 = vpack.c.bf16 %v1336, %v1335
      %v1386 = vpack.c.bf16 %v1337, %v1337
      %v1387 = vpack.c.bf16 %v1339, %v1338
      %v1388 = vpack.c.bf16 %v1340, %v1340
      %v1389 = vpack.c.bf16 %v1342, %v1341
      %v1390 = vpack.c.bf16 %v1343, %v1343
      %v1391 = vpack.c.bf16 %v1345, %v1344
      %v1392 = vpack.c.bf16 %v1346, %v1346
      %v1393 = vpack.c.bf16 %v1348, %v1347
      %v1394 = vpack.c.bf16 %v1349, %v1349
      %v1395 = vpack.c.bf16 %v1351, %v1350
      %v1396 = vpack.c.bf16 %v1352, %v1352
      %v1397 = vpack.c.bf16 %v1354, %v1353
      %v1398 = vpack.c.bf16 %v1355, %v1355
      %v1399 = vpack.c.bf16 %v1357, %v1356
      %v1400 = vpack.c.bf16 %v1358, %v1358
      %v1401 = vpack.c.bf16 %v1360, %v1359
      %v1402 = vpack.c.bf16 %v1361, %v1361
      %v1403 = vpack.c.bf16 %v1363, %v1362
      %v1404 = vpack.c.bf16 %v1364, %v1364
      %vm1405 = vsmask.f32 7424
      %v1407 = vshrl.u32 %v1365, 16
      %v1409 = vshll.u32 %v1365, 16
      %v1411 = vrot.slane %v1409, 1
      %v1412 = vor.u32 %v1407, %v1411
      %v1414 = vshll.u32 %v1366, 16
      %v1416 = vrot.slane %v1414, 1
      %v1417 = vsel %vm1405, %v1412, %v1416
      %v1419 = vshrl.u32 %v1367, 16
      %v1421 = vshll.u32 %v1367, 16
      %v1423 = vrot.slane %v1421, 1
      %v1424 = vor.u32 %v1419, %v1423
      %v1426 = vshll.u32 %v1368, 16
      %v1428 = vrot.slane %v1426, 1
      %v1429 = vsel %vm1405, %v1424, %v1428
      %v1431 = vshrl.u32 %v1369, 16
      %v1433 = vshll.u32 %v1369, 16
      %v1435 = vrot.slane %v1433, 1
      %v1436 = vor.u32 %v1431, %v1435
      %v1438 = vshll.u32 %v1370, 16
      %v1440 = vrot.slane %v1438, 1
      %v1441 = vsel %vm1405, %v1436, %v1440
      %v1443 = vshrl.u32 %v1371, 16
      %v1445 = vshll.u32 %v1371, 16
      %v1447 = vrot.slane %v1445, 1
      %v1448 = vor.u32 %v1443, %v1447
      %v1450 = vshll.u32 %v1372, 16
      %v1452 = vrot.slane %v1450, 1
      %v1453 = vsel %vm1405, %v1448, %v1452
      %v1455 = vshrl.u32 %v1373, 16
      %v1457 = vshll.u32 %v1373, 16
      %v1459 = vrot.slane %v1457, 1
      %v1460 = vor.u32 %v1455, %v1459
      %v1462 = vshll.u32 %v1374, 16
      %v1464 = vrot.slane %v1462, 1
      %v1465 = vsel %vm1405, %v1460, %v1464
      %v1467 = vshrl.u32 %v1375, 16
      %v1469 = vshll.u32 %v1375, 16
      %v1471 = vrot.slane %v1469, 1
      %v1472 = vor.u32 %v1467, %v1471
      %v1474 = vshll.u32 %v1376, 16
      %v1476 = vrot.slane %v1474, 1
      %v1477 = vsel %vm1405, %v1472, %v1476
      %v1479 = vshrl.u32 %v1377, 16
      %v1481 = vshll.u32 %v1377, 16
      %v1483 = vrot.slane %v1481, 1
      %v1484 = vor.u32 %v1479, %v1483
      %v1486 = vshll.u32 %v1378, 16
      %v1488 = vrot.slane %v1486, 1
      %v1489 = vsel %vm1405, %v1484, %v1488
      %v1491 = vshrl.u32 %v1379, 16
      %v1493 = vshll.u32 %v1379, 16
      %v1495 = vrot.slane %v1493, 1
      %v1496 = vor.u32 %v1491, %v1495
      %v1498 = vshll.u32 %v1380, 16
      %v1500 = vrot.slane %v1498, 1
      %v1501 = vsel %vm1405, %v1496, %v1500
      %v1503 = vshrl.u32 %v1381, 16
      %v1505 = vshll.u32 %v1381, 16
      %v1507 = vrot.slane %v1505, 1
      %v1508 = vor.u32 %v1503, %v1507
      %v1510 = vshll.u32 %v1382, 16
      %v1512 = vrot.slane %v1510, 1
      %v1513 = vsel %vm1405, %v1508, %v1512
      %v1515 = vshrl.u32 %v1383, 16
      %v1517 = vshll.u32 %v1383, 16
      %v1519 = vrot.slane %v1517, 1
      %v1520 = vor.u32 %v1515, %v1519
      %v1522 = vshll.u32 %v1384, 16
      %v1524 = vrot.slane %v1522, 1
      %v1525 = vsel %vm1405, %v1520, %v1524
      %v1527 = vshrl.u32 %v1385, 16
      %v1529 = vshll.u32 %v1385, 16
      %v1531 = vrot.slane %v1529, 1
      %v1532 = vor.u32 %v1527, %v1531
      %v1534 = vshll.u32 %v1386, 16
      %v1536 = vrot.slane %v1534, 1
      %v1537 = vsel %vm1405, %v1532, %v1536
      %v1539 = vshrl.u32 %v1387, 16
      %v1541 = vshll.u32 %v1387, 16
      %v1543 = vrot.slane %v1541, 1
      %v1544 = vor.u32 %v1539, %v1543
      %v1546 = vshll.u32 %v1388, 16
      %v1548 = vrot.slane %v1546, 1
      %v1549 = vsel %vm1405, %v1544, %v1548
      %v1551 = vshrl.u32 %v1389, 16
      %v1553 = vshll.u32 %v1389, 16
      %v1555 = vrot.slane %v1553, 1
      %v1556 = vor.u32 %v1551, %v1555
      %v1558 = vshll.u32 %v1390, 16
      %v1560 = vrot.slane %v1558, 1
      %v1561 = vsel %vm1405, %v1556, %v1560
      %v1563 = vshrl.u32 %v1391, 16
      %v1565 = vshll.u32 %v1391, 16
      %v1567 = vrot.slane %v1565, 1
      %v1568 = vor.u32 %v1563, %v1567
      %v1570 = vshll.u32 %v1392, 16
      %v1572 = vrot.slane %v1570, 1
      %v1573 = vsel %vm1405, %v1568, %v1572
      %v1575 = vshrl.u32 %v1393, 16
      %v1577 = vshll.u32 %v1393, 16
      %v1579 = vrot.slane %v1577, 1
      %v1580 = vor.u32 %v1575, %v1579
      %v1582 = vshll.u32 %v1394, 16
      %v1584 = vrot.slane %v1582, 1
      %v1585 = vsel %vm1405, %v1580, %v1584
      %v1587 = vshrl.u32 %v1395, 16
      %v1589 = vshll.u32 %v1395, 16
      %v1591 = vrot.slane %v1589, 1
      %v1592 = vor.u32 %v1587, %v1591
      %v1594 = vshll.u32 %v1396, 16
      %v1596 = vrot.slane %v1594, 1
      %v1597 = vsel %vm1405, %v1592, %v1596
      %v1599 = vshrl.u32 %v1397, 16
      %v1601 = vshll.u32 %v1397, 16
      %v1603 = vrot.slane %v1601, 1
      %v1604 = vor.u32 %v1599, %v1603
      %v1606 = vshll.u32 %v1398, 16
      %v1608 = vrot.slane %v1606, 1
      %v1609 = vsel %vm1405, %v1604, %v1608
      %v1611 = vshrl.u32 %v1399, 16
      %v1613 = vshll.u32 %v1399, 16
      %v1615 = vrot.slane %v1613, 1
      %v1616 = vor.u32 %v1611, %v1615
      %v1618 = vshll.u32 %v1400, 16
      %v1620 = vrot.slane %v1618, 1
      %v1621 = vsel %vm1405, %v1616, %v1620
      %v1623 = vshrl.u32 %v1401, 16
      %v1625 = vshll.u32 %v1401, 16
      %v1627 = vrot.slane %v1625, 1
      %v1628 = vor.u32 %v1623, %v1627
      %v1630 = vshll.u32 %v1402, 16
      %v1632 = vrot.slane %v1630, 1
      %v1633 = vsel %vm1405, %v1628, %v1632
      %v1635 = vshrl.u32 %v1403, 16
      %v1637 = vshll.u32 %v1403, 16
      %v1639 = vrot.slane %v1637, 1
      %v1640 = vor.u32 %v1635, %v1639
      %v1642 = vshll.u32 %v1404, 16
      %v1644 = vrot.slane %v1642, 1
      %v1645 = vsel %vm1405, %v1640, %v1644
      %1646 = vrot.lane.b32.xlu0 %v1417, 8
      %v1647 = vpop.permute.xlu0 %1646
      %1648 = vrot.lane.b32.xlu0 %v1429, 8
      %v1649 = vpop.permute.xlu0 %1648
      %1650 = vrot.lane.b32.xlu0 %v1441, 8
      %v1651 = vpop.permute.xlu0 %1650
      %1652 = vrot.lane.b32.xlu0 %v1453, 8
      %v1653 = vpop.permute.xlu0 %1652
      %1654 = vrot.lane.b32.xlu0 %v1465, 8
      %v1655 = vpop.permute.xlu0 %1654
      %1656 = vrot.lane.b32.xlu0 %v1477, 8
      %v1657 = vpop.permute.xlu0 %1656
      %1658 = vrot.lane.b32.xlu0 %v1489, 8
      %v1659 = vpop.permute.xlu0 %1658
      %1660 = vrot.lane.b32.xlu0 %v1501, 8
      %v1661 = vpop.permute.xlu0 %1660
      %1662 = vrot.lane.b32.xlu0 %v1513, 8
      %v1663 = vpop.permute.xlu0 %1662
      %1664 = vrot.lane.b32.xlu0 %v1525, 8
      %v1665 = vpop.permute.xlu0 %1664
      %1666 = vrot.lane.b32.xlu0 %v1537, 8
      %v1667 = vpop.permute.xlu0 %1666
      %1668 = vrot.lane.b32.xlu0 %v1549, 8
      %v1669 = vpop.permute.xlu0 %1668
      %1670 = vrot.lane.b32.xlu0 %v1561, 8
      %v1671 = vpop.permute.xlu0 %1670
      %1672 = vrot.lane.b32.xlu0 %v1573, 8
      %v1673 = vpop.permute.xlu0 %1672
      %1674 = vrot.lane.b32.xlu0 %v1585, 8
      %v1675 = vpop.permute.xlu0 %1674
      %1676 = vrot.lane.b32.xlu0 %v1597, 8
      %v1677 = vpop.permute.xlu0 %1676
      %1678 = vrot.lane.b32.xlu0 %v1609, 8
      %v1679 = vpop.permute.xlu0 %1678
      %1680 = vrot.lane.b32.xlu0 %v1621, 8
      %v1681 = vpop.permute.xlu0 %1680
      %1682 = vrot.lane.b32.xlu0 %v1633, 8
      %v1683 = vpop.permute.xlu0 %1682
      %1684 = vrot.lane.b32.xlu0 %v1645, 8
      %v1685 = vpop.permute.xlu0 %1684
      %vm1726 = vcmask 1046528
      %v1727 = vrot.slane %v1365, 1
      %v1728 = vrot.slane %v1366, 1
      %v1729 = vsel %vm1726, %v1727, %v1728
      %v1730 = vrot.slane %v1367, 1
      %v1731 = vrot.slane %v1368, 1
      %v1732 = vsel %vm1726, %v1730, %v1731
      %v1733 = vrot.slane %v1369, 1
      %v1734 = vrot.slane %v1370, 1
      %v1735 = vsel %vm1726, %v1733, %v1734
      %v1736 = vrot.slane %v1371, 1
      %v1737 = vrot.slane %v1372, 1
      %v1738 = vsel %vm1726, %v1736, %v1737
      %v1739 = vrot.slane %v1373, 1
      %v1740 = vrot.slane %v1374, 1
      %v1741 = vsel %vm1726, %v1739, %v1740
      %v1742 = vrot.slane %v1375, 1
      %v1743 = vrot.slane %v1376, 1
      %v1744 = vsel %vm1726, %v1742, %v1743
      %v1745 = vrot.slane %v1377, 1
      %v1746 = vrot.slane %v1378, 1
      %v1747 = vsel %vm1726, %v1745, %v1746
      %v1748 = vrot.slane %v1379, 1
      %v1749 = vrot.slane %v1380, 1
      %v1750 = vsel %vm1726, %v1748, %v1749
      %v1751 = vrot.slane %v1381, 1
      %v1752 = vrot.slane %v1382, 1
      %v1753 = vsel %vm1726, %v1751, %v1752
      %v1754 = vrot.slane %v1383, 1
      %v1755 = vrot.slane %v1384, 1
      %v1756 = vsel %vm1726, %v1754, %v1755
      %v1757 = vrot.slane %v1385, 1
      %v1758 = vrot.slane %v1386, 1
      %v1759 = vsel %vm1726, %v1757, %v1758
      %v1760 = vrot.slane %v1387, 1
      %v1761 = vrot.slane %v1388, 1
      %v1762 = vsel %vm1726, %v1760, %v1761
      %v1763 = vrot.slane %v1389, 1
      %v1764 = vrot.slane %v1390, 1
      %v1765 = vsel %vm1726, %v1763, %v1764
      %v1766 = vrot.slane %v1391, 1
      %v1767 = vrot.slane %v1392, 1
      %v1768 = vsel %vm1726, %v1766, %v1767
      %v1769 = vrot.slane %v1393, 1
      %v1770 = vrot.slane %v1394, 1
      %v1771 = vsel %vm1726, %v1769, %v1770
      %v1772 = vrot.slane %v1395, 1
      %v1773 = vrot.slane %v1396, 1
      %v1774 = vsel %vm1726, %v1772, %v1773
      %v1775 = vrot.slane %v1397, 1
      %v1776 = vrot.slane %v1398, 1
      %v1777 = vsel %vm1726, %v1775, %v1776
      %v1778 = vrot.slane %v1399, 1
      %v1779 = vrot.slane %v1400, 1
      %v1780 = vsel %vm1726, %v1778, %v1779
      %v1781 = vrot.slane %v1401, 1
      %v1782 = vrot.slane %v1402, 1
      %v1783 = vsel %vm1726, %v1781, %v1782
      %v1784 = vrot.slane %v1403, 1
      %v1785 = vrot.slane %v1404, 1
      %v1786 = vsel %vm1726, %v1784, %v1785
      %1787 = vrot.lane.b32.xlu0 %v1729, 16
      %v1788 = vpop.permute.xlu0 %1787
      %1789 = vrot.lane.b32.xlu0 %v1732, 16
      %v1790 = vpop.permute.xlu0 %1789
      %1791 = vrot.lane.b32.xlu0 %v1735, 16
      %v1792 = vpop.permute.xlu0 %1791
      %1793 = vrot.lane.b32.xlu0 %v1738, 16
      %v1794 = vpop.permute.xlu0 %1793
      %1795 = vrot.lane.b32.xlu0 %v1741, 16
      %v1796 = vpop.permute.xlu0 %1795
      %1797 = vrot.lane.b32.xlu0 %v1744, 16
      %v1798 = vpop.permute.xlu0 %1797
      %1799 = vrot.lane.b32.xlu0 %v1747, 16
      %v1800 = vpop.permute.xlu0 %1799
      %1801 = vrot.lane.b32.xlu0 %v1750, 16
      %v1802 = vpop.permute.xlu0 %1801
      %1803 = vrot.lane.b32.xlu0 %v1753, 16
      %v1804 = vpop.permute.xlu0 %1803
      %1805 = vrot.lane.b32.xlu0 %v1756, 16
      %v1806 = vpop.permute.xlu0 %1805
      %1807 = vrot.lane.b32.xlu0 %v1759, 16
      %v1808 = vpop.permute.xlu0 %1807
      %1809 = vrot.lane.b32.xlu0 %v1762, 16
      %v1810 = vpop.permute.xlu0 %1809
      %1811 = vrot.lane.b32.xlu0 %v1765, 16
      %v1812 = vpop.permute.xlu0 %1811
      %1813 = vrot.lane.b32.xlu0 %v1768, 16
      %v1814 = vpop.permute.xlu0 %1813
      %1815 = vrot.lane.b32.xlu0 %v1771, 16
      %v1816 = vpop.permute.xlu0 %1815
      %1817 = vrot.lane.b32.xlu0 %v1774, 16
      %v1818 = vpop.permute.xlu0 %1817
      %1819 = vrot.lane.b32.xlu0 %v1777, 16
      %v1820 = vpop.permute.xlu0 %1819
      %1821 = vrot.lane.b32.xlu0 %v1780, 16
      %v1822 = vpop.permute.xlu0 %1821
      %1823 = vrot.lane.b32.xlu0 %v1783, 16
      %v1824 = vpop.permute.xlu0 %1823
      %1825 = vrot.lane.b32.xlu0 %v1786, 16
      %v1826 = vpop.permute.xlu0 %1825
      %v1828 = vsel %vm1264, %v1365, %v1647
      %v1830 = vsel %vm1264, %v1367, %v1649
      %v1832 = vsel %vm1264, %v1369, %v1651
      %v1834 = vsel %vm1264, %v1371, %v1653
      %v1836 = vsel %vm1264, %v1373, %v1655
      %v1838 = vsel %vm1264, %v1375, %v1657
      %v1840 = vsel %vm1264, %v1377, %v1659
      %v1842 = vsel %vm1264, %v1379, %v1661
      %v1844 = vsel %vm1264, %v1381, %v1663
      %v1846 = vsel %vm1264, %v1383, %v1665
      %v1848 = vsel %vm1264, %v1385, %v1667
      %v1850 = vsel %vm1264, %v1387, %v1669
      %v1852 = vsel %vm1264, %v1389, %v1671
      %v1854 = vsel %vm1264, %v1391, %v1673
      %v1856 = vsel %vm1264, %v1393, %v1675
      %v1858 = vsel %vm1264, %v1395, %v1677
      %v1860 = vsel %vm1264, %v1397, %v1679
      %v1862 = vsel %vm1264, %v1399, %v1681
      %v1864 = vsel %vm1264, %v1401, %v1683
      %v1866 = vsel %vm1264, %v1403, %v1685
      %vm1867 = vcmask 130048
      %v1869 = vsel %vm1867, %v1828, %v1788
      %v1871 = vsel %vm1867, %v1830, %v1790
      %v1873 = vsel %vm1867, %v1832, %v1792
      %v1875 = vsel %vm1867, %v1834, %v1794
      %v1877 = vsel %vm1867, %v1836, %v1796
      %v1879 = vsel %vm1867, %v1838, %v1798
      %v1881 = vsel %vm1867, %v1840, %v1800
      %v1883 = vsel %vm1867, %v1842, %v1802
      %v1885 = vsel %vm1867, %v1844, %v1804
      %v1887 = vsel %vm1867, %v1846, %v1806
      %v1889 = vsel %vm1867, %v1848, %v1808
      %v1891 = vsel %vm1867, %v1850, %v1810
      %v1893 = vsel %vm1867, %v1852, %v1812
      %v1895 = vsel %vm1867, %v1854, %v1814
      %v1897 = vsel %vm1867, %v1856, %v1816
      %v1899 = vsel %vm1867, %v1858, %v1818
      %v1901 = vsel %vm1867, %v1860, %v1820
      %v1903 = vsel %vm1867, %v1862, %v1822
      %v1905 = vsel %vm1867, %v1864, %v1824
      %v1907 = vsel %vm1867, %v1866, %v1826
      %v1908 = vld [vmem:[%s5] sm:$0x1]
      %v1909 = vld [vmem:[%s4] sm:$0xf]
      %v1910 = vld [vmem:[%s4 + $0x4] sm:$0xf]
      %v1911 = vld [vmem:[%s4 + $0x8] sm:$0xf]
      %v1915 = vunpack.c.l.b16 %v1909
      %v1916 = vunpack.c.l.b16 %v1910
      %v1917 = vunpack.c.l.b16 %v1911
      %v1918 = vpack.c.b16 %v1916, %v1915
      %v1919 = vpack.c.b16 %v1917, %v1917
      %vm1921 = vcmask 195584
      %v1922 = vsel %vm1921, %v1869, 0
      %v1924 = vsel %vm1921, %v1871, 0
      %v1926 = vsel %vm1921, %v1873, 0
      %v1928 = vsel %vm1921, %v1875, 0
      %v1930 = vsel %vm1921, %v1877, 0
      %v1932 = vsel %vm1921, %v1879, 0
      %v1934 = vsel %vm1921, %v1881, 0
      %v1936 = vsel %vm1921, %v1883, 0
      %v1938 = vsel %vm1921, %v1885, 0
      %v1940 = vsel %vm1921, %v1887, 0
      %v1942 = vsel %vm1921, %v1889, 0
      %v1944 = vsel %vm1921, %v1891, 0
      %v1946 = vsel %vm1921, %v1893, 0
      %v1948 = vsel %vm1921, %v1895, 0
      %v1950 = vsel %vm1921, %v1897, 0
      %v1952 = vsel %vm1921, %v1899, 0
      %v1954 = vsel %vm1921, %v1901, 0
      %v1956 = vsel %vm1921, %v1903, 0
      %v1959 = vsel %vm642, %v1919, 0
      %1961 = vmatprep.subr.bf16.mxu0 0
      %1962 = vmatpush1.bf16.msra.mxu0 %v1918
      %1963 = vmatprep.subr.bf16.mxu0 0
      %1964 = vmatpush1.bf16.msra.mxu0 %v1959
      %1965 = vmatprep.subr.bf16.mxu0 0
      %1966 = vmatpush1.bf16.msra.mxu0 0
      %1967 = vmatprep.subr.bf16.mxu0 0
      %1968 = vmatpush1.bf16.msra.mxu0 0
      %1969 = vmatprep.subr.bf16.mxu0 0
      %1970 = vmatpush1.bf16.msra.mxu0 0
      %1971 = vmatprep.subr.bf16.mxu0 0
      %1972 = vmatpush1.bf16.msra.mxu0 0
      %1973 = vmatprep.subr.bf16.mxu0 0
      %1974 = vmatpush1.bf16.msra.mxu0 0
      %1975 = vmatprep.subr.bf16.mxu0 0
      %1976 = vmatpush1.bf16.msra.mxu0 0
      %1977 = vmatprep.subr.bf16.mxu0 0
      %1978 = vmatpush1.bf16.msra.mxu0 0
      %1979 = vmatprep.subr.bf16.mxu0 0
      %1980 = vmatpush1.bf16.msra.mxu0 0
      %1981 = vmatprep.subr.bf16.mxu0 0
      %1982 = vmatpush1.bf16.msra.mxu0 0
      %1983 = vmatprep.subr.bf16.mxu0 0
      %1984 = vmatpush1.bf16.msra.mxu0 0
      %1985 = vmatprep.subr.bf16.mxu0 0
      %1986 = vmatpush1.bf16.msra.mxu0 0
      %1987 = vmatprep.subr.bf16.mxu0 0
      %1988 = vmatpush1.bf16.msra.mxu0 0
      %1989 = vmatprep.subr.bf16.mxu0 0
      %1990 = vmatpush1.bf16.msra.mxu0 0
      %1991 = vmatprep.subr.bf16.mxu0 0
      %1992 = vmatpush1.bf16.msra.mxu0 0
      %1993 = vmatprep.mubr.bf16.mxu0 0
      %1994 = vmatmul.mubr.bf16.gmra.mrb[0].mxu0 %v1922
      %v1995 = vpop.f32.mrb[0].mxu0
      %v1996 = vadd.f32 0.0, %v1995
      %v1997 = vpop.f32.mrb[0].mxu0
      %v1998 = vpop.f32.mrb[0].mxu0
      %v1999 = vadd.f32 0.0, %v1998
      %v2000 = vpop.f32.mrb[0].mxu0
      %2001 = vmatprep.mubr.bf16.mxu0 0
      %2002 = vmatmul.mubr.bf16.gmra.mrb[0].mxu0 %v1924
      %v2003 = vpop.f32.mrb[0].mxu0
      %v2004 = vadd.f32 0.0, %v2003
      %v2005 = vpop.f32.mrb[0].mxu0
      %v2006 = vpop.f32.mrb[0].mxu0
      %v2007 = vadd.f32 0.0, %v2006
      %v2008 = vpop.f32.mrb[0].mxu0
      %2009 = vmatprep.mubr.bf16.mxu0 0
      %2010 = vmatmul.mubr.bf16.gmra.mrb[0].mxu0 %v1926
      %v2011 = vpop.f32.mrb[0].mxu0
      %v2012 = vadd.f32 0.0, %v2011
      %v2013 = vpop.f32.mrb[0].mxu0
      %v2014 = vpop.f32.mrb[0].mxu0
      %v2015 = vadd.f32 0.0, %v2014
      %v2016 = vpop.f32.mrb[0].mxu0
      %2017 = vmatprep.mubr.bf16.mxu0 0
      %2018 = vmatmul.mubr.bf16.gmra.mrb[0].mxu0 %v1928
      %v2019 = vpop.f32.mrb[0].mxu0
      %v2020 = vadd.f32 0.0, %v2019
      %v2021 = vpop.f32.mrb[0].mxu0
      %v2022 = vpop.f32.mrb[0].mxu0
      %v2023 = vadd.f32 0.0, %v2022
      %v2024 = vpop.f32.mrb[0].mxu0
      %2025 = vmatprep.mubr.bf16.mxu0 0
      %2026 = vmatmul.mubr.bf16.gmra.mrb[0].mxu0 %v1930
      %v2027 = vpop.f32.mrb[0].mxu0
      %v2028 = vadd.f32 0.0, %v2027
      %v2029 = vpop.f32.mrb[0].mxu0
      %v2030 = vpop.f32.mrb[0].mxu0
      %v2031 = vadd.f32 0.0, %v2030
      %v2032 = vpop.f32.mrb[0].mxu0
      %2033 = vmatprep.mubr.bf16.mxu0 0
      %2034 = vmatmul.mubr.bf16.gmra.mrb[0].mxu0 %v1932
      %v2035 = vpop.f32.mrb[0].mxu0
      %v2036 = vadd.f32 0.0, %v2035
      %v2037 = vpop.f32.mrb[0].mxu0
      %v2038 = vpop.f32.mrb[0].mxu0
      %v2039 = vadd.f32 0.0, %v2038
      %v2040 = vpop.f32.mrb[0].mxu0
      %2041 = vmatprep.mubr.bf16.mxu0 0
      %2042 = vmatmul.mubr.bf16.gmra.mrb[0].mxu0 %v1934
      %v2043 = vpop.f32.mrb[0].mxu0
      %v2044 = vadd.f32 0.0, %v2043
      %v2045 = vpop.f32.mrb[0].mxu0
      %v2046 = vpop.f32.mrb[0].mxu0
      %v2047 = vadd.f32 0.0, %v2046
      %v2048 = vpop.f32.mrb[0].mxu0
      %2049 = vmatprep.mubr.bf16.mxu0 0
      %2050 = vmatmul.mubr.bf16.gmra.mrb[0].mxu0 %v1936
      %v2051 = vpop.f32.mrb[0].mxu0
      %v2052 = vadd.f32 0.0, %v2051
      %v2053 = vpop.f32.mrb[0].mxu0
      %v2054 = vpop.f32.mrb[0].mxu0
      %v2055 = vadd.f32 0.0, %v2054
      %v2056 = vpop.f32.mrb[0].mxu0
      %2057 = vmatprep.mubr.bf16.mxu0 0
      %2058 = vmatmul.mubr.bf16.gmra.mrb[0].mxu0 %v1938
      %v2059 = vpop.f32.mrb[0].mxu0
      %v2060 = vadd.f32 0.0, %v2059
      %v2061 = vpop.f32.mrb[0].mxu0
      %v2062 = vpop.f32.mrb[0].mxu0
      %v2063 = vadd.f32 0.0, %v2062
      %v2064 = vpop.f32.mrb[0].mxu0
      %2065 = vmatprep.mubr.bf16.mxu0 0
      %2066 = vmatmul.mubr.bf16.gmra.mrb[0].mxu0 %v1940
      %v2067 = vpop.f32.mrb[0].mxu0
      %v2068 = vadd.f32 0.0, %v2067
      %v2069 = vpop.f32.mrb[0].mxu0
      %v2070 = vpop.f32.mrb[0].mxu0
      %v2071 = vadd.f32 0.0, %v2070
      %v2072 = vpop.f32.mrb[0].mxu0
      %2073 = vmatprep.mubr.bf16.mxu0 0
      %2074 = vmatmul.mubr.bf16.gmra.mrb[0].mxu0 %v1942
      %v2075 = vpop.f32.mrb[0].mxu0
      %v2076 = vadd.f32 0.0, %v2075
      %v2077 = vpop.f32.mrb[0].mxu0
      %v2078 = vpop.f32.mrb[0].mxu0
      %v2079 = vadd.f32 0.0, %v2078
      %v2080 = vpop.f32.mrb[0].mxu0
      %2081 = vmatprep.mubr.bf16.mxu0 0
      %2082 = vmatmul.mubr.bf16.gmra.mrb[0].mxu0 %v1944
      %v2083 = vpop.f32.mrb[0].mxu0
      %v2084 = vadd.f32 0.0, %v2083
      %v2085 = vpop.f32.mrb[0].mxu0
      %v2086 = vpop.f32.mrb[0].mxu0
      %v2087 = vadd.f32 0.0, %v2086
      %v2088 = vpop.f32.mrb[0].mxu0
      %2089 = vmatprep.mubr.bf16.mxu0 0
      %2090 = vmatmul.mubr.bf16.gmra.mrb[0].mxu0 %v1946
      %v2091 = vpop.f32.mrb[0].mxu0
      %v2092 = vadd.f32 0.0, %v2091
      %v2093 = vpop.f32.mrb[0].mxu0
      %v2094 = vpop.f32.mrb[0].mxu0
      %v2095 = vadd.f32 0.0, %v2094
      %v2096 = vpop.f32.mrb[0].mxu0
      %2097 = vmatprep.mubr.bf16.mxu0 0
      %2098 = vmatmul.mubr.bf16.gmra.mrb[0].mxu0 %v1948
      %v2099 = vpop.f32.mrb[0].mxu0
      %v2100 = vadd.f32 0.0, %v2099
      %v2101 = vpop.f32.mrb[0].mxu0
      %v2102 = vpop.f32.mrb[0].mxu0
      %v2103 = vadd.f32 0.0, %v2102
      %v2104 = vpop.f32.mrb[0].mxu0
      %2105 = vmatprep.mubr.bf16.mxu0 0
      %2106 = vmatmul.mubr.bf16.gmra.mrb[0].mxu0 %v1950
      %v2107 = vpop.f32.mrb[0].mxu0
      %v2108 = vadd.f32 0.0, %v2107
      %v2109 = vpop.f32.mrb[0].mxu0
      %v2110 = vpop.f32.mrb[0].mxu0
      %v2111 = vadd.f32 0.0, %v2110
      %v2112 = vpop.f32.mrb[0].mxu0
      %2113 = vmatprep.mubr.bf16.mxu0 0
      %2114 = vmatmul.mubr.bf16.gmra.mrb[0].mxu0 %v1952
      %v2115 = vpop.f32.mrb[0].mxu0
      %v2116 = vadd.f32 0.0, %v2115
      %v2117 = vpop.f32.mrb[0].mxu0
      %v2118 = vpop.f32.mrb[0].mxu0
      %v2119 = vadd.f32 0.0, %v2118
      %v2120 = vpop.f32.mrb[0].mxu0
      %2121 = vmatprep.mubr.bf16.mxu0 0
      %2122 = vmatmul.mubr.bf16.gmra.mrb[0].mxu0 %v1954
      %v2123 = vpop.f32.mrb[0].mxu0
      %v2124 = vadd.f32 0.0, %v2123
      %v2125 = vpop.f32.mrb[0].mxu0
      %v2126 = vpop.f32.mrb[0].mxu0
      %v2127 = vadd.f32 0.0, %v2126
      %v2128 = vpop.f32.mrb[0].mxu0
      %2129 = vmatprep.mubr.bf16.mxu0 0
      %2130 = vmatmul.mubr.bf16.gmra.mrb[0].mxu0 %v1956
      %v2131 = vpop.f32.mrb[0].mxu0
      %v2132 = vadd.f32 0.0, %v2131
      %v2133 = vpop.f32.mrb[0].mxu0
      %v2134 = vpop.f32.mrb[0].mxu0
      %v2135 = vadd.f32 0.0, %v2134
      %v2136 = vpop.f32.mrb[0].mxu0
      %2137 = vdwg.mxu0
      %v2139 = vlaneseq
      %v2140 = vshrl.u32 %v2139, 7
      %v2141 = vsub.s32 0, %v2140
      %v2142 = vrot.slane %v1908, %v2141
      %v2144 = vadd.f32 %v2142, %v1996
      %v2145 = vadd.f32 %v2142, %v1999
      %v2146 = vadd.f32 %v2142, %v2004
      %v2147 = vadd.f32 %v2142, %v2007
      %v2148 = vadd.f32 %v2142, %v2012
      %v2149 = vadd.f32 %v2142, %v2015
      %v2150 = vadd.f32 %v2142, %v2020
      %v2151 = vadd.f32 %v2142, %v2023
      %v2152 = vadd.f32 %v2142, %v2028
      %v2153 = vadd.f32 %v2142, %v2031
      %v2154 = vadd.f32 %v2142, %v2036
      %v2155 = vadd.f32 %v2142, %v2039
      %v2156 = vadd.f32 %v2142, %v2044
      %v2157 = vadd.f32 %v2142, %v2047
      %v2158 = vadd.f32 %v2142, %v2052
      %v2159 = vadd.f32 %v2142, %v2055
      %v2160 = vadd.f32 %v2142, %v2060
      %v2161 = vadd.f32 %v2142, %v2063
      %v2162 = vadd.f32 %v2142, %v2068
      %v2163 = vadd.f32 %v2142, %v2071
      %v2164 = vadd.f32 %v2142, %v2076
      %v2165 = vadd.f32 %v2142, %v2079
      %v2166 = vadd.f32 %v2142, %v2084
      %v2167 = vadd.f32 %v2142, %v2087
      %v2168 = vadd.f32 %v2142, %v2092
      %v2169 = vadd.f32 %v2142, %v2095
      %v2170 = vadd.f32 %v2142, %v2100
      %v2171 = vadd.f32 %v2142, %v2103
      %v2172 = vadd.f32 %v2142, %v2108
      %v2173 = vadd.f32 %v2142, %v2111
      %v2174 = vadd.f32 %v2142, %v2116
      %v2175 = vadd.f32 %v2142, %v2119
      %v2176 = vadd.f32 %v2142, %v2124
      %v2177 = vadd.f32 %v2142, %v2127
      %v2178 = vadd.f32 %v2142, %v2132
      %v2179 = vadd.f32 %v2142, %v2135
      %s2180 = scalar_lea.vmem %s4, 12
      %v2181 = vld [vmem:[%s2180] sm:$0xf]
      %v2182 = vld [vmem:[%s2180 + $0x4] sm:$0xf]
      %v2183 = vld [vmem:[%s2180 + $0x8] sm:$0xf]
      %v2187 = vunpack.c.l.b16 %v2181
      %v2188 = vunpack.c.l.b16 %v2182
      %v2189 = vunpack.c.l.b16 %v2183
      %v2190 = vpack.c.b16 %v2188, %v2187
      %v2191 = vpack.c.b16 %v2189, %v2189
      %v2193 = vsel %vm1921, %v1905, 0
      %v2196 = vsel %vm642, %v2191, 0
      %2198 = vmatprep.subr.bf16.mxu0 0
      %2199 = vmatpush1.bf16.msra.mxu0 %v2190
      %2200 = vmatprep.subr.bf16.mxu0 0
      %2201 = vmatpush1.bf16.msra.mxu0 %v2196
      %2202 = vmatprep.subr.bf16.mxu0 0
      %2203 = vmatpush1.bf16.msra.mxu0 0
      %2204 = vmatprep.subr.bf16.mxu0 0
      %2205 = vmatpush1.bf16.msra.mxu0 0
      %2206 = vmatprep.subr.bf16.mxu0 0
      %2207 = vmatpush1.bf16.msra.mxu0 0
      %2208 = vmatprep.subr.bf16.mxu0 0
      %2209 = vmatpush1.bf16.msra.mxu0 0
      %2210 = vmatprep.subr.bf16.mxu0 0
      %2211 = vmatpush1.bf16.msra.mxu0 0
      %2212 = vmatprep.subr.bf16.mxu0 0
      %2213 = vmatpush1.bf16.msra.mxu0 0
      %2214 = vmatprep.subr.bf16.mxu0 0
      %2215 = vmatpush1.bf16.msra.mxu0 0
      %2216 = vmatprep.subr.bf16.mxu0 0
      %2217 = vmatpush1.bf16.msra.mxu0 0
      %2218 = vmatprep.subr.bf16.mxu0 0
      %2219 = vmatpush1.bf16.msra.mxu0 0
      %2220 = vmatprep.subr.bf16.mxu0 0
      %2221 = vmatpush1.bf16.msra.mxu0 0
      %2222 = vmatprep.subr.bf16.mxu0 0
      %2223 = vmatpush1.bf16.msra.mxu0 0
      %2224 = vmatprep.subr.bf16.mxu0 0
      %2225 = vmatpush1.bf16.msra.mxu0 0
      %2226 = vmatprep.subr.bf16.mxu0 0
      %2227 = vmatpush1.bf16.msra.mxu0 0
      %2228 = vmatprep.subr.bf16.mxu0 0
      %2229 = vmatpush1.bf16.msra.mxu0 0
      %2230 = vmatprep.mubr.bf16.mxu0 0
      %2231 = vmatmul.mubr.bf16.gmra.mrb[0].mxu0 %v1924
      %v2232 = vpop.f32.mrb[0].mxu0
      %v2233 = vadd.f32 0.0, %v2232
      %v2234 = vpop.f32.mrb[0].mxu0
      %v2235 = vpop.f32.mrb[0].mxu0
      %v2236 = vadd.f32 0.0, %v2235
      %v2237 = vpop.f32.mrb[0].mxu0
      %2238 = vmatprep.mubr.bf16.mxu0 0
      %2239 = vmatmul.mubr.bf16.gmra.mrb[0].mxu0 %v1926
      %v2240 = vpop.f32.mrb[0].mxu0
      %v2241 = vadd.f32 0.0, %v2240
      %v2242 = vpop.f32.mrb[0].mxu0
      %v2243 = vpop.f32.mrb[0].mxu0
      %v2244 = vadd.f32 0.0, %v2243
      %v2245 = vpop.f32.mrb[0].mxu0
      %2246 = vmatprep.mubr.bf16.mxu0 0
      %2247 = vmatmul.mubr.bf16.gmra.mrb[0].mxu0 %v1928
      %v2248 = vpop.f32.mrb[0].mxu0
      %v2249 = vadd.f32 0.0, %v2248
      %v2250 = vpop.f32.mrb[0].mxu0
      %v2251 = vpop.f32.mrb[0].mxu0
      %v2252 = vadd.f32 0.0, %v2251
      %v2253 = vpop.f32.mrb[0].mxu0
      %2254 = vmatprep.mubr.bf16.mxu0 0
      %2255 = vmatmul.mubr.bf16.gmra.mrb[0].mxu0 %v1930
      %v2256 = vpop.f32.mrb[0].mxu0
      %v2257 = vadd.f32 0.0, %v2256
      %v2258 = vpop.f32.mrb[0].mxu0
      %v2259 = vpop.f32.mrb[0].mxu0
      %v2260 = vadd.f32 0.0, %v2259
      %v2261 = vpop.f32.mrb[0].mxu0
      %2262 = vmatprep.mubr.bf16.mxu0 0
      %2263 = vmatmul.mubr.bf16.gmra.mrb[0].mxu0 %v1932
      %v2264 = vpop.f32.mrb[0].mxu0
      %v2265 = vadd.f32 0.0, %v2264
      %v2266 = vpop.f32.mrb[0].mxu0
      %v2267 = vpop.f32.mrb[0].mxu0
      %v2268 = vadd.f32 0.0, %v2267
      %v2269 = vpop.f32.mrb[0].mxu0
      %2270 = vmatprep.mubr.bf16.mxu0 0
      %2271 = vmatmul.mubr.bf16.gmra.mrb[0].mxu0 %v1934
      %v2272 = vpop.f32.mrb[0].mxu0
      %v2273 = vadd.f32 0.0, %v2272
      %v2274 = vpop.f32.mrb[0].mxu0
      %v2275 = vpop.f32.mrb[0].mxu0
      %v2276 = vadd.f32 0.0, %v2275
      %v2277 = vpop.f32.mrb[0].mxu0
      %2278 = vmatprep.mubr.bf16.mxu0 0
      %2279 = vmatmul.mubr.bf16.gmra.mrb[0].mxu0 %v1936
      %v2280 = vpop.f32.mrb[0].mxu0
      %v2281 = vadd.f32 0.0, %v2280
      %v2282 = vpop.f32.mrb[0].mxu0
      %v2283 = vpop.f32.mrb[0].mxu0
      %v2284 = vadd.f32 0.0, %v2283
      %v2285 = vpop.f32.mrb[0].mxu0
      %2286 = vmatprep.mubr.bf16.mxu0 0
      %2287 = vmatmul.mubr.bf16.gmra.mrb[0].mxu0 %v1938
      %v2288 = vpop.f32.mrb[0].mxu0
      %v2289 = vadd.f32 0.0, %v2288
      %v2290 = vpop.f32.mrb[0].mxu0
      %v2291 = vpop.f32.mrb[0].mxu0
      %v2292 = vadd.f32 0.0, %v2291
      %v2293 = vpop.f32.mrb[0].mxu0
      %2294 = vmatprep.mubr.bf16.mxu0 0
      %2295 = vmatmul.mubr.bf16.gmra.mrb[0].mxu0 %v1940
      %v2296 = vpop.f32.mrb[0].mxu0
      %v2297 = vadd.f32 0.0, %v2296
      %v2298 = vpop.f32.mrb[0].mxu0
      %v2299 = vpop.f32.mrb[0].mxu0
      %v2300 = vadd.f32 0.0, %v2299
      %v2301 = vpop.f32.mrb[0].mxu0
      %2302 = vmatprep.mubr.bf16.mxu0 0
      %2303 = vmatmul.mubr.bf16.gmra.mrb[0].mxu0 %v1942
      %v2304 = vpop.f32.mrb[0].mxu0
      %v2305 = vadd.f32 0.0, %v2304
      %v2306 = vpop.f32.mrb[0].mxu0
      %v2307 = vpop.f32.mrb[0].mxu0
      %v2308 = vadd.f32 0.0, %v2307
      %v2309 = vpop.f32.mrb[0].mxu0
      %2310 = vmatprep.mubr.bf16.mxu0 0
      %2311 = vmatmul.mubr.bf16.gmra.mrb[0].mxu0 %v1944
      %v2312 = vpop.f32.mrb[0].mxu0
      %v2313 = vadd.f32 0.0, %v2312
      %v2314 = vpop.f32.mrb[0].mxu0
      %v2315 = vpop.f32.mrb[0].mxu0
      %v2316 = vadd.f32 0.0, %v2315
      %v2317 = vpop.f32.mrb[0].mxu0
      %2318 = vmatprep.mubr.bf16.mxu0 0
      %2319 = vmatmul.mubr.bf16.gmra.mrb[0].mxu0 %v1946
      %v2320 = vpop.f32.mrb[0].mxu0
      %v2321 = vadd.f32 0.0, %v2320
      %v2322 = vpop.f32.mrb[0].mxu0
      %v2323 = vpop.f32.mrb[0].mxu0
      %v2324 = vadd.f32 0.0, %v2323
      %v2325 = vpop.f32.mrb[0].mxu0
      %2326 = vmatprep.mubr.bf16.mxu0 0
      %2327 = vmatmul.mubr.bf16.gmra.mrb[0].mxu0 %v1948
      %v2328 = vpop.f32.mrb[0].mxu0
      %v2329 = vadd.f32 0.0, %v2328
      %v2330 = vpop.f32.mrb[0].mxu0
      %v2331 = vpop.f32.mrb[0].mxu0
      %v2332 = vadd.f32 0.0, %v2331
      %v2333 = vpop.f32.mrb[0].mxu0
      %2334 = vmatprep.mubr.bf16.mxu0 0
      %2335 = vmatmul.mubr.bf16.gmra.mrb[0].mxu0 %v1950
      %v2336 = vpop.f32.mrb[0].mxu0
      %v2337 = vadd.f32 0.0, %v2336
      %v2338 = vpop.f32.mrb[0].mxu0
      %v2339 = vpop.f32.mrb[0].mxu0
      %v2340 = vadd.f32 0.0, %v2339
      %v2341 = vpop.f32.mrb[0].mxu0
      %2342 = vmatprep.mubr.bf16.mxu0 0
      %2343 = vmatmul.mubr.bf16.gmra.mrb[0].mxu0 %v1952
      %v2344 = vpop.f32.mrb[0].mxu0
      %v2345 = vadd.f32 0.0, %v2344
      %v2346 = vpop.f32.mrb[0].mxu0
      %v2347 = vpop.f32.mrb[0].mxu0
      %v2348 = vadd.f32 0.0, %v2347
      %v2349 = vpop.f32.mrb[0].mxu0
      %2350 = vmatprep.mubr.bf16.mxu0 0
      %2351 = vmatmul.mubr.bf16.gmra.mrb[0].mxu0 %v1954
      %v2352 = vpop.f32.mrb[0].mxu0
      %v2353 = vadd.f32 0.0, %v2352
      %v2354 = vpop.f32.mrb[0].mxu0
      %v2355 = vpop.f32.mrb[0].mxu0
      %v2356 = vadd.f32 0.0, %v2355
      %v2357 = vpop.f32.mrb[0].mxu0
      %2358 = vmatprep.mubr.bf16.mxu0 0
      %2359 = vmatmul.mubr.bf16.gmra.mrb[0].mxu0 %v1956
      %v2360 = vpop.f32.mrb[0].mxu0
      %v2361 = vadd.f32 0.0, %v2360
      %v2362 = vpop.f32.mrb[0].mxu0
      %v2363 = vpop.f32.mrb[0].mxu0
      %v2364 = vadd.f32 0.0, %v2363
      %v2365 = vpop.f32.mrb[0].mxu0
      %2366 = vmatprep.mubr.bf16.mxu0 0
      %2367 = vmatmul.mubr.bf16.gmra.mrb[0].mxu0 %v2193
      %v2368 = vpop.f32.mrb[0].mxu0
      %v2369 = vadd.f32 0.0, %v2368
      %v2370 = vpop.f32.mrb[0].mxu0
      %v2371 = vpop.f32.mrb[0].mxu0
      %v2372 = vadd.f32 0.0, %v2371
      %v2373 = vpop.f32.mrb[0].mxu0
      %2374 = vdwg.mxu0
      %v2375 = vadd.f32 %v2144, %v2233
      %v2376 = vadd.f32 %v2145, %v2236
      %v2377 = vadd.f32 %v2146, %v2241
      %v2378 = vadd.f32 %v2147, %v2244
      %v2379 = vadd.f32 %v2148, %v2249
      %v2380 = vadd.f32 %v2149, %v2252
      %v2381 = vadd.f32 %v2150, %v2257
      %v2382 = vadd.f32 %v2151, %v2260
      %v2383 = vadd.f32 %v2152, %v2265
      %v2384 = vadd.f32 %v2153, %v2268
      %v2385 = vadd.f32 %v2154, %v2273
      %v2386 = vadd.f32 %v2155, %v2276
      %v2387 = vadd.f32 %v2156, %v2281
      %v2388 = vadd.f32 %v2157, %v2284
      %v2389 = vadd.f32 %v2158, %v2289
      %v2390 = vadd.f32 %v2159, %v2292
      %v2391 = vadd.f32 %v2160, %v2297
      %v2392 = vadd.f32 %v2161, %v2300
      %v2393 = vadd.f32 %v2162, %v2305
      %v2394 = vadd.f32 %v2163, %v2308
      %v2395 = vadd.f32 %v2164, %v2313
      %v2396 = vadd.f32 %v2165, %v2316
      %v2397 = vadd.f32 %v2166, %v2321
      %v2398 = vadd.f32 %v2167, %v2324
      %v2399 = vadd.f32 %v2168, %v2329
      %v2400 = vadd.f32 %v2169, %v2332
      %v2401 = vadd.f32 %v2170, %v2337
      %v2402 = vadd.f32 %v2171, %v2340
      %v2403 = vadd.f32 %v2172, %v2345
      %v2404 = vadd.f32 %v2173, %v2348
      %v2405 = vadd.f32 %v2174, %v2353
      %v2406 = vadd.f32 %v2175, %v2356
      %v2407 = vadd.f32 %v2176, %v2361
      %v2408 = vadd.f32 %v2177, %v2364
      %v2409 = vadd.f32 %v2178, %v2369
      %v2410 = vadd.f32 %v2179, %v2372
      %s2411 = scalar_lea.vmem %s4, 24
      %v2412 = vld [vmem:[%s2411] sm:$0xf]
      %v2413 = vld [vmem:[%s2411 + $0x4] sm:$0xf]
      %v2414 = vld [vmem:[%s2411 + $0x8] sm:$0xf]
      %v2418 = vunpack.c.l.b16 %v2412
      %v2419 = vunpack.c.l.b16 %v2413
      %v2420 = vunpack.c.l.b16 %v2414
      %v2421 = vpack.c.b16 %v2419, %v2418
      %v2422 = vpack.c.b16 %v2420, %v2420
      %v2424 = vsel %vm1921, %v1907, 0
      %v2427 = vsel %vm642, %v2422, 0
      %2429 = vmatprep.subr.bf16.mxu0 0
      %2430 = vmatpush1.bf16.msra.mxu0 %v2421
      %2431 = vmatprep.subr.bf16.mxu0 0
      %2432 = vmatpush1.bf16.msra.mxu0 %v2427
      %2433 = vmatprep.subr.bf16.mxu0 0
      %2434 = vmatpush1.bf16.msra.mxu0 0
      %2435 = vmatprep.subr.bf16.mxu0 0
      %2436 = vmatpush1.bf16.msra.mxu0 0
      %2437 = vmatprep.subr.bf16.mxu0 0
      %2438 = vmatpush1.bf16.msra.mxu0 0
      %2439 = vmatprep.subr.bf16.mxu0 0
      %2440 = vmatpush1.bf16.msra.mxu0 0
      %2441 = vmatprep.subr.bf16.mxu0 0
      %2442 = vmatpush1.bf16.msra.mxu0 0
      %2443 = vmatprep.subr.bf16.mxu0 0
      %2444 = vmatpush1.bf16.msra.mxu0 0
      %2445 = vmatprep.subr.bf16.mxu0 0
      %2446 = vmatpush1.bf16.msra.mxu0 0
      %2447 = vmatprep.subr.bf16.mxu0 0
      %2448 = vmatpush1.bf16.msra.mxu0 0
      %2449 = vmatprep.subr.bf16.mxu0 0
      %2450 = vmatpush1.bf16.msra.mxu0 0
      %2451 = vmatprep.subr.bf16.mxu0 0
      %2452 = vmatpush1.bf16.msra.mxu0 0
      %2453 = vmatprep.subr.bf16.mxu0 0
      %2454 = vmatpush1.bf16.msra.mxu0 0
      %2455 = vmatprep.subr.bf16.mxu0 0
      %2456 = vmatpush1.bf16.msra.mxu0 0
      %2457 = vmatprep.subr.bf16.mxu0 0
      %2458 = vmatpush1.bf16.msra.mxu0 0
      %2459 = vmatprep.subr.bf16.mxu0 0
      %2460 = vmatpush1.bf16.msra.mxu0 0
      %2461 = vmatprep.mubr.bf16.mxu0 0
      %2462 = vmatmul.mubr.bf16.gmra.mrb[0].mxu0 %v1926
      %v2463 = vpop.f32.mrb[0].mxu0
      %v2464 = vadd.f32 0.0, %v2463
      %v2465 = vpop.f32.mrb[0].mxu0
      %v2466 = vpop.f32.mrb[0].mxu0
      %v2467 = vadd.f32 0.0, %v2466
      %v2468 = vpop.f32.mrb[0].mxu0
      %2469 = vmatprep.mubr.bf16.mxu0 0
      %2470 = vmatmul.mubr.bf16.gmra.mrb[0].mxu0 %v1928
      %v2471 = vpop.f32.mrb[0].mxu0
      %v2472 = vadd.f32 0.0, %v2471
      %v2473 = vpop.f32.mrb[0].mxu0
      %v2474 = vpop.f32.mrb[0].mxu0
      %v2475 = vadd.f32 0.0, %v2474
      %v2476 = vpop.f32.mrb[0].mxu0
      %2477 = vmatprep.mubr.bf16.mxu0 0
      %2478 = vmatmul.mubr.bf16.gmra.mrb[0].mxu0 %v1930
      %v2479 = vpop.f32.mrb[0].mxu0
      %v2480 = vadd.f32 0.0, %v2479
      %v2481 = vpop.f32.mrb[0].mxu0
      %v2482 = vpop.f32.mrb[0].mxu0
      %v2483 = vadd.f32 0.0, %v2482
      %v2484 = vpop.f32.mrb[0].mxu0
      %2485 = vmatprep.mubr.bf16.mxu0 0
      %2486 = vmatmul.mubr.bf16.gmra.mrb[0].mxu0 %v1932
      %v2487 = vpop.f32.mrb[0].mxu0
      %v2488 = vadd.f32 0.0, %v2487
      %v2489 = vpop.f32.mrb[0].mxu0
      %v2490 = vpop.f32.mrb[0].mxu0
      %v2491 = vadd.f32 0.0, %v2490
      %v2492 = vpop.f32.mrb[0].mxu0
      %2493 = vmatprep.mubr.bf16.mxu0 0
      %2494 = vmatmul.mubr.bf16.gmra.mrb[0].mxu0 %v1934
      %v2495 = vpop.f32.mrb[0].mxu0
      %v2496 = vadd.f32 0.0, %v2495
      %v2497 = vpop.f32.mrb[0].mxu0
      %v2498 = vpop.f32.mrb[0].mxu0
      %v2499 = vadd.f32 0.0, %v2498
      %v2500 = vpop.f32.mrb[0].mxu0
      %2501 = vmatprep.mubr.bf16.mxu0 0
      %2502 = vmatmul.mubr.bf16.gmra.mrb[0].mxu0 %v1936
      %v2503 = vpop.f32.mrb[0].mxu0
      %v2504 = vadd.f32 0.0, %v2503
      %v2505 = vpop.f32.mrb[0].mxu0
      %v2506 = vpop.f32.mrb[0].mxu0
      %v2507 = vadd.f32 0.0, %v2506
      %v2508 = vpop.f32.mrb[0].mxu0
      %2509 = vmatprep.mubr.bf16.mxu0 0
      %2510 = vmatmul.mubr.bf16.gmra.mrb[0].mxu0 %v1938
      %v2511 = vpop.f32.mrb[0].mxu0
      %v2512 = vadd.f32 0.0, %v2511
      %v2513 = vpop.f32.mrb[0].mxu0
      %v2514 = vpop.f32.mrb[0].mxu0
      %v2515 = vadd.f32 0.0, %v2514
      %v2516 = vpop.f32.mrb[0].mxu0
      %2517 = vmatprep.mubr.bf16.mxu0 0
      %2518 = vmatmul.mubr.bf16.gmra.mrb[0].mxu0 %v1940
      %v2519 = vpop.f32.mrb[0].mxu0
      %v2520 = vadd.f32 0.0, %v2519
      %v2521 = vpop.f32.mrb[0].mxu0
      %v2522 = vpop.f32.mrb[0].mxu0
      %v2523 = vadd.f32 0.0, %v2522
      %v2524 = vpop.f32.mrb[0].mxu0
      %2525 = vmatprep.mubr.bf16.mxu0 0
      %2526 = vmatmul.mubr.bf16.gmra.mrb[0].mxu0 %v1942
      %v2527 = vpop.f32.mrb[0].mxu0
      %v2528 = vadd.f32 0.0, %v2527
      %v2529 = vpop.f32.mrb[0].mxu0
      %v2530 = vpop.f32.mrb[0].mxu0
      %v2531 = vadd.f32 0.0, %v2530
      %v2532 = vpop.f32.mrb[0].mxu0
      %2533 = vmatprep.mubr.bf16.mxu0 0
      %2534 = vmatmul.mubr.bf16.gmra.mrb[0].mxu0 %v1944
      %v2535 = vpop.f32.mrb[0].mxu0
      %v2536 = vadd.f32 0.0, %v2535
      %v2537 = vpop.f32.mrb[0].mxu0
      %v2538 = vpop.f32.mrb[0].mxu0
      %v2539 = vadd.f32 0.0, %v2538
      %v2540 = vpop.f32.mrb[0].mxu0
      %2541 = vmatprep.mubr.bf16.mxu0 0
      %2542 = vmatmul.mubr.bf16.gmra.mrb[0].mxu0 %v1946
      %v2543 = vpop.f32.mrb[0].mxu0
      %v2544 = vadd.f32 0.0, %v2543
      %v2545 = vpop.f32.mrb[0].mxu0
      %v2546 = vpop.f32.mrb[0].mxu0
      %v2547 = vadd.f32 0.0, %v2546
      %v2548 = vpop.f32.mrb[0].mxu0
      %2549 = vmatprep.mubr.bf16.mxu0 0
      %2550 = vmatmul.mubr.bf16.gmra.mrb[0].mxu0 %v1948
      %v2551 = vpop.f32.mrb[0].mxu0
      %v2552 = vadd.f32 0.0, %v2551
      %v2553 = vpop.f32.mrb[0].mxu0
      %v2554 = vpop.f32.mrb[0].mxu0
      %v2555 = vadd.f32 0.0, %v2554
      %v2556 = vpop.f32.mrb[0].mxu0
      %2557 = vmatprep.mubr.bf16.mxu0 0
      %2558 = vmatmul.mubr.bf16.gmra.mrb[0].mxu0 %v1950
      %v2559 = vpop.f32.mrb[0].mxu0
      %v2560 = vadd.f32 0.0, %v2559
      %v2561 = vpop.f32.mrb[0].mxu0
      %v2562 = vpop.f32.mrb[0].mxu0
      %v2563 = vadd.f32 0.0, %v2562
      %v2564 = vpop.f32.mrb[0].mxu0
      %2565 = vmatprep.mubr.bf16.mxu0 0
      %2566 = vmatmul.mubr.bf16.gmra.mrb[0].mxu0 %v1952
      %v2567 = vpop.f32.mrb[0].mxu0
      %v2568 = vadd.f32 0.0, %v2567
      %v2569 = vpop.f32.mrb[0].mxu0
      %v2570 = vpop.f32.mrb[0].mxu0
      %v2571 = vadd.f32 0.0, %v2570
      %v2572 = vpop.f32.mrb[0].mxu0
      %2573 = vmatprep.mubr.bf16.mxu0 0
      %2574 = vmatmul.mubr.bf16.gmra.mrb[0].mxu0 %v1954
      %v2575 = vpop.f32.mrb[0].mxu0
      %v2576 = vadd.f32 0.0, %v2575
      %v2577 = vpop.f32.mrb[0].mxu0
      %v2578 = vpop.f32.mrb[0].mxu0
      %v2579 = vadd.f32 0.0, %v2578
      %v2580 = vpop.f32.mrb[0].mxu0
      %2581 = vmatprep.mubr.bf16.mxu0 0
      %2582 = vmatmul.mubr.bf16.gmra.mrb[0].mxu0 %v1956
      %v2583 = vpop.f32.mrb[0].mxu0
      %v2584 = vadd.f32 0.0, %v2583
      %v2585 = vpop.f32.mrb[0].mxu0
      %v2586 = vpop.f32.mrb[0].mxu0
      %v2587 = vadd.f32 0.0, %v2586
      %v2588 = vpop.f32.mrb[0].mxu0
      %2589 = vmatprep.mubr.bf16.mxu0 0
      %2590 = vmatmul.mubr.bf16.gmra.mrb[0].mxu0 %v2193
      %v2591 = vpop.f32.mrb[0].mxu0
      %v2592 = vadd.f32 0.0, %v2591
      %v2593 = vpop.f32.mrb[0].mxu0
      %v2594 = vpop.f32.mrb[0].mxu0
      %v2595 = vadd.f32 0.0, %v2594
      %v2596 = vpop.f32.mrb[0].mxu0
      %2597 = vmatprep.mubr.bf16.mxu0 0
      %2598 = vmatmul.mubr.bf16.gmra.mrb[0].mxu0 %v2424
      %v2599 = vpop.f32.mrb[0].mxu0
      %v2600 = vadd.f32 0.0, %v2599
      %v2601 = vpop.f32.mrb[0].mxu0
      %v2602 = vpop.f32.mrb[0].mxu0
      %v2603 = vadd.f32 0.0, %v2602
      %v2604 = vpop.f32.mrb[0].mxu0
      %2605 = vdwg.mxu0
      %v2606 = vadd.f32 %v2375, %v2464
      %v2607 = vadd.f32 %v2376, %v2467
      %v2608 = vadd.f32 %v2377, %v2472
      %v2609 = vadd.f32 %v2378, %v2475
      %v2610 = vadd.f32 %v2379, %v2480
      %v2611 = vadd.f32 %v2380, %v2483
      %v2612 = vadd.f32 %v2381, %v2488
      %v2613 = vadd.f32 %v2382, %v2491
      %v2614 = vadd.f32 %v2383, %v2496
      %v2615 = vadd.f32 %v2384, %v2499
      %v2616 = vadd.f32 %v2385, %v2504
      %v2617 = vadd.f32 %v2386, %v2507
      %v2618 = vadd.f32 %v2387, %v2512
      %v2619 = vadd.f32 %v2388, %v2515
      %v2620 = vadd.f32 %v2389, %v2520
      %v2621 = vadd.f32 %v2390, %v2523
      %v2622 = vadd.f32 %v2391, %v2528
      %v2623 = vadd.f32 %v2392, %v2531
      %v2624 = vadd.f32 %v2393, %v2536
      %v2625 = vadd.f32 %v2394, %v2539
      %v2626 = vadd.f32 %v2395, %v2544
      %v2627 = vadd.f32 %v2396, %v2547
      %v2628 = vadd.f32 %v2397, %v2552
      %v2629 = vadd.f32 %v2398, %v2555
      %v2630 = vadd.f32 %v2399, %v2560
      %v2631 = vadd.f32 %v2400, %v2563
      %v2632 = vadd.f32 %v2401, %v2568
      %v2633 = vadd.f32 %v2402, %v2571
      %v2634 = vadd.f32 %v2403, %v2576
      %v2635 = vadd.f32 %v2404, %v2579
      %v2636 = vadd.f32 %v2405, %v2584
      %v2637 = vadd.f32 %v2406, %v2587
      %v2638 = vadd.f32 %v2407, %v2592
      %v2639 = vadd.f32 %v2408, %v2595
      %v2640 = vadd.f32 %v2409, %v2600
      %v2641 = vadd.f32 %v2410, %v2603
      %v2642 = vmax.f32 %v2606, 0.0
      %v2643 = vmax.f32 %v2607, 0.0
      %v2644 = vmax.f32 %v2608, 0.0
      %v2645 = vmax.f32 %v2609, 0.0
      %v2646 = vmax.f32 %v2610, 0.0
      %v2647 = vmax.f32 %v2611, 0.0
      %v2648 = vmax.f32 %v2612, 0.0
      %v2649 = vmax.f32 %v2613, 0.0
      %v2650 = vmax.f32 %v2614, 0.0
      %v2651 = vmax.f32 %v2615, 0.0
      %v2652 = vmax.f32 %v2616, 0.0
      %v2653 = vmax.f32 %v2617, 0.0
      %v2654 = vmax.f32 %v2618, 0.0
      %v2655 = vmax.f32 %v2619, 0.0
      %v2656 = vmax.f32 %v2620, 0.0
      %v2657 = vmax.f32 %v2621, 0.0
      %v2658 = vmax.f32 %v2622, 0.0
      %v2659 = vmax.f32 %v2623, 0.0
      %v2660 = vmax.f32 %v2624, 0.0
      %v2661 = vmax.f32 %v2625, 0.0
      %v2662 = vmax.f32 %v2626, 0.0
      %v2663 = vmax.f32 %v2627, 0.0
      %v2664 = vmax.f32 %v2628, 0.0
      %v2665 = vmax.f32 %v2629, 0.0
      %v2666 = vmax.f32 %v2630, 0.0
      %v2667 = vmax.f32 %v2631, 0.0
      %v2668 = vmax.f32 %v2632, 0.0
      %v2669 = vmax.f32 %v2633, 0.0
      %v2670 = vmax.f32 %v2634, 0.0
      %v2671 = vmax.f32 %v2635, 0.0
      %v2672 = vmax.f32 %v2636, 0.0
      %v2673 = vmax.f32 %v2637, 0.0
      %v2674 = vmax.f32 %v2638, 0.0
      %v2675 = vmax.f32 %v2639, 0.0
      %v2676 = vmax.f32 %v2640, 0.0
      %v2677 = vmax.f32 %v2641, 0.0
      %2678 = vst.msk [vmem:[#allocation2 + $0x1] sm:$0xff] %vm1264, %v2642
      %2679 = vst.msk [vmem:[#allocation2 + $0x9] sm:$0xff] %vm1264, %v2643
      %2680 = vst.msk [vmem:[#allocation2 + $0x19] sm:$0xff] %vm1264, %v2644
      %2681 = vst.msk [vmem:[#allocation2 + $0x21] sm:$0xff] %vm1264, %v2645
      %2682 = vst.msk [vmem:[#allocation2 + $0x31] sm:$0xff] %vm1264, %v2646
      %2683 = vst.msk [vmem:[#allocation2 + $0x39] sm:$0xff] %vm1264, %v2647
      %2684 = vst.msk [vmem:[#allocation2 + $0x49] sm:$0xff] %vm1264, %v2648
      %2685 = vst.msk [vmem:[#allocation2 + $0x51] sm:$0xff] %vm1264, %v2649
      %2686 = vst.msk [vmem:[#allocation2 + $0x61] sm:$0xff] %vm1264, %v2650
      %2687 = vst.msk [vmem:[#allocation2 + $0x69] sm:$0xff] %vm1264, %v2651
      %2688 = vst.msk [vmem:[#allocation2 + $0x79] sm:$0xff] %vm1264, %v2652
      %2689 = vst.msk [vmem:[#allocation2 + $0x81] sm:$0xff] %vm1264, %v2653
      %2690 = vst.msk [vmem:[#allocation2 + $0x91] sm:$0xff] %vm1264, %v2654
      %2691 = vst.msk [vmem:[#allocation2 + $0x99] sm:$0xff] %vm1264, %v2655
      %2692 = vst.msk [vmem:[#allocation2 + $0xa9] sm:$0xff] %vm1264, %v2656
      %2693 = vst.msk [vmem:[#allocation2 + $0xb1] sm:$0xff] %vm1264, %v2657
      %2694 = vst.msk [vmem:[#allocation2 + $0xc1] sm:$0xff] %vm1264, %v2658
      %2695 = vst.msk [vmem:[#allocation2 + $0xc9] sm:$0xff] %vm1264, %v2659
      %2696 = vst.msk [vmem:[#allocation2 + $0xd9] sm:$0xff] %vm1264, %v2660
      %2697 = vst.msk [vmem:[#allocation2 + $0xe1] sm:$0xff] %vm1264, %v2661
      %2698 = vst.msk [vmem:[#allocation2 + $0xf1] sm:$0xff] %vm1264, %v2662
      %2699 = vst.msk [vmem:[#allocation2 + $0xf9] sm:$0xff] %vm1264, %v2663
      %2700 = vst.msk [vmem:[#allocation2 + $0x109] sm:$0xff] %vm1264, %v2664
      %2701 = vst.msk [vmem:[#allocation2 + $0x111] sm:$0xff] %vm1264, %v2665
      %2702 = vst.msk [vmem:[#allocation2 + $0x121] sm:$0xff] %vm1264, %v2666
      %2703 = vst.msk [vmem:[#allocation2 + $0x129] sm:$0xff] %vm1264, %v2667
      %2704 = vst.msk [vmem:[#allocation2 + $0x139] sm:$0xff] %vm1264, %v2668
      %2705 = vst.msk [vmem:[#allocation2 + $0x141] sm:$0xff] %vm1264, %v2669
      %2706 = vst.msk [vmem:[#allocation2 + $0x151] sm:$0xff] %vm1264, %v2670
      %2707 = vst.msk [vmem:[#allocation2 + $0x159] sm:$0xff] %vm1264, %v2671
      %2708 = vst.msk [vmem:[#allocation2 + $0x169] sm:$0xff] %vm1264, %v2672
      %2709 = vst.msk [vmem:[#allocation2 + $0x171] sm:$0xff] %vm1264, %v2673
      %2710 = vst.msk [vmem:[#allocation2 + $0x181] sm:$0xff] %vm1264, %v2674
      %2711 = vst.msk [vmem:[#allocation2 + $0x189] sm:$0xff] %vm1264, %v2675
      %2712 = vst.msk [vmem:[#allocation2 + $0x199] sm:$0xff] %vm1264, %v2676
      %2713 = vst.msk [vmem:[#allocation2 + $0x1a1] sm:$0xff] %vm1264, %v2677
      %p2714 = scmp.eq.s32.totalorder %s26, 0
      // Predicated region
      $region53: #{ba_block_forward.1} parent=51 // pred_check
        %p2715 = pneg %p2714
      $region54: #{ba_block_forward.1} parent=51 // pred_check_branch
        %2717 = sbr.rel (%p2715) target = $region56
      $region55: #{ba_block_forward.1} parent=51 // pred_region
        %2718 = vst.msk [vmem:[#allocation2 + $0x1] sm:$0xff] %vm1264, 0.0
        %2719 = vst.msk [vmem:[#allocation2 + $0x9] sm:$0xff] %vm1264, 0.0
        %s2720 = scalar_lea.vmem [#allocation2], 408
        %2721 = vst.msk [vmem:[%s2720 + $0x1] sm:$0xff] %vm1264, 0.0
        %2722 = vst.msk [vmem:[%s2720 + $0x9] sm:$0xff] %vm1264, 0.0
      $region56: #{ba_block_forward.1} parent=51 // pred_fallthru
        _
      %v2723 = vld [vmem:[#allocation2] sm:$0xff]
      %v2724 = vld [vmem:[#allocation2 + $0x8] sm:$0xff]
      %v2725 = vld [vmem:[#allocation2 + $0x10] sm:$0x3]
      %v2726 = vld [vmem:[#allocation2 + $0x18] sm:$0xff]
      %v2727 = vld [vmem:[#allocation2 + $0x20] sm:$0xff]
      %v2728 = vld [vmem:[#allocation2 + $0x28] sm:$0x3]
      %v2729 = vld [vmem:[#allocation2 + $0x30] sm:$0xff]
      %v2730 = vld [vmem:[#allocation2 + $0x38] sm:$0xff]
      %v2731 = vld [vmem:[#allocation2 + $0x40] sm:$0x3]
      %v2732 = vld [vmem:[#allocation2 + $0x48] sm:$0xff]
      %v2733 = vld [vmem:[#allocation2 + $0x50] sm:$0xff]
      %v2734 = vld [vmem:[#allocation2 + $0x58] sm:$0x3]
      %v2735 = vld [vmem:[#allocation2 + $0x60] sm:$0xff]
      %v2736 = vld [vmem:[#allocation2 + $0x68] sm:$0xff]
      %v2737 = vld [vmem:[#allocation2 + $0x70] sm:$0x3]
      %v2738 = vld [vmem:[#allocation2 + $0x78] sm:$0xff]
      %v2739 = vld [vmem:[#allocation2 + $0x80] sm:$0xff]
      %v2740 = vld [vmem:[#allocation2 + $0x88] sm:$0x3]
      %v2741 = vld [vmem:[#allocation2 + $0x90] sm:$0xff]
      %v2742 = vld [vmem:[#allocation2 + $0x98] sm:$0xff]
      %v2743 = vld [vmem:[#allocation2 + $0xa0] sm:$0x3]
      %v2744 = vld [vmem:[#allocation2 + $0xa8] sm:$0xff]
      %v2745 = vld [vmem:[#allocation2 + $0xb0] sm:$0xff]
      %v2746 = vld [vmem:[#allocation2 + $0xb8] sm:$0x3]
      %v2747 = vld [vmem:[#allocation2 + $0xc0] sm:$0xff]
      %v2748 = vld [vmem:[#allocation2 + $0xc8] sm:$0xff]
      %v2749 = vld [vmem:[#allocation2 + $0xd0] sm:$0x3]
      %v2750 = vld [vmem:[#allocation2 + $0xd8] sm:$0xff]
      %v2751 = vld [vmem:[#allocation2 + $0xe0] sm:$0xff]
      %v2752 = vld [vmem:[#allocation2 + $0xe8] sm:$0x3]
      %v2753 = vld [vmem:[#allocation2 + $0xf0] sm:$0xff]
      %v2754 = vld [vmem:[#allocation2 + $0xf8] sm:$0xff]
      %v2755 = vld [vmem:[#allocation2 + $0x100] sm:$0x3]
      %v2756 = vld [vmem:[#allocation2 + $0x108] sm:$0xff]
      %v2757 = vld [vmem:[#allocation2 + $0x110] sm:$0xff]
      %v2758 = vld [vmem:[#allocation2 + $0x118] sm:$0x3]
      %v2759 = vld [vmem:[#allocation2 + $0x120] sm:$0xff]
      %v2760 = vld [vmem:[#allocation2 + $0x128] sm:$0xff]
      %v2761 = vld [vmem:[#allocation2 + $0x130] sm:$0x3]
      %v2762 = vld [vmem:[#allocation2 + $0x138] sm:$0xff]
      %v2763 = vld [vmem:[#allocation2 + $0x140] sm:$0xff]
      %v2764 = vld [vmem:[#allocation2 + $0x148] sm:$0x3]
      %v2765 = vld [vmem:[#allocation2 + $0x150] sm:$0xff]
      %v2766 = vld [vmem:[#allocation2 + $0x158] sm:$0xff]
      %v2767 = vld [vmem:[#allocation2 + $0x160] sm:$0x3]
      %v2768 = vld [vmem:[#allocation2 + $0x168] sm:$0xff]
      %v2769 = vld [vmem:[#allocation2 + $0x170] sm:$0xff]
      %v2770 = vld [vmem:[#allocation2 + $0x178] sm:$0x3]
      %v2771 = vld [vmem:[#allocation2 + $0x180] sm:$0xff]
      %v2772 = vld [vmem:[#allocation2 + $0x188] sm:$0xff]
      %v2773 = vld [vmem:[#allocation2 + $0x190] sm:$0x3]
      %v2774 = vld [vmem:[#allocation2 + $0x198] sm:$0xff]
      %v2775 = vld [vmem:[#allocation2 + $0x1a0] sm:$0xff]
      %v2776 = vld [vmem:[#allocation2 + $0x1a8] sm:$0x3]
      %v2777 = vpack.c.bf16 %v2724, %v2723
      %v2778 = vpack.c.bf16 %v2725, %v2725
      %v2779 = vpack.c.bf16 %v2727, %v2726
      %v2780 = vpack.c.bf16 %v2728, %v2728
      %v2781 = vpack.c.bf16 %v2730, %v2729
      %v2782 = vpack.c.bf16 %v2731, %v2731
      %v2783 = vpack.c.bf16 %v2733, %v2732
      %v2784 = vpack.c.bf16 %v2734, %v2734
      %v2785 = vpack.c.bf16 %v2736, %v2735
      %v2786 = vpack.c.bf16 %v2737, %v2737
      %v2787 = vpack.c.bf16 %v2739, %v2738
      %v2788 = vpack.c.bf16 %v2740, %v2740
      %v2789 = vpack.c.bf16 %v2742, %v2741
      %v2790 = vpack.c.bf16 %v2743, %v2743
      %v2791 = vpack.c.bf16 %v2745, %v2744
      %v2792 = vpack.c.bf16 %v2746, %v2746
      %v2793 = vpack.c.bf16 %v2748, %v2747
      %v2794 = vpack.c.bf16 %v2749, %v2749
      %v2795 = vpack.c.bf16 %v2751, %v2750
      %v2796 = vpack.c.bf16 %v2752, %v2752
      %v2797 = vpack.c.bf16 %v2754, %v2753
      %v2798 = vpack.c.bf16 %v2755, %v2755
      %v2799 = vpack.c.bf16 %v2757, %v2756
      %v2800 = vpack.c.bf16 %v2758, %v2758
      %v2801 = vpack.c.bf16 %v2760, %v2759
      %v2802 = vpack.c.bf16 %v2761, %v2761
      %v2803 = vpack.c.bf16 %v2763, %v2762
      %v2804 = vpack.c.bf16 %v2764, %v2764
      %v2805 = vpack.c.bf16 %v2766, %v2765
      %v2806 = vpack.c.bf16 %v2767, %v2767
      %v2807 = vpack.c.bf16 %v2769, %v2768
      %v2808 = vpack.c.bf16 %v2770, %v2770
      %v2809 = vpack.c.bf16 %v2772, %v2771
      %v2810 = vpack.c.bf16 %v2773, %v2773
      %v2811 = vpack.c.bf16 %v2775, %v2774
      %v2812 = vpack.c.bf16 %v2776, %v2776
      %v2814 = vshrl.u32 %v2777, 16
      %v2816 = vshll.u32 %v2777, 16
      %v2818 = vrot.slane %v2816, 1
      %v2819 = vor.u32 %v2814, %v2818
      %v2821 = vshll.u32 %v2778, 16
      %v2823 = vrot.slane %v2821, 1
      %v2824 = vsel %vm1405, %v2819, %v2823
      %v2826 = vshrl.u32 %v2779, 16
      %v2828 = vshll.u32 %v2779, 16
      %v2830 = vrot.slane %v2828, 1
      %v2831 = vor.u32 %v2826, %v2830
      %v2833 = vshll.u32 %v2780, 16
      %v2835 = vrot.slane %v2833, 1
      %v2836 = vsel %vm1405, %v2831, %v2835
      %v2838 = vshrl.u32 %v2781, 16
      %v2840 = vshll.u32 %v2781, 16
      %v2842 = vrot.slane %v2840, 1
      %v2843 = vor.u32 %v2838, %v2842
      %v2845 = vshll.u32 %v2782, 16
      %v2847 = vrot.slane %v2845, 1
      %v2848 = vsel %vm1405, %v2843, %v2847
      %v2850 = vshrl.u32 %v2783, 16
      %v2852 = vshll.u32 %v2783, 16
      %v2854 = vrot.slane %v2852, 1
      %v2855 = vor.u32 %v2850, %v2854
      %v2857 = vshll.u32 %v2784, 16
      %v2859 = vrot.slane %v2857, 1
      %v2860 = vsel %vm1405, %v2855, %v2859
      %v2862 = vshrl.u32 %v2785, 16
      %v2864 = vshll.u32 %v2785, 16
      %v2866 = vrot.slane %v2864, 1
      %v2867 = vor.u32 %v2862, %v2866
      %v2869 = vshll.u32 %v2786, 16
      %v2871 = vrot.slane %v2869, 1
      %v2872 = vsel %vm1405, %v2867, %v2871
      %v2874 = vshrl.u32 %v2787, 16
      %v2876 = vshll.u32 %v2787, 16
      %v2878 = vrot.slane %v2876, 1
      %v2879 = vor.u32 %v2874, %v2878
      %v2881 = vshll.u32 %v2788, 16
      %v2883 = vrot.slane %v2881, 1
      %v2884 = vsel %vm1405, %v2879, %v2883
      %v2886 = vshrl.u32 %v2789, 16
      %v2888 = vshll.u32 %v2789, 16
      %v2890 = vrot.slane %v2888, 1
      %v2891 = vor.u32 %v2886, %v2890
      %v2893 = vshll.u32 %v2790, 16
      %v2895 = vrot.slane %v2893, 1
      %v2896 = vsel %vm1405, %v2891, %v2895
      %v2898 = vshrl.u32 %v2791, 16
      %v2900 = vshll.u32 %v2791, 16
      %v2902 = vrot.slane %v2900, 1
      %v2903 = vor.u32 %v2898, %v2902
      %v2905 = vshll.u32 %v2792, 16
      %v2907 = vrot.slane %v2905, 1
      %v2908 = vsel %vm1405, %v2903, %v2907
      %v2910 = vshrl.u32 %v2793, 16
      %v2912 = vshll.u32 %v2793, 16
      %v2914 = vrot.slane %v2912, 1
      %v2915 = vor.u32 %v2910, %v2914
      %v2917 = vshll.u32 %v2794, 16
      %v2919 = vrot.slane %v2917, 1
      %v2920 = vsel %vm1405, %v2915, %v2919
      %v2922 = vshrl.u32 %v2795, 16
      %v2924 = vshll.u32 %v2795, 16
      %v2926 = vrot.slane %v2924, 1
      %v2927 = vor.u32 %v2922, %v2926
      %v2929 = vshll.u32 %v2796, 16
      %v2931 = vrot.slane %v2929, 1
      %v2932 = vsel %vm1405, %v2927, %v2931
      %v2934 = vshrl.u32 %v2797, 16
      %v2936 = vshll.u32 %v2797, 16
      %v2938 = vrot.slane %v2936, 1
      %v2939 = vor.u32 %v2934, %v2938
      %v2941 = vshll.u32 %v2798, 16
      %v2943 = vrot.slane %v2941, 1
      %v2944 = vsel %vm1405, %v2939, %v2943
      %v2946 = vshrl.u32 %v2799, 16
      %v2948 = vshll.u32 %v2799, 16
      %v2950 = vrot.slane %v2948, 1
      %v2951 = vor.u32 %v2946, %v2950
      %v2953 = vshll.u32 %v2800, 16
      %v2955 = vrot.slane %v2953, 1
      %v2956 = vsel %vm1405, %v2951, %v2955
      %v2958 = vshrl.u32 %v2801, 16
      %v2960 = vshll.u32 %v2801, 16
      %v2962 = vrot.slane %v2960, 1
      %v2963 = vor.u32 %v2958, %v2962
      %v2965 = vshll.u32 %v2802, 16
      %v2967 = vrot.slane %v2965, 1
      %v2968 = vsel %vm1405, %v2963, %v2967
      %v2970 = vshrl.u32 %v2803, 16
      %v2972 = vshll.u32 %v2803, 16
      %v2974 = vrot.slane %v2972, 1
      %v2975 = vor.u32 %v2970, %v2974
      %v2977 = vshll.u32 %v2804, 16
      %v2979 = vrot.slane %v2977, 1
      %v2980 = vsel %vm1405, %v2975, %v2979
      %v2982 = vshrl.u32 %v2805, 16
      %v2984 = vshll.u32 %v2805, 16
      %v2986 = vrot.slane %v2984, 1
      %v2987 = vor.u32 %v2982, %v2986
      %v2989 = vshll.u32 %v2806, 16
      %v2991 = vrot.slane %v2989, 1
      %v2992 = vsel %vm1405, %v2987, %v2991
      %v2994 = vshrl.u32 %v2807, 16
      %v2996 = vshll.u32 %v2807, 16
      %v2998 = vrot.slane %v2996, 1
      %v2999 = vor.u32 %v2994, %v2998
      %v3001 = vshll.u32 %v2808, 16
      %v3003 = vrot.slane %v3001, 1
      %v3004 = vsel %vm1405, %v2999, %v3003
      %v3006 = vshrl.u32 %v2809, 16
      %v3008 = vshll.u32 %v2809, 16
      %v3010 = vrot.slane %v3008, 1
      %v3011 = vor.u32 %v3006, %v3010
      %v3013 = vshll.u32 %v2810, 16
      %v3015 = vrot.slane %v3013, 1
      %v3016 = vsel %vm1405, %v3011, %v3015
      %v3018 = vshrl.u32 %v2811, 16
      %v3020 = vshll.u32 %v2811, 16
      %v3022 = vrot.slane %v3020, 1
      %v3023 = vor.u32 %v3018, %v3022
      %v3025 = vshll.u32 %v2812, 16
      %v3027 = vrot.slane %v3025, 1
      %v3028 = vsel %vm1405, %v3023, %v3027
      %3029 = vrot.lane.b32.xlu0 %v2824, 8
      %v3030 = vpop.permute.xlu0 %3029
      %3031 = vrot.lane.b32.xlu0 %v2836, 8
      %v3032 = vpop.permute.xlu0 %3031
      %3033 = vrot.lane.b32.xlu0 %v2848, 8
      %v3034 = vpop.permute.xlu0 %3033
      %3035 = vrot.lane.b32.xlu0 %v2860, 8
      %v3036 = vpop.permute.xlu0 %3035
      %3037 = vrot.lane.b32.xlu0 %v2872, 8
      %v3038 = vpop.permute.xlu0 %3037
      %3039 = vrot.lane.b32.xlu0 %v2884, 8
      %v3040 = vpop.permute.xlu0 %3039
      %3041 = vrot.lane.b32.xlu0 %v2896, 8
      %v3042 = vpop.permute.xlu0 %3041
      %3043 = vrot.lane.b32.xlu0 %v2908, 8
      %v3044 = vpop.permute.xlu0 %3043
      %3045 = vrot.lane.b32.xlu0 %v2920, 8
      %v3046 = vpop.permute.xlu0 %3045
      %3047 = vrot.lane.b32.xlu0 %v2932, 8
      %v3048 = vpop.permute.xlu0 %3047
      %3049 = vrot.lane.b32.xlu0 %v2944, 8
      %v3050 = vpop.permute.xlu0 %3049
      %3051 = vrot.lane.b32.xlu0 %v2956, 8
      %v3052 = vpop.permute.xlu0 %3051
      %3053 = vrot.lane.b32.xlu0 %v2968, 8
      %v3054 = vpop.permute.xlu0 %3053
      %3055 = vrot.lane.b32.xlu0 %v2980, 8
      %v3056 = vpop.permute.xlu0 %3055
      %3057 = vrot.lane.b32.xlu0 %v2992, 8
      %v3058 = vpop.permute.xlu0 %3057
      %3059 = vrot.lane.b32.xlu0 %v3004, 8
      %v3060 = vpop.permute.xlu0 %3059
      %3061 = vrot.lane.b32.xlu0 %v3016, 8
      %v3062 = vpop.permute.xlu0 %3061
      %3063 = vrot.lane.b32.xlu0 %v3028, 8
      %v3064 = vpop.permute.xlu0 %3063
      %v3101 = vrot.slane %v2777, 1
      %v3102 = vrot.slane %v2778, 1
      %v3103 = vsel %vm1726, %v3101, %v3102
      %v3104 = vrot.slane %v2779, 1
      %v3105 = vrot.slane %v2780, 1
      %v3106 = vsel %vm1726, %v3104, %v3105
      %v3107 = vrot.slane %v2781, 1
      %v3108 = vrot.slane %v2782, 1
      %v3109 = vsel %vm1726, %v3107, %v3108
      %v3110 = vrot.slane %v2783, 1
      %v3111 = vrot.slane %v2784, 1
      %v3112 = vsel %vm1726, %v3110, %v3111
      %v3113 = vrot.slane %v2785, 1
      %v3114 = vrot.slane %v2786, 1
      %v3115 = vsel %vm1726, %v3113, %v3114
      %v3116 = vrot.slane %v2787, 1
      %v3117 = vrot.slane %v2788, 1
      %v3118 = vsel %vm1726, %v3116, %v3117
      %v3119 = vrot.slane %v2789, 1
      %v3120 = vrot.slane %v2790, 1
      %v3121 = vsel %vm1726, %v3119, %v3120
      %v3122 = vrot.slane %v2791, 1
      %v3123 = vrot.slane %v2792, 1
      %v3124 = vsel %vm1726, %v3122, %v3123
      %v3125 = vrot.slane %v2793, 1
      %v3126 = vrot.slane %v2794, 1
      %v3127 = vsel %vm1726, %v3125, %v3126
      %v3128 = vrot.slane %v2795, 1
      %v3129 = vrot.slane %v2796, 1
      %v3130 = vsel %vm1726, %v3128, %v3129
      %v3131 = vrot.slane %v2797, 1
      %v3132 = vrot.slane %v2798, 1
      %v3133 = vsel %vm1726, %v3131, %v3132
      %v3134 = vrot.slane %v2799, 1
      %v3135 = vrot.slane %v2800, 1
      %v3136 = vsel %vm1726, %v3134, %v3135
      %v3137 = vrot.slane %v2801, 1
      %v3138 = vrot.slane %v2802, 1
      %v3139 = vsel %vm1726, %v3137, %v3138
      %v3140 = vrot.slane %v2803, 1
      %v3141 = vrot.slane %v2804, 1
      %v3142 = vsel %vm1726, %v3140, %v3141
      %v3143 = vrot.slane %v2805, 1
      %v3144 = vrot.slane %v2806, 1
      %v3145 = vsel %vm1726, %v3143, %v3144
      %v3146 = vrot.slane %v2807, 1
      %v3147 = vrot.slane %v2808, 1
      %v3148 = vsel %vm1726, %v3146, %v3147
      %v3149 = vrot.slane %v2809, 1
      %v3150 = vrot.slane %v2810, 1
      %v3151 = vsel %vm1726, %v3149, %v3150
      %v3152 = vrot.slane %v2811, 1
      %v3153 = vrot.slane %v2812, 1
      %v3154 = vsel %vm1726, %v3152, %v3153
      %3155 = vrot.lane.b32.xlu0 %v3103, 16
      %v3156 = vpop.permute.xlu0 %3155
      %3157 = vrot.lane.b32.xlu0 %v3106, 16
      %v3158 = vpop.permute.xlu0 %3157
      %3159 = vrot.lane.b32.xlu0 %v3109, 16
      %v3160 = vpop.permute.xlu0 %3159
      %3161 = vrot.lane.b32.xlu0 %v3112, 16
      %v3162 = vpop.permute.xlu0 %3161
      %3163 = vrot.lane.b32.xlu0 %v3115, 16
      %v3164 = vpop.permute.xlu0 %3163
      %3165 = vrot.lane.b32.xlu0 %v3118, 16
      %v3166 = vpop.permute.xlu0 %3165
      %3167 = vrot.lane.b32.xlu0 %v3121, 16
      %v3168 = vpop.permute.xlu0 %3167
      %3169 = vrot.lane.b32.xlu0 %v3124, 16
      %v3170 = vpop.permute.xlu0 %3169
      %3171 = vrot.lane.b32.xlu0 %v3127, 16
      %v3172 = vpop.permute.xlu0 %3171
      %3173 = vrot.lane.b32.xlu0 %v3130, 16
      %v3174 = vpop.permute.xlu0 %3173
      %3175 = vrot.lane.b32.xlu0 %v3133, 16
      %v3176 = vpop.permute.xlu0 %3175
      %3177 = vrot.lane.b32.xlu0 %v3136, 16
      %v3178 = vpop.permute.xlu0 %3177
      %3179 = vrot.lane.b32.xlu0 %v3139, 16
      %v3180 = vpop.permute.xlu0 %3179
      %3181 = vrot.lane.b32.xlu0 %v3142, 16
      %v3182 = vpop.permute.xlu0 %3181
      %3183 = vrot.lane.b32.xlu0 %v3145, 16
      %v3184 = vpop.permute.xlu0 %3183
      %3185 = vrot.lane.b32.xlu0 %v3148, 16
      %v3186 = vpop.permute.xlu0 %3185
      %3187 = vrot.lane.b32.xlu0 %v3151, 16
      %v3188 = vpop.permute.xlu0 %3187
      %3189 = vrot.lane.b32.xlu0 %v3154, 16
      %v3190 = vpop.permute.xlu0 %3189
      %v3192 = vsel %vm1264, %v2777, %v3030
      %v3194 = vsel %vm1264, %v2779, %v3032
      %v3196 = vsel %vm1264, %v2781, %v3034
      %v3198 = vsel %vm1264, %v2783, %v3036
      %v3200 = vsel %vm1264, %v2785, %v3038
      %v3202 = vsel %vm1264, %v2787, %v3040
      %v3204 = vsel %vm1264, %v2789, %v3042
      %v3206 = vsel %vm1264, %v2791, %v3044
      %v3208 = vsel %vm1264, %v2793, %v3046
      %v3210 = vsel %vm1264, %v2795, %v3048
      %v3212 = vsel %vm1264, %v2797, %v3050
      %v3214 = vsel %vm1264, %v2799, %v3052
      %v3216 = vsel %vm1264, %v2801, %v3054
      %v3218 = vsel %vm1264, %v2803, %v3056
      %v3220 = vsel %vm1264, %v2805, %v3058
      %v3222 = vsel %vm1264, %v2807, %v3060
      %v3224 = vsel %vm1264, %v2809, %v3062
      %v3226 = vsel %vm1264, %v2811, %v3064
      %v3228 = vsel %vm1867, %v3192, %v3156
      %v3230 = vsel %vm1867, %v3194, %v3158
      %v3232 = vsel %vm1867, %v3196, %v3160
      %v3234 = vsel %vm1867, %v3198, %v3162
      %v3236 = vsel %vm1867, %v3200, %v3164
      %v3238 = vsel %vm1867, %v3202, %v3166
      %v3240 = vsel %vm1867, %v3204, %v3168
      %v3242 = vsel %vm1867, %v3206, %v3170
      %v3244 = vsel %vm1867, %v3208, %v3172
      %v3246 = vsel %vm1867, %v3210, %v3174
      %v3248 = vsel %vm1867, %v3212, %v3176
      %v3250 = vsel %vm1867, %v3214, %v3178
      %v3252 = vsel %vm1867, %v3216, %v3180
      %v3254 = vsel %vm1867, %v3218, %v3182
      %v3256 = vsel %vm1867, %v3220, %v3184
      %v3258 = vsel %vm1867, %v3222, %v3186
      %v3260 = vsel %vm1867, %v3224, %v3188
      %v3262 = vsel %vm1867, %v3226, %v3190
      %v3263 = vld [vmem:[%s7] sm:$0x1]
      %v3264 = vld [vmem:[%s6] sm:$0xf]
      %v3265 = vld [vmem:[%s6 + $0x4] sm:$0xf]
      %v3266 = vld [vmem:[%s6 + $0x8] sm:$0xf]
      %v3270 = vunpack.c.l.b16 %v3264
      %v3271 = vunpack.c.l.b16 %v3265
      %v3272 = vunpack.c.l.b16 %v3266
      %v3273 = vpack.c.b16 %v3271, %v3270
      %v3274 = vpack.c.b16 %v3272, %v3272
      %v3276 = vsel %vm1921, %v3228, 0
      %v3278 = vsel %vm1921, %v3230, 0
      %v3280 = vsel %vm1921, %v3232, 0
      %v3282 = vsel %vm1921, %v3234, 0
      %v3284 = vsel %vm1921, %v3236, 0
      %v3286 = vsel %vm1921, %v3238, 0
      %v3288 = vsel %vm1921, %v3240, 0
      %v3290 = vsel %vm1921, %v3242, 0
      %v3292 = vsel %vm1921, %v3244, 0
      %v3294 = vsel %vm1921, %v3246, 0
      %v3296 = vsel %vm1921, %v3248, 0
      %v3298 = vsel %vm1921, %v3250, 0
      %v3300 = vsel %vm1921, %v3252, 0
      %v3302 = vsel %vm1921, %v3254, 0
      %v3304 = vsel %vm1921, %v3256, 0
      %v3306 = vsel %vm1921, %v3258, 0
      %v3309 = vsel %vm642, %v3274, 0
      %3311 = vmatprep.subr.bf16.mxu0 0
      %3312 = vmatpush1.bf16.msra.mxu0 %v3273
      %3313 = vmatprep.subr.bf16.mxu0 0
      %3314 = vmatpush1.bf16.msra.mxu0 %v3309
      %3315 = vmatprep.subr.bf16.mxu0 0
      %3316 = vmatpush1.bf16.msra.mxu0 0
      %3317 = vmatprep.subr.bf16.mxu0 0
      %3318 = vmatpush1.bf16.msra.mxu0 0
      %3319 = vmatprep.subr.bf16.mxu0 0
      %3320 = vmatpush1.bf16.msra.mxu0 0
      %3321 = vmatprep.subr.bf16.mxu0 0
      %3322 = vmatpush1.bf16.msra.mxu0 0
      %3323 = vmatprep.subr.bf16.mxu0 0
      %3324 = vmatpush1.bf16.msra.mxu0 0
      %3325 = vmatprep.subr.bf16.mxu0 0
      %3326 = vmatpush1.bf16.msra.mxu0 0
      %3327 = vmatprep.subr.bf16.mxu0 0
      %3328 = vmatpush1.bf16.msra.mxu0 0
      %3329 = vmatprep.subr.bf16.mxu0 0
      %3330 = vmatpush1.bf16.msra.mxu0 0
      %3331 = vmatprep.subr.bf16.mxu0 0
      %3332 = vmatpush1.bf16.msra.mxu0 0
      %3333 = vmatprep.subr.bf16.mxu0 0
      %3334 = vmatpush1.bf16.msra.mxu0 0
      %3335 = vmatprep.subr.bf16.mxu0 0
      %3336 = vmatpush1.bf16.msra.mxu0 0
      %3337 = vmatprep.subr.bf16.mxu0 0
      %3338 = vmatpush1.bf16.msra.mxu0 0
      %3339 = vmatprep.subr.bf16.mxu0 0
      %3340 = vmatpush1.bf16.msra.mxu0 0
      %3341 = vmatprep.subr.bf16.mxu0 0
      %3342 = vmatpush1.bf16.msra.mxu0 0
      %3343 = vmatprep.mubr.bf16.mxu0 0
      %3344 = vmatmul.mubr.bf16.gmra.mrb[0].mxu0 %v3276
      %v3345 = vpop.f32.mrb[0].mxu0
      %v3346 = vadd.f32 0.0, %v3345
      %v3347 = vpop.f32.mrb[0].mxu0
      %v3348 = vpop.f32.mrb[0].mxu0
      %v3349 = vadd.f32 0.0, %v3348
      %v3350 = vpop.f32.mrb[0].mxu0
      %3351 = vmatprep.mubr.bf16.mxu0 0
      %3352 = vmatmul.mubr.bf16.gmra.mrb[0].mxu0 %v3278
      %v3353 = vpop.f32.mrb[0].mxu0
      %v3354 = vadd.f32 0.0, %v3353
      %v3355 = vpop.f32.mrb[0].mxu0
      %v3356 = vpop.f32.mrb[0].mxu0
      %v3357 = vadd.f32 0.0, %v3356
      %v3358 = vpop.f32.mrb[0].mxu0
      %3359 = vmatprep.mubr.bf16.mxu0 0
      %3360 = vmatmul.mubr.bf16.gmra.mrb[0].mxu0 %v3280
      %v3361 = vpop.f32.mrb[0].mxu0
      %v3362 = vadd.f32 0.0, %v3361
      %v3363 = vpop.f32.mrb[0].mxu0
      %v3364 = vpop.f32.mrb[0].mxu0
      %v3365 = vadd.f32 0.0, %v3364
      %v3366 = vpop.f32.mrb[0].mxu0
      %3367 = vmatprep.mubr.bf16.mxu0 0
      %3368 = vmatmul.mubr.bf16.gmra.mrb[0].mxu0 %v3282
      %v3369 = vpop.f32.mrb[0].mxu0
      %v3370 = vadd.f32 0.0, %v3369
      %v3371 = vpop.f32.mrb[0].mxu0
      %v3372 = vpop.f32.mrb[0].mxu0
      %v3373 = vadd.f32 0.0, %v3372
      %v3374 = vpop.f32.mrb[0].mxu0
      %3375 = vmatprep.mubr.bf16.mxu0 0
      %3376 = vmatmul.mubr.bf16.gmra.mrb[0].mxu0 %v3284
      %v3377 = vpop.f32.mrb[0].mxu0
      %v3378 = vadd.f32 0.0, %v3377
      %v3379 = vpop.f32.mrb[0].mxu0
      %v3380 = vpop.f32.mrb[0].mxu0
      %v3381 = vadd.f32 0.0, %v3380
      %v3382 = vpop.f32.mrb[0].mxu0
      %3383 = vmatprep.mubr.bf16.mxu0 0
      %3384 = vmatmul.mubr.bf16.gmra.mrb[0].mxu0 %v3286
      %v3385 = vpop.f32.mrb[0].mxu0
      %v3386 = vadd.f32 0.0, %v3385
      %v3387 = vpop.f32.mrb[0].mxu0
      %v3388 = vpop.f32.mrb[0].mxu0
      %v3389 = vadd.f32 0.0, %v3388
      %v3390 = vpop.f32.mrb[0].mxu0
      %3391 = vmatprep.mubr.bf16.mxu0 0
      %3392 = vmatmul.mubr.bf16.gmra.mrb[0].mxu0 %v3288
      %v3393 = vpop.f32.mrb[0].mxu0
      %v3394 = vadd.f32 0.0, %v3393
      %v3395 = vpop.f32.mrb[0].mxu0
      %v3396 = vpop.f32.mrb[0].mxu0
      %v3397 = vadd.f32 0.0, %v3396
      %v3398 = vpop.f32.mrb[0].mxu0
      %3399 = vmatprep.mubr.bf16.mxu0 0
      %3400 = vmatmul.mubr.bf16.gmra.mrb[0].mxu0 %v3290
      %v3401 = vpop.f32.mrb[0].mxu0
      %v3402 = vadd.f32 0.0, %v3401
      %v3403 = vpop.f32.mrb[0].mxu0
      %v3404 = vpop.f32.mrb[0].mxu0
      %v3405 = vadd.f32 0.0, %v3404
      %v3406 = vpop.f32.mrb[0].mxu0
      %3407 = vmatprep.mubr.bf16.mxu0 0
      %3408 = vmatmul.mubr.bf16.gmra.mrb[0].mxu0 %v3292
      %v3409 = vpop.f32.mrb[0].mxu0
      %v3410 = vadd.f32 0.0, %v3409
      %v3411 = vpop.f32.mrb[0].mxu0
      %v3412 = vpop.f32.mrb[0].mxu0
      %v3413 = vadd.f32 0.0, %v3412
      %v3414 = vpop.f32.mrb[0].mxu0
      %3415 = vmatprep.mubr.bf16.mxu0 0
      %3416 = vmatmul.mubr.bf16.gmra.mrb[0].mxu0 %v3294
      %v3417 = vpop.f32.mrb[0].mxu0
      %v3418 = vadd.f32 0.0, %v3417
      %v3419 = vpop.f32.mrb[0].mxu0
      %v3420 = vpop.f32.mrb[0].mxu0
      %v3421 = vadd.f32 0.0, %v3420
      %v3422 = vpop.f32.mrb[0].mxu0
      %3423 = vmatprep.mubr.bf16.mxu0 0
      %3424 = vmatmul.mubr.bf16.gmra.mrb[0].mxu0 %v3296
      %v3425 = vpop.f32.mrb[0].mxu0
      %v3426 = vadd.f32 0.0, %v3425
      %v3427 = vpop.f32.mrb[0].mxu0
      %v3428 = vpop.f32.mrb[0].mxu0
      %v3429 = vadd.f32 0.0, %v3428
      %v3430 = vpop.f32.mrb[0].mxu0
      %3431 = vmatprep.mubr.bf16.mxu0 0
      %3432 = vmatmul.mubr.bf16.gmra.mrb[0].mxu0 %v3298
      %v3433 = vpop.f32.mrb[0].mxu0
      %v3434 = vadd.f32 0.0, %v3433
      %v3435 = vpop.f32.mrb[0].mxu0
      %v3436 = vpop.f32.mrb[0].mxu0
      %v3437 = vadd.f32 0.0, %v3436
      %v3438 = vpop.f32.mrb[0].mxu0
      %3439 = vmatprep.mubr.bf16.mxu0 0
      %3440 = vmatmul.mubr.bf16.gmra.mrb[0].mxu0 %v3300
      %v3441 = vpop.f32.mrb[0].mxu0
      %v3442 = vadd.f32 0.0, %v3441
      %v3443 = vpop.f32.mrb[0].mxu0
      %v3444 = vpop.f32.mrb[0].mxu0
      %v3445 = vadd.f32 0.0, %v3444
      %v3446 = vpop.f32.mrb[0].mxu0
      %3447 = vmatprep.mubr.bf16.mxu0 0
      %3448 = vmatmul.mubr.bf16.gmra.mrb[0].mxu0 %v3302
      %v3449 = vpop.f32.mrb[0].mxu0
      %v3450 = vadd.f32 0.0, %v3449
      %v3451 = vpop.f32.mrb[0].mxu0
      %v3452 = vpop.f32.mrb[0].mxu0
      %v3453 = vadd.f32 0.0, %v3452
      %v3454 = vpop.f32.mrb[0].mxu0
      %3455 = vmatprep.mubr.bf16.mxu0 0
      %3456 = vmatmul.mubr.bf16.gmra.mrb[0].mxu0 %v3304
      %v3457 = vpop.f32.mrb[0].mxu0
      %v3458 = vadd.f32 0.0, %v3457
      %v3459 = vpop.f32.mrb[0].mxu0
      %v3460 = vpop.f32.mrb[0].mxu0
      %v3461 = vadd.f32 0.0, %v3460
      %v3462 = vpop.f32.mrb[0].mxu0
      %3463 = vmatprep.mubr.bf16.mxu0 0
      %3464 = vmatmul.mubr.bf16.gmra.mrb[0].mxu0 %v3306
      %v3465 = vpop.f32.mrb[0].mxu0
      %v3466 = vadd.f32 0.0, %v3465
      %v3467 = vpop.f32.mrb[0].mxu0
      %v3468 = vpop.f32.mrb[0].mxu0
      %v3469 = vadd.f32 0.0, %v3468
      %v3470 = vpop.f32.mrb[0].mxu0
      %3471 = vdwg.mxu0
      %v3473 = vlaneseq
      %v3474 = vshrl.u32 %v3473, 7
      %v3475 = vsub.s32 0, %v3474
      %v3476 = vrot.slane %v3263, %v3475
      %v3478 = vadd.f32 %v3476, %v3346
      %v3479 = vadd.f32 %v3476, %v3349
      %v3480 = vadd.f32 %v3476, %v3354
      %v3481 = vadd.f32 %v3476, %v3357
      %v3482 = vadd.f32 %v3476, %v3362
      %v3483 = vadd.f32 %v3476, %v3365
      %v3484 = vadd.f32 %v3476, %v3370
      %v3485 = vadd.f32 %v3476, %v3373
      %v3486 = vadd.f32 %v3476, %v3378
      %v3487 = vadd.f32 %v3476, %v3381
      %v3488 = vadd.f32 %v3476, %v3386
      %v3489 = vadd.f32 %v3476, %v3389
      %v3490 = vadd.f32 %v3476, %v3394
      %v3491 = vadd.f32 %v3476, %v3397
      %v3492 = vadd.f32 %v3476, %v3402
      %v3493 = vadd.f32 %v3476, %v3405
      %v3494 = vadd.f32 %v3476, %v3410
      %v3495 = vadd.f32 %v3476, %v3413
      %v3496 = vadd.f32 %v3476, %v3418
      %v3497 = vadd.f32 %v3476, %v3421
      %v3498 = vadd.f32 %v3476, %v3426
      %v3499 = vadd.f32 %v3476, %v3429
      %v3500 = vadd.f32 %v3476, %v3434
      %v3501 = vadd.f32 %v3476, %v3437
      %v3502 = vadd.f32 %v3476, %v3442
      %v3503 = vadd.f32 %v3476, %v3445
      %v3504 = vadd.f32 %v3476, %v3450
      %v3505 = vadd.f32 %v3476, %v3453
      %v3506 = vadd.f32 %v3476, %v3458
      %v3507 = vadd.f32 %v3476, %v3461
      %v3508 = vadd.f32 %v3476, %v3466
      %v3509 = vadd.f32 %v3476, %v3469
      %s3510 = scalar_lea.vmem %s6, 12
      %v3511 = vld [vmem:[%s3510] sm:$0xf]
      %v3512 = vld [vmem:[%s3510 + $0x4] sm:$0xf]
      %v3513 = vld [vmem:[%s3510 + $0x8] sm:$0xf]
      %v3517 = vunpack.c.l.b16 %v3511
      %v3518 = vunpack.c.l.b16 %v3512
      %v3519 = vunpack.c.l.b16 %v3513
      %v3520 = vpack.c.b16 %v3518, %v3517
      %v3521 = vpack.c.b16 %v3519, %v3519
      %v3523 = vsel %vm1921, %v3260, 0
      %v3526 = vsel %vm642, %v3521, 0
      %3528 = vmatprep.subr.bf16.mxu0 0
      %3529 = vmatpush1.bf16.msra.mxu0 %v3520
      %3530 = vmatprep.subr.bf16.mxu0 0
      %3531 = vmatpush1.bf16.msra.mxu0 %v3526
      %3532 = vmatprep.subr.bf16.mxu0 0
      %3533 = vmatpush1.bf16.msra.mxu0 0
      %3534 = vmatprep.subr.bf16.mxu0 0
      %3535 = vmatpush1.bf16.msra.mxu0 0
      %3536 = vmatprep.subr.bf16.mxu0 0
      %3537 = vmatpush1.bf16.msra.mxu0 0
      %3538 = vmatprep.subr.bf16.mxu0 0
      %3539 = vmatpush1.bf16.msra.mxu0 0
      %3540 = vmatprep.subr.bf16.mxu0 0
      %3541 = vmatpush1.bf16.msra.mxu0 0
      %3542 = vmatprep.subr.bf16.mxu0 0
      %3543 = vmatpush1.bf16.msra.mxu0 0
      %3544 = vmatprep.subr.bf16.mxu0 0
      %3545 = vmatpush1.bf16.msra.mxu0 0
      %3546 = vmatprep.subr.bf16.mxu0 0
      %3547 = vmatpush1.bf16.msra.mxu0 0
      %3548 = vmatprep.subr.bf16.mxu0 0
      %3549 = vmatpush1.bf16.msra.mxu0 0
      %3550 = vmatprep.subr.bf16.mxu0 0
      %3551 = vmatpush1.bf16.msra.mxu0 0
      %3552 = vmatprep.subr.bf16.mxu0 0
      %3553 = vmatpush1.bf16.msra.mxu0 0
      %3554 = vmatprep.subr.bf16.mxu0 0
      %3555 = vmatpush1.bf16.msra.mxu0 0
      %3556 = vmatprep.subr.bf16.mxu0 0
      %3557 = vmatpush1.bf16.msra.mxu0 0
      %3558 = vmatprep.subr.bf16.mxu0 0
      %3559 = vmatpush1.bf16.msra.mxu0 0
      %3560 = vmatprep.mubr.bf16.mxu0 0
      %3561 = vmatmul.mubr.bf16.gmra.mrb[0].mxu0 %v3278
      %v3562 = vpop.f32.mrb[0].mxu0
      %v3563 = vadd.f32 0.0, %v3562
      %v3564 = vpop.f32.mrb[0].mxu0
      %v3565 = vpop.f32.mrb[0].mxu0
      %v3566 = vadd.f32 0.0, %v3565
      %v3567 = vpop.f32.mrb[0].mxu0
      %3568 = vmatprep.mubr.bf16.mxu0 0
      %3569 = vmatmul.mubr.bf16.gmra.mrb[0].mxu0 %v3280
      %v3570 = vpop.f32.mrb[0].mxu0
      %v3571 = vadd.f32 0.0, %v3570
      %v3572 = vpop.f32.mrb[0].mxu0
      %v3573 = vpop.f32.mrb[0].mxu0
      %v3574 = vadd.f32 0.0, %v3573
      %v3575 = vpop.f32.mrb[0].mxu0
      %3576 = vmatprep.mubr.bf16.mxu0 0
      %3577 = vmatmul.mubr.bf16.gmra.mrb[0].mxu0 %v3282
      %v3578 = vpop.f32.mrb[0].mxu0
      %v3579 = vadd.f32 0.0, %v3578
      %v3580 = vpop.f32.mrb[0].mxu0
      %v3581 = vpop.f32.mrb[0].mxu0
      %v3582 = vadd.f32 0.0, %v3581
      %v3583 = vpop.f32.mrb[0].mxu0
      %3584 = vmatprep.mubr.bf16.mxu0 0
      %3585 = vmatmul.mubr.bf16.gmra.mrb[0].mxu0 %v3284
      %v3586 = vpop.f32.mrb[0].mxu0
      %v3587 = vadd.f32 0.0, %v3586
      %v3588 = vpop.f32.mrb[0].mxu0
      %v3589 = vpop.f32.mrb[0].mxu0
      %v3590 = vadd.f32 0.0, %v3589
      %v3591 = vpop.f32.mrb[0].mxu0
      %3592 = vmatprep.mubr.bf16.mxu0 0
      %3593 = vmatmul.mubr.bf16.gmra.mrb[0].mxu0 %v3286
      %v3594 = vpop.f32.mrb[0].mxu0
      %v3595 = vadd.f32 0.0, %v3594
      %v3596 = vpop.f32.mrb[0].mxu0
      %v3597 = vpop.f32.mrb[0].mxu0
      %v3598 = vadd.f32 0.0, %v3597
      %v3599 = vpop.f32.mrb[0].mxu0
      %3600 = vmatprep.mubr.bf16.mxu0 0
      %3601 = vmatmul.mubr.bf16.gmra.mrb[0].mxu0 %v3288
      %v3602 = vpop.f32.mrb[0].mxu0
      %v3603 = vadd.f32 0.0, %v3602
      %v3604 = vpop.f32.mrb[0].mxu0
      %v3605 = vpop.f32.mrb[0].mxu0
      %v3606 = vadd.f32 0.0, %v3605
      %v3607 = vpop.f32.mrb[0].mxu0
      %3608 = vmatprep.mubr.bf16.mxu0 0
      %3609 = vmatmul.mubr.bf16.gmra.mrb[0].mxu0 %v3290
      %v3610 = vpop.f32.mrb[0].mxu0
      %v3611 = vadd.f32 0.0, %v3610
      %v3612 = vpop.f32.mrb[0].mxu0
      %v3613 = vpop.f32.mrb[0].mxu0
      %v3614 = vadd.f32 0.0, %v3613
      %v3615 = vpop.f32.mrb[0].mxu0
      %3616 = vmatprep.mubr.bf16.mxu0 0
      %3617 = vmatmul.mubr.bf16.gmra.mrb[0].mxu0 %v3292
      %v3618 = vpop.f32.mrb[0].mxu0
      %v3619 = vadd.f32 0.0, %v3618
      %v3620 = vpop.f32.mrb[0].mxu0
      %v3621 = vpop.f32.mrb[0].mxu0
      %v3622 = vadd.f32 0.0, %v3621
      %v3623 = vpop.f32.mrb[0].mxu0
      %3624 = vmatprep.mubr.bf16.mxu0 0
      %3625 = vmatmul.mubr.bf16.gmra.mrb[0].mxu0 %v3294
      %v3626 = vpop.f32.mrb[0].mxu0
      %v3627 = vadd.f32 0.0, %v3626
      %v3628 = vpop.f32.mrb[0].mxu0
      %v3629 = vpop.f32.mrb[0].mxu0
      %v3630 = vadd.f32 0.0, %v3629
      %v3631 = vpop.f32.mrb[0].mxu0
      %3632 = vmatprep.mubr.bf16.mxu0 0
      %3633 = vmatmul.mubr.bf16.gmra.mrb[0].mxu0 %v3296
      %v3634 = vpop.f32.mrb[0].mxu0
      %v3635 = vadd.f32 0.0, %v3634
      %v3636 = vpop.f32.mrb[0].mxu0
      %v3637 = vpop.f32.mrb[0].mxu0
      %v3638 = vadd.f32 0.0, %v3637
      %v3639 = vpop.f32.mrb[0].mxu0
      %3640 = vmatprep.mubr.bf16.mxu0 0
      %3641 = vmatmul.mubr.bf16.gmra.mrb[0].mxu0 %v3298
      %v3642 = vpop.f32.mrb[0].mxu0
      %v3643 = vadd.f32 0.0, %v3642
      %v3644 = vpop.f32.mrb[0].mxu0
      %v3645 = vpop.f32.mrb[0].mxu0
      %v3646 = vadd.f32 0.0, %v3645
      %v3647 = vpop.f32.mrb[0].mxu0
      %3648 = vmatprep.mubr.bf16.mxu0 0
      %3649 = vmatmul.mubr.bf16.gmra.mrb[0].mxu0 %v3300
      %v3650 = vpop.f32.mrb[0].mxu0
      %v3651 = vadd.f32 0.0, %v3650
      %v3652 = vpop.f32.mrb[0].mxu0
      %v3653 = vpop.f32.mrb[0].mxu0
      %v3654 = vadd.f32 0.0, %v3653
      %v3655 = vpop.f32.mrb[0].mxu0
      %3656 = vmatprep.mubr.bf16.mxu0 0
      %3657 = vmatmul.mubr.bf16.gmra.mrb[0].mxu0 %v3302
      %v3658 = vpop.f32.mrb[0].mxu0
      %v3659 = vadd.f32 0.0, %v3658
      %v3660 = vpop.f32.mrb[0].mxu0
      %v3661 = vpop.f32.mrb[0].mxu0
      %v3662 = vadd.f32 0.0, %v3661
      %v3663 = vpop.f32.mrb[0].mxu0
      %3664 = vmatprep.mubr.bf16.mxu0 0
      %3665 = vmatmul.mubr.bf16.gmra.mrb[0].mxu0 %v3304
      %v3666 = vpop.f32.mrb[0].mxu0
      %v3667 = vadd.f32 0.0, %v3666
      %v3668 = vpop.f32.mrb[0].mxu0
      %v3669 = vpop.f32.mrb[0].mxu0
      %v3670 = vadd.f32 0.0, %v3669
      %v3671 = vpop.f32.mrb[0].mxu0
      %3672 = vmatprep.mubr.bf16.mxu0 0
      %3673 = vmatmul.mubr.bf16.gmra.mrb[0].mxu0 %v3306
      %v3674 = vpop.f32.mrb[0].mxu0
      %v3675 = vadd.f32 0.0, %v3674
      %v3676 = vpop.f32.mrb[0].mxu0
      %v3677 = vpop.f32.mrb[0].mxu0
      %v3678 = vadd.f32 0.0, %v3677
      %v3679 = vpop.f32.mrb[0].mxu0
      %3680 = vmatprep.mubr.bf16.mxu0 0
      %3681 = vmatmul.mubr.bf16.gmra.mrb[0].mxu0 %v3523
      %v3682 = vpop.f32.mrb[0].mxu0
      %v3683 = vadd.f32 0.0, %v3682
      %v3684 = vpop.f32.mrb[0].mxu0
      %v3685 = vpop.f32.mrb[0].mxu0
      %v3686 = vadd.f32 0.0, %v3685
      %v3687 = vpop.f32.mrb[0].mxu0
      %3688 = vdwg.mxu0
      %v3689 = vadd.f32 %v3478, %v3563
      %v3690 = vadd.f32 %v3479, %v3566
      %v3691 = vadd.f32 %v3480, %v3571
      %v3692 = vadd.f32 %v3481, %v3574
      %v3693 = vadd.f32 %v3482, %v3579
      %v3694 = vadd.f32 %v3483, %v3582
      %v3695 = vadd.f32 %v3484, %v3587
      %v3696 = vadd.f32 %v3485, %v3590
      %v3697 = vadd.f32 %v3486, %v3595
      %v3698 = vadd.f32 %v3487, %v3598
      %v3699 = vadd.f32 %v3488, %v3603
      %v3700 = vadd.f32 %v3489, %v3606
      %v3701 = vadd.f32 %v3490, %v3611
      %v3702 = vadd.f32 %v3491, %v3614
      %v3703 = vadd.f32 %v3492, %v3619
      %v3704 = vadd.f32 %v3493, %v3622
      %v3705 = vadd.f32 %v3494, %v3627
      %v3706 = vadd.f32 %v3495, %v3630
      %v3707 = vadd.f32 %v3496, %v3635
      %v3708 = vadd.f32 %v3497, %v3638
      %v3709 = vadd.f32 %v3498, %v3643
      %v3710 = vadd.f32 %v3499, %v3646
      %v3711 = vadd.f32 %v3500, %v3651
      %v3712 = vadd.f32 %v3501, %v3654
      %v3713 = vadd.f32 %v3502, %v3659
      %v3714 = vadd.f32 %v3503, %v3662
      %v3715 = vadd.f32 %v3504, %v3667
      %v3716 = vadd.f32 %v3505, %v3670
      %v3717 = vadd.f32 %v3506, %v3675
      %v3718 = vadd.f32 %v3507, %v3678
      %v3719 = vadd.f32 %v3508, %v3683
      %v3720 = vadd.f32 %v3509, %v3686
      %s3721 = scalar_lea.vmem %s6, 24
      %v3722 = vld [vmem:[%s3721] sm:$0xf]
      %v3723 = vld [vmem:[%s3721 + $0x4] sm:$0xf]
      %v3724 = vld [vmem:[%s3721 + $0x8] sm:$0xf]
      %v3728 = vunpack.c.l.b16 %v3722
      %v3729 = vunpack.c.l.b16 %v3723
      %v3730 = vunpack.c.l.b16 %v3724
      %v3731 = vpack.c.b16 %v3729, %v3728
      %v3732 = vpack.c.b16 %v3730, %v3730
      %v3734 = vsel %vm1921, %v3262, 0
      %v3737 = vsel %vm642, %v3732, 0
      %3739 = vmatprep.subr.bf16.mxu0 0
      %3740 = vmatpush1.bf16.msra.mxu0 %v3731
      %3741 = vmatprep.subr.bf16.mxu0 0
      %3742 = vmatpush1.bf16.msra.mxu0 %v3737
      %3743 = vmatprep.subr.bf16.mxu0 0
      %3744 = vmatpush1.bf16.msra.mxu0 0
      %3745 = vmatprep.subr.bf16.mxu0 0
      %3746 = vmatpush1.bf16.msra.mxu0 0
      %3747 = vmatprep.subr.bf16.mxu0 0
      %3748 = vmatpush1.bf16.msra.mxu0 0
      %3749 = vmatprep.subr.bf16.mxu0 0
      %3750 = vmatpush1.bf16.msra.mxu0 0
      %3751 = vmatprep.subr.bf16.mxu0 0
      %3752 = vmatpush1.bf16.msra.mxu0 0
      %3753 = vmatprep.subr.bf16.mxu0 0
      %3754 = vmatpush1.bf16.msra.mxu0 0
      %3755 = vmatprep.subr.bf16.mxu0 0
      %3756 = vmatpush1.bf16.msra.mxu0 0
      %3757 = vmatprep.subr.bf16.mxu0 0
      %3758 = vmatpush1.bf16.msra.mxu0 0
      %3759 = vmatprep.subr.bf16.mxu0 0
      %3760 = vmatpush1.bf16.msra.mxu0 0
      %3761 = vmatprep.subr.bf16.mxu0 0
      %3762 = vmatpush1.bf16.msra.mxu0 0
      %3763 = vmatprep.subr.bf16.mxu0 0
      %3764 = vmatpush1.bf16.msra.mxu0 0
      %3765 = vmatprep.subr.bf16.mxu0 0
      %3766 = vmatpush1.bf16.msra.mxu0 0
      %3767 = vmatprep.subr.bf16.mxu0 0
      %3768 = vmatpush1.bf16.msra.mxu0 0
      %3769 = vmatprep.subr.bf16.mxu0 0
      %3770 = vmatpush1.bf16.msra.mxu0 0
      %3771 = vmatprep.mubr.bf16.mxu0 0
      %3772 = vmatmul.mubr.bf16.gmra.mrb[0].mxu0 %v3280
      %v3773 = vpop.f32.mrb[0].mxu0
      %v3774 = vadd.f32 0.0, %v3773
      %v3775 = vpop.f32.mrb[0].mxu0
      %v3776 = vpop.f32.mrb[0].mxu0
      %v3777 = vadd.f32 0.0, %v3776
      %v3778 = vpop.f32.mrb[0].mxu0
      %3779 = vmatprep.mubr.bf16.mxu0 0
      %3780 = vmatmul.mubr.bf16.gmra.mrb[0].mxu0 %v3282
      %v3781 = vpop.f32.mrb[0].mxu0
      %v3782 = vadd.f32 0.0, %v3781
      %v3783 = vpop.f32.mrb[0].mxu0
      %v3784 = vpop.f32.mrb[0].mxu0
      %v3785 = vadd.f32 0.0, %v3784
      %v3786 = vpop.f32.mrb[0].mxu0
      %3787 = vmatprep.mubr.bf16.mxu0 0
      %3788 = vmatmul.mubr.bf16.gmra.mrb[0].mxu0 %v3284
      %v3789 = vpop.f32.mrb[0].mxu0
      %v3790 = vadd.f32 0.0, %v3789
      %v3791 = vpop.f32.mrb[0].mxu0
      %v3792 = vpop.f32.mrb[0].mxu0
      %v3793 = vadd.f32 0.0, %v3792
      %v3794 = vpop.f32.mrb[0].mxu0
      %3795 = vmatprep.mubr.bf16.mxu0 0
      %3796 = vmatmul.mubr.bf16.gmra.mrb[0].mxu0 %v3286
      %v3797 = vpop.f32.mrb[0].mxu0
      %v3798 = vadd.f32 0.0, %v3797
      %v3799 = vpop.f32.mrb[0].mxu0
      %v3800 = vpop.f32.mrb[0].mxu0
      %v3801 = vadd.f32 0.0, %v3800
      %v3802 = vpop.f32.mrb[0].mxu0
      %3803 = vmatprep.mubr.bf16.mxu0 0
      %3804 = vmatmul.mubr.bf16.gmra.mrb[0].mxu0 %v3288
      %v3805 = vpop.f32.mrb[0].mxu0
      %v3806 = vadd.f32 0.0, %v3805
      %v3807 = vpop.f32.mrb[0].mxu0
      %v3808 = vpop.f32.mrb[0].mxu0
      %v3809 = vadd.f32 0.0, %v3808
      %v3810 = vpop.f32.mrb[0].mxu0
      %3811 = vmatprep.mubr.bf16.mxu0 0
      %3812 = vmatmul.mubr.bf16.gmra.mrb[0].mxu0 %v3290
      %v3813 = vpop.f32.mrb[0].mxu0
      %v3814 = vadd.f32 0.0, %v3813
      %v3815 = vpop.f32.mrb[0].mxu0
      %v3816 = vpop.f32.mrb[0].mxu0
      %v3817 = vadd.f32 0.0, %v3816
      %v3818 = vpop.f32.mrb[0].mxu0
      %3819 = vmatprep.mubr.bf16.mxu0 0
      %3820 = vmatmul.mubr.bf16.gmra.mrb[0].mxu0 %v3292
      %v3821 = vpop.f32.mrb[0].mxu0
      %v3822 = vadd.f32 0.0, %v3821
      %v3823 = vpop.f32.mrb[0].mxu0
      %v3824 = vpop.f32.mrb[0].mxu0
      %v3825 = vadd.f32 0.0, %v3824
      %v3826 = vpop.f32.mrb[0].mxu0
      %3827 = vmatprep.mubr.bf16.mxu0 0
      %3828 = vmatmul.mubr.bf16.gmra.mrb[0].mxu0 %v3294
      %v3829 = vpop.f32.mrb[0].mxu0
      %v3830 = vadd.f32 0.0, %v3829
      %v3831 = vpop.f32.mrb[0].mxu0
      %v3832 = vpop.f32.mrb[0].mxu0
      %v3833 = vadd.f32 0.0, %v3832
      %v3834 = vpop.f32.mrb[0].mxu0
      %3835 = vmatprep.mubr.bf16.mxu0 0
      %3836 = vmatmul.mubr.bf16.gmra.mrb[0].mxu0 %v3296
      %v3837 = vpop.f32.mrb[0].mxu0
      %v3838 = vadd.f32 0.0, %v3837
      %v3839 = vpop.f32.mrb[0].mxu0
      %v3840 = vpop.f32.mrb[0].mxu0
      %v3841 = vadd.f32 0.0, %v3840
      %v3842 = vpop.f32.mrb[0].mxu0
      %3843 = vmatprep.mubr.bf16.mxu0 0
      %3844 = vmatmul.mubr.bf16.gmra.mrb[0].mxu0 %v3298
      %v3845 = vpop.f32.mrb[0].mxu0
      %v3846 = vadd.f32 0.0, %v3845
      %v3847 = vpop.f32.mrb[0].mxu0
      %v3848 = vpop.f32.mrb[0].mxu0
      %v3849 = vadd.f32 0.0, %v3848
      %v3850 = vpop.f32.mrb[0].mxu0
      %3851 = vmatprep.mubr.bf16.mxu0 0
      %3852 = vmatmul.mubr.bf16.gmra.mrb[0].mxu0 %v3300
      %v3853 = vpop.f32.mrb[0].mxu0
      %v3854 = vadd.f32 0.0, %v3853
      %v3855 = vpop.f32.mrb[0].mxu0
      %v3856 = vpop.f32.mrb[0].mxu0
      %v3857 = vadd.f32 0.0, %v3856
      %v3858 = vpop.f32.mrb[0].mxu0
      %3859 = vmatprep.mubr.bf16.mxu0 0
      %3860 = vmatmul.mubr.bf16.gmra.mrb[0].mxu0 %v3302
      %v3861 = vpop.f32.mrb[0].mxu0
      %v3862 = vadd.f32 0.0, %v3861
      %v3863 = vpop.f32.mrb[0].mxu0
      %v3864 = vpop.f32.mrb[0].mxu0
      %v3865 = vadd.f32 0.0, %v3864
      %v3866 = vpop.f32.mrb[0].mxu0
      %3867 = vmatprep.mubr.bf16.mxu0 0
      %3868 = vmatmul.mubr.bf16.gmra.mrb[0].mxu0 %v3304
      %v3869 = vpop.f32.mrb[0].mxu0
      %v3870 = vadd.f32 0.0, %v3869
      %v3871 = vpop.f32.mrb[0].mxu0
      %v3872 = vpop.f32.mrb[0].mxu0
      %v3873 = vadd.f32 0.0, %v3872
      %v3874 = vpop.f32.mrb[0].mxu0
      %3875 = vmatprep.mubr.bf16.mxu0 0
      %3876 = vmatmul.mubr.bf16.gmra.mrb[0].mxu0 %v3306
      %v3877 = vpop.f32.mrb[0].mxu0
      %v3878 = vadd.f32 0.0, %v3877
      %v3879 = vpop.f32.mrb[0].mxu0
      %v3880 = vpop.f32.mrb[0].mxu0
      %v3881 = vadd.f32 0.0, %v3880
      %v3882 = vpop.f32.mrb[0].mxu0
      %3883 = vmatprep.mubr.bf16.mxu0 0
      %3884 = vmatmul.mubr.bf16.gmra.mrb[0].mxu0 %v3523
      %v3885 = vpop.f32.mrb[0].mxu0
      %v3886 = vadd.f32 0.0, %v3885
      %v3887 = vpop.f32.mrb[0].mxu0
      %v3888 = vpop.f32.mrb[0].mxu0
      %v3889 = vadd.f32 0.0, %v3888
      %v3890 = vpop.f32.mrb[0].mxu0
      %3891 = vmatprep.mubr.bf16.mxu0 0
      %3892 = vmatmul.mubr.bf16.gmra.mrb[0].mxu0 %v3734
      %v3893 = vpop.f32.mrb[0].mxu0
      %v3894 = vadd.f32 0.0, %v3893
      %v3895 = vpop.f32.mrb[0].mxu0
      %v3896 = vpop.f32.mrb[0].mxu0
      %v3897 = vadd.f32 0.0, %v3896
      %v3898 = vpop.f32.mrb[0].mxu0
      %3899 = vdwg.mxu0
      %v3900 = vadd.f32 %v3689, %v3774
      %v3901 = vadd.f32 %v3690, %v3777
      %v3902 = vadd.f32 %v3691, %v3782
      %v3903 = vadd.f32 %v3692, %v3785
      %v3904 = vadd.f32 %v3693, %v3790
      %v3905 = vadd.f32 %v3694, %v3793
      %v3906 = vadd.f32 %v3695, %v3798
      %v3907 = vadd.f32 %v3696, %v3801
      %v3908 = vadd.f32 %v3697, %v3806
      %v3909 = vadd.f32 %v3698, %v3809
      %v3910 = vadd.f32 %v3699, %v3814
      %v3911 = vadd.f32 %v3700, %v3817
      %v3912 = vadd.f32 %v3701, %v3822
      %v3913 = vadd.f32 %v3702, %v3825
      %v3914 = vadd.f32 %v3703, %v3830
      %v3915 = vadd.f32 %v3704, %v3833
      %v3916 = vadd.f32 %v3705, %v3838
      %v3917 = vadd.f32 %v3706, %v3841
      %v3918 = vadd.f32 %v3707, %v3846
      %v3919 = vadd.f32 %v3708, %v3849
      %v3920 = vadd.f32 %v3709, %v3854
      %v3921 = vadd.f32 %v3710, %v3857
      %v3922 = vadd.f32 %v3711, %v3862
      %v3923 = vadd.f32 %v3712, %v3865
      %v3924 = vadd.f32 %v3713, %v3870
      %v3925 = vadd.f32 %v3714, %v3873
      %v3926 = vadd.f32 %v3715, %v3878
      %v3927 = vadd.f32 %v3716, %v3881
      %v3928 = vadd.f32 %v3717, %v3886
      %v3929 = vadd.f32 %v3718, %v3889
      %v3930 = vadd.f32 %v3719, %v3894
      %v3931 = vadd.f32 %v3720, %v3897
      %v3932 = vsub.f32 0.0, %v3900
      %v3933 = vsub.f32 0.0, %v3901
      %v3934 = vsub.f32 0.0, %v3902
      %v3935 = vsub.f32 0.0, %v3903
      %v3936 = vsub.f32 0.0, %v3904
      %v3937 = vsub.f32 0.0, %v3905
      %v3938 = vsub.f32 0.0, %v3906
      %v3939 = vsub.f32 0.0, %v3907
      %v3940 = vsub.f32 0.0, %v3908
      %v3941 = vsub.f32 0.0, %v3909
      %v3942 = vsub.f32 0.0, %v3910
      %v3943 = vsub.f32 0.0, %v3911
      %v3944 = vsub.f32 0.0, %v3912
      %v3945 = vsub.f32 0.0, %v3913
      %v3946 = vsub.f32 0.0, %v3914
      %v3947 = vsub.f32 0.0, %v3915
      %v3948 = vsub.f32 0.0, %v3916
      %v3949 = vsub.f32 0.0, %v3917
      %v3950 = vsub.f32 0.0, %v3918
      %v3951 = vsub.f32 0.0, %v3919
      %v3952 = vsub.f32 0.0, %v3920
      %v3953 = vsub.f32 0.0, %v3921
      %v3954 = vsub.f32 0.0, %v3922
      %v3955 = vsub.f32 0.0, %v3923
      %v3956 = vsub.f32 0.0, %v3924
      %v3957 = vsub.f32 0.0, %v3925
      %v3958 = vsub.f32 0.0, %v3926
      %v3959 = vsub.f32 0.0, %v3927
      %v3960 = vsub.f32 0.0, %v3928
      %v3961 = vsub.f32 0.0, %v3929
      %v3962 = vsub.f32 0.0, %v3930
      %v3963 = vsub.f32 0.0, %v3931
      %v3964 = vmul.f32 %v3932, 1.442695
      %v3965 = vpow.pop %v3964
      %v3966 = vmul.f32 %v3933, 1.442695
      %v3967 = vpow.pop %v3966
      %v3968 = vmul.f32 %v3934, 1.442695
      %v3969 = vpow.pop %v3968
      %v3970 = vmul.f32 %v3935, 1.442695
      %v3971 = vpow.pop %v3970
      %v3972 = vmul.f32 %v3936, 1.442695
      %v3973 = vpow.pop %v3972
      %v3974 = vmul.f32 %v3937, 1.442695
      %v3975 = vpow.pop %v3974
      %v3976 = vmul.f32 %v3938, 1.442695
      %v3977 = vpow.pop %v3976
      %v3978 = vmul.f32 %v3939, 1.442695
      %v3979 = vpow.pop %v3978
      %v3980 = vmul.f32 %v3940, 1.442695
      %v3981 = vpow.pop %v3980
      %v3982 = vmul.f32 %v3941, 1.442695
      %v3983 = vpow.pop %v3982
      %v3984 = vmul.f32 %v3942, 1.442695
      %v3985 = vpow.pop %v3984
      %v3986 = vmul.f32 %v3943, 1.442695
      %v3987 = vpow.pop %v3986
      %v3988 = vmul.f32 %v3944, 1.442695
      %v3989 = vpow.pop %v3988
      %v3990 = vmul.f32 %v3945, 1.442695
      %v3991 = vpow.pop %v3990
      %v3992 = vmul.f32 %v3946, 1.442695
      %v3993 = vpow.pop %v3992
      %v3994 = vmul.f32 %v3947, 1.442695
      %v3995 = vpow.pop %v3994
      %v3996 = vmul.f32 %v3948, 1.442695
      %v3997 = vpow.pop %v3996
      %v3998 = vmul.f32 %v3949, 1.442695
      %v3999 = vpow.pop %v3998
      %v4000 = vmul.f32 %v3950, 1.442695
      %v4001 = vpow.pop %v4000
      %v4002 = vmul.f32 %v3951, 1.442695
      %v4003 = vpow.pop %v4002
      %v4004 = vmul.f32 %v3952, 1.442695
      %v4005 = vpow.pop %v4004
      %v4006 = vmul.f32 %v3953, 1.442695
      %v4007 = vpow.pop %v4006
      %v4008 = vmul.f32 %v3954, 1.442695
      %v4009 = vpow.pop %v4008
      %v4010 = vmul.f32 %v3955, 1.442695
      %v4011 = vpow.pop %v4010
      %v4012 = vmul.f32 %v3956, 1.442695
      %v4013 = vpow.pop %v4012
      %v4014 = vmul.f32 %v3957, 1.442695
      %v4015 = vpow.pop %v4014
      %v4016 = vmul.f32 %v3958, 1.442695
      %v4017 = vpow.pop %v4016
      %v4018 = vmul.f32 %v3959, 1.442695
      %v4019 = vpow.pop %v4018
      %v4020 = vmul.f32 %v3960, 1.442695
      %v4021 = vpow.pop %v4020
      %v4022 = vmul.f32 %v3961, 1.442695
      %v4023 = vpow.pop %v4022
      %v4024 = vmul.f32 %v3962, 1.442695
      %v4025 = vpow.pop %v4024
      %v4026 = vmul.f32 %v3963, 1.442695
      %v4027 = vpow.pop %v4026
      %v4028 = vadd.f32 %v3965, 1.0
      %v4029 = vadd.f32 %v3967, 1.0
      %v4030 = vadd.f32 %v3969, 1.0
      %v4031 = vadd.f32 %v3971, 1.0
      %v4032 = vadd.f32 %v3973, 1.0
      %v4033 = vadd.f32 %v3975, 1.0
      %v4034 = vadd.f32 %v3977, 1.0
      %v4035 = vadd.f32 %v3979, 1.0
      %v4036 = vadd.f32 %v3981, 1.0
      %v4037 = vadd.f32 %v3983, 1.0
      %v4038 = vadd.f32 %v3985, 1.0
      %v4039 = vadd.f32 %v3987, 1.0
      %v4040 = vadd.f32 %v3989, 1.0
      %v4041 = vadd.f32 %v3991, 1.0
      %v4042 = vadd.f32 %v3993, 1.0
      %v4043 = vadd.f32 %v3995, 1.0
      %v4044 = vadd.f32 %v3997, 1.0
      %v4045 = vadd.f32 %v3999, 1.0
      %v4046 = vadd.f32 %v4001, 1.0
      %v4047 = vadd.f32 %v4003, 1.0
      %v4048 = vadd.f32 %v4005, 1.0
      %v4049 = vadd.f32 %v4007, 1.0
      %v4050 = vadd.f32 %v4009, 1.0
      %v4051 = vadd.f32 %v4011, 1.0
      %v4052 = vadd.f32 %v4013, 1.0
      %v4053 = vadd.f32 %v4015, 1.0
      %v4054 = vadd.f32 %v4017, 1.0
      %v4055 = vadd.f32 %v4019, 1.0
      %v4056 = vadd.f32 %v4021, 1.0
      %v4057 = vadd.f32 %v4023, 1.0
      %v4058 = vadd.f32 %v4025, 1.0
      %v4059 = vadd.f32 %v4027, 1.0
      %v4060 = vrcp.pop %v4028
      %v4061 = vrcp.pop %v4029
      %v4062 = vrcp.pop %v4030
      %v4063 = vrcp.pop %v4031
      %v4064 = vrcp.pop %v4032
      %v4065 = vrcp.pop %v4033
      %v4066 = vrcp.pop %v4034
      %v4067 = vrcp.pop %v4035
      %v4068 = vrcp.pop %v4036
      %v4069 = vrcp.pop %v4037
      %v4070 = vrcp.pop %v4038
      %v4071 = vrcp.pop %v4039
      %v4072 = vrcp.pop %v4040
      %v4073 = vrcp.pop %v4041
      %v4074 = vrcp.pop %v4042
      %v4075 = vrcp.pop %v4043
      %v4076 = vrcp.pop %v4044
      %v4077 = vrcp.pop %v4045
      %v4078 = vrcp.pop %v4046
      %v4079 = vrcp.pop %v4047
      %v4080 = vrcp.pop %v4048
      %v4081 = vrcp.pop %v4049
      %v4082 = vrcp.pop %v4050
      %v4083 = vrcp.pop %v4051
      %v4084 = vrcp.pop %v4052
      %v4085 = vrcp.pop %v4053
      %v4086 = vrcp.pop %v4054
      %v4087 = vrcp.pop %v4055
      %v4088 = vrcp.pop %v4056
      %v4089 = vrcp.pop %v4057
      %v4090 = vrcp.pop %v4058
      %v4091 = vrcp.pop %v4059
      %v4092 = vmul.f32 %v1155, %v4060
      %v4093 = vmul.f32 %v1156, %v4061
      %v4094 = vmul.f32 %v1157, %v4062
      %v4095 = vmul.f32 %v1158, %v4063
      %v4096 = vmul.f32 %v1159, %v4064
      %v4097 = vmul.f32 %v1160, %v4065
      %v4098 = vmul.f32 %v1161, %v4066
      %v4099 = vmul.f32 %v1162, %v4067
      %v4100 = vmul.f32 %v1163, %v4068
      %v4101 = vmul.f32 %v1164, %v4069
      %v4102 = vmul.f32 %v1165, %v4070
      %v4103 = vmul.f32 %v1166, %v4071
      %v4104 = vmul.f32 %v1167, %v4072
      %v4105 = vmul.f32 %v1168, %v4073
      %v4106 = vmul.f32 %v1169, %v4074
      %v4107 = vmul.f32 %v1170, %v4075
      %v4108 = vmul.f32 %v1171, %v4076
      %v4109 = vmul.f32 %v1172, %v4077
      %v4110 = vmul.f32 %v1173, %v4078
      %v4111 = vmul.f32 %v1174, %v4079
      %v4112 = vmul.f32 %v1175, %v4080
      %v4113 = vmul.f32 %v1176, %v4081
      %v4114 = vmul.f32 %v1177, %v4082
      %v4115 = vmul.f32 %v1178, %v4083
      %v4116 = vmul.f32 %v1179, %v4084
      %v4117 = vmul.f32 %v1180, %v4085
      %v4118 = vmul.f32 %v1181, %v4086
      %v4119 = vmul.f32 %v1182, %v4087
      %v4120 = vmul.f32 %v1183, %v4088
      %v4121 = vmul.f32 %v1184, %v4089
      %v4122 = vmul.f32 %v1185, %v4090
      %v4123 = vmul.f32 %v1186, %v4091
      %4124 = vst.msk [vmem:[%s419] sm:$0xff] %vm1264, %v4092
      %4125 = vst.msk [vmem:[%s419 + $0x8] sm:$0xff] %vm1264, %v4093
      %4126 = vst.msk [vmem:[%s419 + $0x10] sm:$0xff] %vm1264, %v4094
      %4127 = vst.msk [vmem:[%s419 + $0x18] sm:$0xff] %vm1264, %v4095
      %4128 = vst.msk [vmem:[%s419 + $0x20] sm:$0xff] %vm1264, %v4096
      %4129 = vst.msk [vmem:[%s419 + $0x28] sm:$0xff] %vm1264, %v4097
      %4130 = vst.msk [vmem:[%s419 + $0x30] sm:$0xff] %vm1264, %v4098
      %4131 = vst.msk [vmem:[%s419 + $0x38] sm:$0xff] %vm1264, %v4099
      %4132 = vst.msk [vmem:[%s419 + $0x40] sm:$0xff] %vm1264, %v4100
      %4133 = vst.msk [vmem:[%s419 + $0x48] sm:$0xff] %vm1264, %v4101
      %4134 = vst.msk [vmem:[%s419 + $0x50] sm:$0xff] %vm1264, %v4102
      %4135 = vst.msk [vmem:[%s419 + $0x58] sm:$0xff] %vm1264, %v4103
      %4136 = vst.msk [vmem:[%s419 + $0x60] sm:$0xff] %vm1264, %v4104
      %4137 = vst.msk [vmem:[%s419 + $0x68] sm:$0xff] %vm1264, %v4105
      %4138 = vst.msk [vmem:[%s419 + $0x70] sm:$0xff] %vm1264, %v4106
      %4139 = vst.msk [vmem:[%s419 + $0x78] sm:$0xff] %vm1264, %v4107
      %4140 = vst.msk [vmem:[%s419 + $0x80] sm:$0xff] %vm1264, %v4108
      %4141 = vst.msk [vmem:[%s419 + $0x88] sm:$0xff] %vm1264, %v4109
      %4142 = vst.msk [vmem:[%s419 + $0x90] sm:$0xff] %vm1264, %v4110
      %4143 = vst.msk [vmem:[%s419 + $0x98] sm:$0xff] %vm1264, %v4111
      %4144 = vst.msk [vmem:[%s419 + $0xa0] sm:$0xff] %vm1264, %v4112
      %4145 = vst.msk [vmem:[%s419 + $0xa8] sm:$0xff] %vm1264, %v4113
      %4146 = vst.msk [vmem:[%s419 + $0xb0] sm:$0xff] %vm1264, %v4114
      %4147 = vst.msk [vmem:[%s419 + $0xb8] sm:$0xff] %vm1264, %v4115
      %4148 = vst.msk [vmem:[%s419 + $0xc0] sm:$0xff] %vm1264, %v4116
      %4149 = vst.msk [vmem:[%s419 + $0xc8] sm:$0xff] %vm1264, %v4117
      %4150 = vst.msk [vmem:[%s419 + $0xd0] sm:$0xff] %vm1264, %v4118
      %4151 = vst.msk [vmem:[%s419 + $0xd8] sm:$0xff] %vm1264, %v4119
      %4152 = vst.msk [vmem:[%s419 + $0xe0] sm:$0xff] %vm1264, %v4120
      %4153 = vst.msk [vmem:[%s419 + $0xe8] sm:$0xff] %vm1264, %v4121
      %4154 = vst.msk [vmem:[%s419 + $0xf0] sm:$0xff] %vm1264, %v4122
      %4155 = vst.msk [vmem:[%s419 + $0xf8] sm:$0xff] %vm1264, %v4123
      %s4156 = smul.u32 16, %s26
      %p4157 = scmp.lt.s32.totalorder %s25, 1
      %s4158 = scalar_select %p4157, %s25, 1
      %p4159 = scmp.lt.s32.totalorder %s4156, 15
      %s4160 = scalar_select %p4159, %s4156, 15
      %s4161 = smul.addr %s4160, 2
      %s4162 = smul.addr %s4158, 32
      %s4163 = sadd.s32 %s4161, %s4162
      %s4164 = smul.addr %s4163, 8
      %s4165 = scalar_lea.vmem %s8, %s4164
      %s4166 = smul.u32 16, %s26
      %p4167 = scmp.lt.s32.totalorder %s25, 1
      %s4168 = scalar_select %p4167, %s25, 1
      %p4169 = scmp.lt.s32.totalorder %s4166, 15
      %s4170 = scalar_select %p4169, %s4166, 15
      %s4171 = smul.addr %s4170, 2
      %s4172 = smul.addr %s4168, 32
      %s4173 = sadd.s32 %s4171, %s4172
      %s4174 = smul.addr %s4173, 8
      %s4175 = scalar_lea.vmem %s9, %s4174
      // Predicated region
      $region57: #{ba_block_forward.1} parent=51 // pred_check
        %p4176 = pneg %p235
      $region58: #{ba_block_forward.1} parent=51 // pred_check_branch
        %4178 = sbr.rel (%p4176) target = $region60
      $region59: #{ba_block_forward.1} parent=51 // pred_region
        %s4179 = smul.u32 16, %s26
      $region60: #{ba_block_forward.1} parent=51 // pred_fallthru
        _
      // Predicated region
      $region61: #{ba_block_forward.1} parent=51 // pred_check
        %p4180 = pneg %p263
      $region62: #{ba_block_forward.1} parent=51 // pred_check_branch
        %4182 = sbr.rel (%p4180) target = $region64
      $region63: #{ba_block_forward.1} parent=51 // pred_region
        %s4183 = smul.u32 16, %s26
      $region64: #{ba_block_forward.1} parent=51 // pred_fallthru
        _
    $region52: #{ba_block_forward.1} parent=5 // pred_fallthru
      _
    %p4184 = scmp.le.s32.totalorder 2, %s16
    // Predicated region
    $region65: #{ba_block_forward.1} parent=5 // pred_check
      %p4185 = pneg %p4184
    $region66: #{ba_block_forward.1} parent=5 // pred_check_branch
      %4187 = sbr.rel (%p4185) target = $region68
    $region67: #{ba_block_forward.1} parent=5 // pred_region
      %s4188 = ssub.s32 %s16, 2
      // Predicated region
      $region69: #{ba_block_forward.1} parent=67 // pred_check
        %p4189 = pneg %p241
      $region70: #{ba_block_forward.1} parent=67 // pred_check_branch
        %4191 = sbr.rel (%p4189) target = $region72
      $region71: #{ba_block_forward.1} parent=67 // pred_region
        %s4192 = smul.u32 16, %s28
        %p4193 = scmp.lt.s32.totalorder %s27, 1
        %s4194 = scalar_select %p4193, %s27, 1
        %p4195 = scmp.lt.s32.totalorder %s4192, 15
        %s4196 = scalar_select %p4195, %s4192, 15
        %s4197 = smul.addr %s4196, 2
        %s4198 = smul.addr %s4194, 32
        %s4199 = sadd.s32 %s4197, %s4198
        %s4200 = smul.addr %s4199, 8
        %s4201 = scalar_lea.vmem %s8, %s4200
      $region72: #{ba_block_forward.1} parent=67 // pred_fallthru
        _
      // Predicated region
      $region73: #{ba_block_forward.1} parent=67 // pred_check
        %p4202 = pneg %p269
      $region74: #{ba_block_forward.1} parent=67 // pred_check_branch
        %4204 = sbr.rel (%p4202) target = $region76
      $region75: #{ba_block_forward.1} parent=67 // pred_region
        %s4205 = smul.u32 16, %s28
        %p4206 = scmp.lt.s32.totalorder %s27, 1
        %s4207 = scalar_select %p4206, %s27, 1
        %p4208 = scmp.lt.s32.totalorder %s4205, 15
        %s4209 = scalar_select %p4208, %s4205, 15
        %s4210 = smul.addr %s4209, 2
        %s4211 = smul.addr %s4207, 32
        %s4212 = sadd.s32 %s4210, %s4211
        %s4213 = smul.addr %s4212, 8
        %s4214 = scalar_lea.vmem %s9, %s4213
      $region76: #{ba_block_forward.1} parent=67 // pred_fallthru
        _
    $region68: #{ba_block_forward.1} parent=5 // pred_fallthru
      _
  $region6: #{ba_block_forward.1} parent=0 // loop_footer
    %s20 = sadd.s32 1, %s16
  $region7: #{ba_block_forward.1} parent=0 // loop_footer_branch
    %15 = sbr.rel target = $region3
  $region8: #{ba_block_forward.1} parent=0 // loop_exit
    _

</llo_original>
